<compile_context>
chip_gen: v7x
topology: tpu7x:2x2x1
jax: 0.10.0
libtpu: 0.0.40
codegen_flags: <defaults>
</compile_context>

<pallas_src>
import functools

import jax
import jax.numpy as jnp
import numpy as np
from jax import lax
from jax.experimental import pallas as pl
from jax.experimental.pallas import tpu as pltpu


# ----------------------------------------------------------------------------
# helpers
# ----------------------------------------------------------------------------
def _pick_bsub(n, rows_per_sample, row_cap=256):
    """Samples per grid step: keep bsub*rows <= row_cap, prefer >= 2 grid steps."""
    divs = [d for d in range(1, n + 1) if n % d == 0]
    ok = [d for d in divs if d * rows_per_sample <= row_cap]
    best = max(ok) if ok else 1
    if n // best < 2:
        smaller = [d for d in divs if d < best and n // d >= 2]
        if smaller:
            best = max(smaller)
    return best


def bn_affine(mean, var, gamma, beta, eps=1e-5):
    """Training-mode BatchNorm1d (biased var) -> per-channel (scale, shift)."""
    scale = gamma * lax.rsqrt(var + eps)
    shift = beta - mean * scale
    return scale, shift


# ----------------------------------------------------------------------------
# fused  BN-apply + ReLU + Conv1d(k=9)  [+ 1x1 shortcut | + residual add]
# with fused batch-statistic partial outputs for the NEXT BatchNorm
# ----------------------------------------------------------------------------
def _bn_conv_kernel(*refs, stride, ksize, pad, l_valid, has_shortcut, has_add):
    idx = 0
    x_ref = refs[idx]; idx += 1
    scale_ref = refs[idx]; idx += 1
    shift_ref = refs[idx]; idx += 1
    w_ref = refs[idx]; idx += 1
    wsc_ref = None
    if has_shortcut:
        wsc_ref = refs[idx]; idx += 1
    add_ref = None
    if has_add:
        add_ref = refs[idx]; idx += 1
    out_ref = refs[idx]; idx += 1
    sc_ref = None
    if has_shortcut:
        sc_ref = refs[idx]; idx += 1
    ssum_ref = refs[idx]; idx += 1
    ssq_ref = refs[idx]; idx += 1
    y_scr = refs[idx]; idx += 1
    col_scr = refs[idx]; idx += 1

    bsub, l_out, cout = out_ref.shape
    cin = scale_ref.shape[1]
    m = bsub * l_out

    # -- 1. BN apply + ReLU + zero-padding mask, ONCE over the whole slab (f32 math) --
    xv = x_ref[...].astype(jnp.float32)
    scale = scale_ref[...].reshape((1,) * (xv.ndim - 1) + (cin,))
    shift = shift_ref[...].reshape((1,) * (xv.ndim - 1) + (cin,))
    y = jnp.maximum(xv * scale + shift, 0.0)
    if stride == 1:
        pos = lax.broadcasted_iota(jnp.int32, xv.shape, 1)
    else:  # phase-split layout (bsub, stride, Lph, Cin): position = r + stride*j
        pos = (lax.broadcasted_iota(jnp.int32, xv.shape, 1)
               + stride * lax.broadcasted_iota(jnp.int32, xv.shape, 2))
    y = jnp.where((pos >= pad) & (pos < pad + l_valid), y, 0.0)
    y_scr[...] = y.astype(jnp.bfloat16)

    # -- 2. im2col assembly in VMEM (tap-major columns, contiguous slice reads) --
    for t in range(ksize):
        if stride == 1:
            sl = y_scr[:, t:t + l_out, :]
        else:
            sl = y_scr[:, t % stride, t // stride:t // stride + l_out, :]
        col_scr[:, t * cin:(t + 1) * cin] = sl.reshape(m, cin)

    # -- 3. one deep-K MXU matmul (K*Cin = 144..1152) --
    acc = jnp.dot(col_scr[...], w_ref[...], preferred_element_type=jnp.float32)

    if has_add:  # fused residual add
        acc = acc + add_ref[...].astype(jnp.float32)

    # -- 4. fused BatchNorm batch-statistic partials of THIS kernel's output --
    ssum_ref[...] = jnp.sum(acc, axis=0, keepdims=True).reshape(1, 1, cout)
    ssq_ref[...] = jnp.sum(acc * acc, axis=0, keepdims=True).reshape(1, 1, cout)

    out_ref[...] = acc.astype(jnp.bfloat16).reshape(bsub, l_out, cout)

    # -- 5. fused 1x1 strided shortcut conv (center tap of the im2col slab) --
    if has_shortcut:
        ctr = col_scr[:, pad * cin:(pad + 1) * cin]
        sc = jnp.dot(ctr, wsc_ref[...], preferred_element_type=jnp.float32)
        sc_ref[...] = sc.astype(jnp.bfloat16)


def fused_bn_conv(x, scale, shift, w, stride, wsc=None, add=None):
    """x: (N, L, Cin) bf16 raw (pre-BN) activation; w: torch Conv1d weight (Cout, Cin, K).
    Computes conv(relu(x*scale+shift)) with zero padding (K-1)//2, returns the bf16 output,
    the batch mean/var of the (f32) output, and optionally the fused 1x1 shortcut conv."""
    N, L, Cin = x.shape
    Cout, _, K = w.shape
    pad = (K - 1) // 2
    L_out = (L - 1) // stride + 1
    bsub = _pick_bsub(N, L_out)
    G = N // bsub
    M_blk = bsub * L_out

    xb = x.astype(jnp.bfloat16)
    if stride == 1:
        Lp = L + 2 * pad
        xin = jnp.pad(xb, ((0, 0), (pad, pad), (0, 0)))
        x_spec = pl.BlockSpec((bsub, Lp, Cin), lambda i: (i, 0, 0))
        y_shape = (bsub, Lp, Cin)
    else:
        Lp = L + 2 * pad
        Lph = -(-Lp // stride)
        xp = jnp.pad(xb, ((0, 0), (pad, pad + (Lph * stride - Lp)), (0, 0)))
        xin = jnp.transpose(xp.reshape(N, Lph, stride, Cin), (0, 2, 1, 3))
        x_spec = pl.BlockSpec((bsub, stride, Lph, Cin), lambda i: (i, 0, 0, 0))
        y_shape = (bsub, stride, Lph, Cin)

    w_mat = jnp.transpose(w, (2, 1, 0)).reshape(K * Cin, Cout).astype(jnp.bfloat16)

    in_specs = [x_spec,
                pl.BlockSpec((1, Cin), lambda i: (0, 0)),
                pl.BlockSpec((1, Cin), lambda i: (0, 0)),
                pl.BlockSpec((K * Cin, Cout), lambda i: (0, 0))]
    args = [xin,
            scale.reshape(1, Cin).astype(jnp.float32),
            shift.reshape(1, Cin).astype(jnp.float32),
            w_mat]
    has_shortcut = wsc is not None
    has_add = add is not None
    if has_shortcut:
        in_specs.append(pl.BlockSpec((Cin, Cout), lambda i: (0, 0)))
        args.append(wsc[:, :, 0].T.astype(jnp.bfloat16))
    if has_add:
        in_specs.append(pl.BlockSpec((M_blk, Cout), lambda i: (i, 0)))
        args.append(add)  # (N*L_out, Cout) bf16

    out_shape = [jax.ShapeDtypeStruct((N, L_out, Cout), jnp.bfloat16)]
    out_specs = [pl.BlockSpec((bsub, L_out, Cout), lambda i: (i, 0, 0))]
    if has_shortcut:
        out_shape.append(jax.ShapeDtypeStruct((N * L_out, Cout), jnp.bfloat16))
        out_specs.append(pl.BlockSpec((M_blk, Cout), lambda i: (i, 0)))
    out_shape += [jax.ShapeDtypeStruct((G, 1, Cout), jnp.float32),
                  jax.ShapeDtypeStruct((G, 1, Cout), jnp.float32)]
    out_specs += [pl.BlockSpec((1, 1, Cout), lambda i: (i, 0, 0)),
                  pl.BlockSpec((1, 1, Cout), lambda i: (i, 0, 0))]

    kern = functools.partial(_bn_conv_kernel, stride=stride, ksize=K, pad=pad,
                             l_valid=L, has_shortcut=has_shortcut, has_add=has_add)
    outs = pl.pallas_call(
        kern,
        out_shape=tuple(out_shape),
        grid=(G,),
        in_specs=in_specs,
        out_specs=tuple(out_specs),
        scratch_shapes=[pltpu.VMEM(y_shape, jnp.bfloat16),
                        pltpu.VMEM((M_blk, K * Cin), jnp.bfloat16)],
        compiler_params=pltpu.CompilerParams(dimension_semantics=("parallel",)),
    )(*args)

    if has_shortcut:
        out, sc, ssum, ssq = outs
    else:
        out, ssum, ssq = outs
        sc = None
    count = float(N * L_out)
    mean = jnp.sum(ssum[:, 0, :], axis=0) / count
    var = jnp.maximum(jnp.sum(ssq[:, 0, :], axis=0) / count - mean * mean, 0.0)
    if has_shortcut:
        return out, mean, var, sc
    return out, mean, var


# ----------------------------------------------------------------------------
# NetVLAD (fused final-encoder BN+ReLU, batched samples per grid step)
# ----------------------------------------------------------------------------
def _netvlad_kernel(x_ref, scale_ref, shift_ref, w_ref, b_ref, cent_ref, o_ref):
    bsub, L, C = x_ref.shape
    K = w_ref.shape[1]
    # fused final encoder BatchNorm + ReLU (f32 elementwise math)
    y = (x_ref[...].astype(jnp.float32) * scale_ref[...].reshape(1, 1, C)
         + shift_ref[...].reshape(1, 1, C))
    y = jnp.maximum(y, 0.0)
    # F.normalize(x, p=2, dim=1): per-(sample, position) channel L2 normalization
    ss = jnp.sum(y * y, axis=2, keepdims=True)
    y = y * lax.rsqrt(jnp.maximum(ss, 1e-24))
    yb = y.astype(jnp.bfloat16)
    # 1x1-conv soft-assign + exact softmax over clusters
    s = jnp.dot(yb.reshape(bsub * L, C), w_ref[...],
                preferred_element_type=jnp.float32) + b_ref[...]
    s = s - jnp.max(s, axis=1, keepdims=True)
    e = jnp.exp(s)
    a = e / jnp.sum(e, axis=1, keepdims=True)
    a3 = a.reshape(bsub, L, K)
    # vlad[b,k,c] = sum_l a[b,l,k] * y[b,l,c] - cent[k,c] * sum_l a[b,l,k]
    vlad = jnp.einsum("blk,blc->bkc", a3.astype(jnp.bfloat16), yb,
                      preferred_element_type=jnp.float32)
    vlad = vlad - cent_ref[...].reshape(1, K, C) * jnp.sum(a3, axis=1)[:, :, None]
    # intra-normalize per cluster, then global L2 normalize per sample
    intra = jnp.sum(vlad * vlad, axis=2, keepdims=True)
    vlad = vlad * lax.rsqrt(jnp.maximum(intra, 1e-24))
    g = jnp.sum(vlad * vlad, axis=(1, 2), keepdims=True)
    o_ref[...] = (vlad * lax.rsqrt(jnp.maximum(g, 1e-24))).astype(o_ref.dtype)


def netvlad_pallas(x, scale, shift, w, b, cent):
    """x: (N, L, C) bf16 raw block3 output (final encoder BN+ReLU fused in-kernel)."""
    N, L, C = x.shape
    K = w.shape[0]
    bsub = _pick_bsub(N, L)
    out = pl.pallas_call(
        _netvlad_kernel,
        out_shape=jax.ShapeDtypeStruct((N, K, C), jnp.bfloat16),
        grid=(N // bsub,),
        in_specs=[
            pl.BlockSpec((bsub, L, C), lambda n: (n, 0, 0)),
            pl.BlockSpec((1, C), lambda n: (0, 0)),
            pl.BlockSpec((1, C), lambda n: (0, 0)),
            pl.BlockSpec((C, K), lambda n: (0, 0)),
            pl.BlockSpec((1, K), lambda n: (0, 0)),
            pl.BlockSpec((K, C), lambda n: (0, 0)),
        ],
        out_specs=pl.BlockSpec((bsub, K, C), lambda n: (n, 0, 0)),
        compiler_params=pltpu.CompilerParams(dimension_semantics=("parallel",)),
    )(x.astype(jnp.bfloat16), scale.reshape(1, C).astype(jnp.float32),
      shift.reshape(1, C).astype(jnp.float32), w.T.astype(jnp.bfloat16),
      b.reshape(1, K).astype(jnp.float32), cent.astype(jnp.float32))
    return out.reshape(N, K * C)


# ----------------------------------------------------------------------------
# fused head: classifier Linear + projector MLP (matmul -> BN -> ReLU -> matmul)
# ----------------------------------------------------------------------------
def _head_kernel(f_ref, wcat_ref, bcat_ref, g_ref, beta_ref, w2_ref, b2_ref,
                 pred_ref, proj_ref, *, hidden, eps):
    f = f_ref[...]                                     # bf16 features
    hc = jnp.dot(f, wcat_ref[...], preferred_element_type=jnp.float32) + bcat_ref[...]
    pred_ref[...] = hc[:, hidden:hidden + 1]           # classifier output
    h = hc[:, :hidden]                                 # projector hidden
    # BatchNorm1d (training-mode batch statistics over the rows) + ReLU
    mean = jnp.mean(h, axis=0, keepdims=True)
    var = jnp.mean(jnp.square(h - mean), axis=0, keepdims=True)
    hn = (h - mean) * lax.rsqrt(var + eps) * g_ref[...] + beta_ref[...]
    hn = jnp.maximum(hn, 0.0)
    proj_ref[...] = jnp.dot(hn.astype(jnp.bfloat16), w2_ref[...],
                            preferred_element_type=jnp.float32) + b2_ref[...]


def head_forward(features, cls_w, cls_b, proj):
    # grid=(1,) so the projector BN batch statistics cover the whole batch (correctness).
    M, D = features.shape
    H = proj["w1"].shape[0]
    O = proj["w2"].shape[0]
    wcat = jnp.concatenate([proj["w1"].T, cls_w.T], axis=1).astype(jnp.bfloat16)  # (D, H+1)
    bcat = jnp.concatenate([proj["b1"], cls_b]).reshape(1, H + 1).astype(jnp.float32)
    w2 = proj["w2"].T.astype(jnp.bfloat16)
    b2 = proj["b2"].reshape(1, O).astype(jnp.float32)
    g = proj["bn_g"].reshape(1, H).astype(jnp.float32)
    beta = proj["bn_b"].reshape(1, H).astype(jnp.float32)

    pred, projections = pl.pallas_call(
        functools.partial(_head_kernel, hidden=H, eps=1e-5),
        out_shape=(jax.ShapeDtypeStruct((M, 1), jnp.float32),
                   jax.ShapeDtypeStruct((M, O), jnp.float32)),
        grid=(1,),
        in_specs=[
            pl.BlockSpec((M, D), lambda i: (0, 0)),
            pl.BlockSpec((D, H + 1), lambda i: (0, 0)),
            pl.BlockSpec((1, H + 1), lambda i: (0, 0)),
            pl.BlockSpec((1, H), lambda i: (0, 0)),
            pl.BlockSpec((1, H), lambda i: (0, 0)),
            pl.BlockSpec((H, O), lambda i: (0, 0)),
            pl.BlockSpec((1, O), lambda i: (0, 0)),
        ],
        out_specs=(pl.BlockSpec((M, 1), lambda i: (0, 0)),
                   pl.BlockSpec((M, O), lambda i: (0, 0))),
    )(features.astype(jnp.bfloat16), wcat, bcat, g, beta, w2, b2)
    return pred, projections


# ----------------------------------------------------------------------------
# encoder glue
# ----------------------------------------------------------------------------
def conv1_first(x, w):
    # TODO(synk): first conv (Cin=1, 9 taps, (N*L,9)x(9,16)) is left to plain XLA -- a
    # dedicated pallas_call at this size is pure launch/MXU-padding overhead.
    N, L, _ = x.shape
    Cout, _, K = w.shape
    pad = (K - 1) // 2
    xp = jnp.pad(x[..., 0].astype(jnp.float32), ((0, 0), (pad, pad)))
    idx = jnp.arange(L)[:, None] + jnp.arange(K)[None, :]
    patches = xp[:, idx]                                  # (N, L, K)
    wm = jnp.transpose(w, (2, 1, 0)).reshape(K, Cout)
    h = jnp.einsum("nlk,ko->nlo", patches, wm)
    h2 = h.reshape(-1, Cout)
    return h.astype(jnp.bfloat16), jnp.mean(h2, axis=0), jnp.var(h2, axis=0)


def basic_block(x, mean_in, var_in, p, stride):
    # equalInOut is always False in this config (channels change every block)
    s1, b1 = bn_affine(mean_in, var_in, p["bn1_g"], p["bn1_b"])
    c1, m1, v1, sc = fused_bn_conv(x, s1, b1, p["conv1_w"], stride, wsc=p["short_w"])
    s2, b2 = bn_affine(m1, v1, p["bn2_g"], p["bn2_b"])
    out, m2, v2 = fused_bn_conv(c1, s2, b2, p["conv2_w"], 1, add=sc)  # dropRate=0
    return out, m2, v2


def encoder_forward(x_ncw, p):
    """WideResNet(depth=10, widen=2, in_channel=1). x_ncw: (M, 1, bands)."""
    x = jnp.transpose(x_ncw, (0, 2, 1))                   # -> (M, bands, 1)
    h, m, v = conv1_first(x, p["conv1_w"])
    h, m, v = basic_block(h, m, v, p["block1"], 2)
    h, m, v = basic_block(h, m, v, p["block2"], 2)
    h, m, v = basic_block(h, m, v, p["block3"], 2)
    sf, bf = bn_affine(m, v, p["bn_g"], p["bn_b"])         # final BN fused into NetVLAD
    return h, sf, bf


def transformer_layer(tokens, p):
    # TODO(synk): Transformer_layer class is not defined in the reference; implemented as
    # learned attention pooling + output projection, in plain XLA (too tiny for Pallas).
    s = jnp.einsum("bnd,dk->bnk", tokens, p["w_attn"])[..., 0]
    score = jax.nn.softmax(s, axis=1)
    pooled = jnp.einsum("bn,bnd->bd", score, tokens)
    x = pooled @ p["w_out"].T + p["b_out"]
    return x, score


def focal_loss(logits, targets, alpha=0.9, gamma=2.0):
    # TODO(synk): FocalLoss class is not defined in the reference; standard binary sigmoid
    # focal loss (alpha=0.9, gamma=2, mean reduction) is used.
    p = jax.nn.sigmoid(logits)
    pt = p * targets + (1.0 - p) * (1.0 - targets)
    at = alpha * targets + (1.0 - alpha) * (1.0 - targets)
    pt = jnp.clip(pt, 1e-8, 1.0)
    return jnp.mean(-at * (1.0 - pt) ** gamma * jnp.log(pt))


def smooth_l1(x, y):
    d = jnp.abs(x - y)
    return jnp.where(d < 1.0, 0.5 * d * d, d - 0.5)


# ----------------------------------------------------------------------------
# CHEESE forward
# ----------------------------------------------------------------------------
def cheese_forward(params, inputs, targets, mask, outersize=3, innersize=1):
    bs, nb, ch, bands = inputs.shape
    # F.normalize(inputs, dim=1)
    nrm = jnp.sqrt(jnp.sum(inputs * inputs, axis=1, keepdims=True))
    inputs = inputs / jnp.maximum(nrm, 1e-12)

    center_index = nb // 2
    mask_np = np.asarray(mask)
    inner_idx = np.nonzero(mask_np < 1)[0]
    outer_idx = np.nonzero(mask_np > 0)[0]

    centers = jnp.take(inputs, inner_idx, axis=1).mean(axis=1)        # (bs, ch, bands)
    centers = jnp.broadcast_to(centers[:, None], inputs.shape)
    inputs = centers * inputs

    fmap, fscale, fshift = encoder_forward(inputs.reshape(-1, 1, bands), params["enc"])
    features = netvlad_pallas(fmap, fscale, fshift, params["vlad_w"],
                              params["vlad_b"], params["vlad_cent"])  # (bs*nb, 2048) bf16

    # center_stack
    center_label = targets[:, center_index][:, None]
    pairlabel = (center_label == targets).astype(jnp.float32)         # (bs, nb)
    anomalyrate = jnp.sum(jnp.take(pairlabel, outer_idx, axis=1), axis=1) / float(
        outersize ** 2 - innersize ** 2)

    predictions, projections = head_forward(features, params["cls_w"],
                                            params["cls_b"], params["proj"])

    logit = projections.reshape(bs, nb, -1)
    logitouter = jnp.take(logit, outer_idx, axis=1)
    logitinner = logit[:, center_index, :]                            # .detach() = fwd no-op

    x, score = transformer_layer(logitouter, params["trans"])

    loss1 = focal_loss(predictions.reshape(-1, 1), pairlabel.reshape(-1, 1))
    pindex = (anomalyrate > 0.5).astype(jnp.float32)                  # (bs,)
    diff = smooth_l1(x, logitinner)                                   # (bs, 256)
    cnt = jnp.sum(pindex)
    loss2 = jnp.sum(diff * pindex[:, None]) / jnp.maximum(cnt * x.shape[1], 1.0)
    loss = loss2 + loss1 * 0.01
    return loss, [loss1, loss2, 0.0]


# ----------------------------------------------------------------------------
# Deterministic parameter construction
# ----------------------------------------------------------------------------
def init_params(key):
    keys = iter(jax.random.split(key, 40))

    def conv_w(cout, cin, k):
        return jax.random.normal(next(keys), (cout, cin, k), jnp.float32) * np.sqrt(
            2.0 / (cin * k))

    def lin(cout, cin):
        bound = 1.0 / np.sqrt(cin)
        w = jax.random.uniform(next(keys), (cout, cin), jnp.float32, -bound, bound)
        b = jax.random.uniform(next(keys), (cout,), jnp.float32, -bound, bound)
        return w, b

    def block(cin, cout):
        return dict(
            bn1_g=jnp.ones((cin,), jnp.float32), bn1_b=jnp.zeros((cin,), jnp.float32),
            conv1_w=conv_w(cout, cin, 9),
            bn2_g=jnp.ones((cout,), jnp.float32), bn2_b=jnp.zeros((cout,), jnp.float32),
            conv2_w=conv_w(cout, cout, 9),
            short_w=conv_w(cout, cin, 1),
        )

    enc = dict(
        conv1_w=conv_w(16, 1, 9),
        block1=block(16, 32), block2=block(32, 64), block3=block(64, 128),
        bn_g=jnp.ones((128,), jnp.float32), bn_b=jnp.zeros((128,), jnp.float32),
    )
    vlad_w = jax.random.normal(next(keys), (16, 128), jnp.float32) * np.sqrt(2.0 / 128)
    vlad_b = jnp.zeros((16,), jnp.float32)
    vlad_cent = jax.random.uniform(next(keys), (16, 128), jnp.float32)
    cls_w, cls_b = lin(1, 128 * 16)
    p1w, p1b = lin(128, 128 * 16)
    p2w, p2b = lin(256, 128)
    proj = dict(w1=p1w, b1=p1b,
                bn_g=jnp.ones((128,), jnp.float32), bn_b=jnp.zeros((128,), jnp.float32),
                w2=p2w, b2=p2b)
    w_attn = jax.random.normal(next(keys), (256, 1), jnp.float32) * 0.05
    w_out, b_out = lin(256, 256)
    trans = dict(w_attn=w_attn, w_out=w_out, b_out=b_out)
    return dict(enc=enc, vlad_w=vlad_w, vlad_b=vlad_b, vlad_cent=vlad_cent,
                cls_w=cls_w, cls_b=cls_b, proj=proj, trans=trans)


if __name__ == "__main__":
    key = jax.random.PRNGKey(0)
    pkey, dkey = jax.random.split(key)
    params = init_params(pkey)

    # small shapes: outersize=3, innersize=1 -> neighbor_num=9 ; bands=64 (3 stride-2 convs)
    bs, nb, ch, bands = 2, 9, 1, 64
    inputs = jax.random.normal(dkey, (bs, nb, ch, bands), jnp.float32)
    targets = jnp.array([[1] * 9, [1, 0, 1, 0, 1, 0, 1, 0, 1]], dtype=jnp.int32)
    mask = np.ones((nb,), np.float32)
    mask[nb // 2] = 0.0  # center pixel is "inner", rest "outer"

    loss, loss_list = cheese_forward(params, inputs, targets, mask,
                                     outersize=3, innersize=1)
    jax.block_until_ready(loss)
    jax.block_until_ready(loss_list[0])
    jax.block_until_ready(loss_list[1])
    print("KERNEL_OK")
</pallas_src>

<mosaic_0001>
module attributes {stable_mosaic.version = 11 : i64} {
  func.func @_bn_conv_kernel(%arg0: i32, %arg1: memref<6x2x36x16xbf16, #tpu.memory_space<vmem>>, %arg2: memref<1x16xf32, #tpu.memory_space<vmem>>, %arg3: memref<1x16xf32, #tpu.memory_space<vmem>>, %arg4: memref<144x32xbf16, #tpu.memory_space<vmem>>, %arg5: memref<16x32xbf16, #tpu.memory_space<vmem>>, %arg6: memref<6x32x32xbf16, #tpu.memory_space<vmem>>, %arg7: memref<192x32xbf16, #tpu.memory_space<vmem>>, %arg8: memref<1x1x32xf32, #tpu.memory_space<vmem>>, %arg9: memref<1x1x32xf32, #tpu.memory_space<vmem>>, %arg10: memref<6x2x36x16xbf16, #tpu.memory_space<vmem>>, %arg11: memref<192x144xbf16, #tpu.memory_space<vmem>>) attributes {dimension_semantics = [#tpu.dimension_semantics<parallel>], iteration_bounds = array<i64: 3>, scalar_prefetch = 0 : i64, scratch_operands = 2 : i64, tpu.core_type = #tpu.core_type<tc>, window_params = [{transform_indices = @transform_0, window_bounds = array<i64: 6, 2, 36, 16>}, {pipeline_mode = #tpu.pipeline_mode<synchronous>, transform_indices = @transform_1, window_bounds = array<i64: 1, 16>}, {pipeline_mode = #tpu.pipeline_mode<synchronous>, transform_indices = @transform_2, window_bounds = array<i64: 1, 16>}, {pipeline_mode = #tpu.pipeline_mode<synchronous>, transform_indices = @transform_3, window_bounds = array<i64: 144, 32>}, {pipeline_mode = #tpu.pipeline_mode<synchronous>, transform_indices = @transform_4, window_bounds = array<i64: 16, 32>}, {transform_indices = @transform_5, window_bounds = array<i64: 6, 32, 32>}, {transform_indices = @transform_6, window_bounds = array<i64: 192, 32>}, {transform_indices = @transform_7, window_bounds = array<i64: 1, 1, 32>}, {transform_indices = @transform_8, window_bounds = array<i64: 1, 1, 32>}]} {
    %c0 = arith.constant 0 : index
    %c0_0 = arith.constant 0 : index
    %c0_1 = arith.constant 0 : index
    %c0_2 = arith.constant 0 : index
    %0 = vector.load %arg1[%c0, %c0_0, %c0_1, %c0_2] : memref<6x2x36x16xbf16, #tpu.memory_space<vmem>>, vector<6x2x36x16xbf16>
    %1 = arith.extf %0 : vector<6x2x36x16xbf16> to vector<6x2x36x16xf32>
    %c0_3 = arith.constant 0 : index
    %c0_4 = arith.constant 0 : index
    %2 = vector.load %arg2[%c0_3, %c0_4] : memref<1x16xf32, #tpu.memory_space<vmem>>, vector<1x16xf32>
    %3 = vector.shape_cast %2 : vector<1x16xf32> to vector<1x1x1x16xf32>
    %c0_5 = arith.constant 0 : index
    %c0_6 = arith.constant 0 : index
    %4 = vector.load %arg3[%c0_5, %c0_6] : memref<1x16xf32, #tpu.memory_space<vmem>>, vector<1x16xf32>
    %5 = vector.shape_cast %4 : vector<1x16xf32> to vector<1x1x1x16xf32>
    %6 = vector.broadcast %3 : vector<1x1x1x16xf32> to vector<6x2x36x16xf32>
    %7 = arith.mulf %1, %6 : vector<6x2x36x16xf32>
    %8 = vector.broadcast %5 : vector<1x1x1x16xf32> to vector<6x2x36x16xf32>
    %9 = arith.addf %7, %8 : vector<6x2x36x16xf32>
    %cst = arith.constant 0.000000e+00 : f32
    %10 = vector.broadcast %cst : f32 to vector<6x2x36x16xf32>
    %11 = arith.maximumf %9, %10 : vector<6x2x36x16xf32>
    %12 = tpu.iota {dimensions = array<i32: 1>} : vector<6x2x36x16xi32>
    %13 = tpu.iota {dimensions = array<i32: 2>} : vector<6x2x36x16xi32>
    %c2_i32 = arith.constant 2 : i32
    %14 = vector.broadcast %c2_i32 : i32 to vector<6x2x36x16xi32>
    %15 = arith.muli %14, %13 : vector<6x2x36x16xi32>
    %16 = arith.addi %12, %15 : vector<6x2x36x16xi32>
    %c4_i32 = arith.constant 4 : i32
    %17 = vector.broadcast %c4_i32 : i32 to vector<6x2x36x16xi32>
    %18 = arith.cmpi sge, %16, %17 : vector<6x2x36x16xi32>
    %c68_i32 = arith.constant 68 : i32
    %19 = vector.broadcast %c68_i32 : i32 to vector<6x2x36x16xi32>
    %20 = arith.cmpi slt, %16, %19 : vector<6x2x36x16xi32>
    %21 = arith.andi %18, %20 : vector<6x2x36x16xi1>
    %cst_7 = arith.constant 0.000000e+00 : f32
    %22 = vector.broadcast %cst_7 : f32 to vector<6x2x36x16xf32>
    %23 = arith.select %21, %11, %22 : vector<6x2x36x16xi1>, vector<6x2x36x16xf32>
    %24 = arith.truncf %23 : vector<6x2x36x16xf32> to vector<6x2x36x16xbf16>
    %c0_8 = arith.constant 0 : index
    %c0_9 = arith.constant 0 : index
    %c0_10 = arith.constant 0 : index
    %c0_11 = arith.constant 0 : index
    %25 = vector.load %arg10[%c0_8, %c0_9, %c0_10, %c0_11] : memref<6x2x36x16xbf16, #tpu.memory_space<vmem>>, vector<6x2x36x16xbf16>
    tpu.vector_store %arg10[%c0_8, %c0_9, %c0_10, %c0_11], %24 {strides = array<i32>} : memref<6x2x36x16xbf16, #tpu.memory_space<vmem>>, vector<6x2x36x16xbf16>,
    %c0_12 = arith.constant 0 : index
    %c0_13 = arith.constant 0 : index
    %c0_14 = arith.constant 0 : index
    %c0_15 = arith.constant 0 : index
    %26 = vector.load %arg10[%c0_12, %c0_13, %c0_14, %c0_15] : memref<6x2x36x16xbf16, #tpu.memory_space<vmem>>, vector<6x1x32x16xbf16>
    %27 = vector.shape_cast %26 : vector<6x1x32x16xbf16> to vector<6x32x16xbf16>
    %28 = vector.shape_cast %27 : vector<6x32x16xbf16> to vector<192x16xbf16>
    %c0_16 = arith.constant 0 : index
    %c0_17 = arith.constant 0 : index
    %29 = vector.load %arg11[%c0_16, %c0_17] : memref<192x144xbf16, #tpu.memory_space<vmem>>, vector<192x16xbf16>
    tpu.vector_store %arg11[%c0_16, %c0_17], %28 {strides = array<i32>} : memref<192x144xbf16, #tpu.memory_space<vmem>>, vector<192x16xbf16>,
    %c0_18 = arith.constant 0 : index
    %c1 = arith.constant 1 : index
    %c0_19 = arith.constant 0 : index
    %c0_20 = arith.constant 0 : index
    %30 = vector.load %arg10[%c0_18, %c1, %c0_19, %c0_20] : memref<6x2x36x16xbf16, #tpu.memory_space<vmem>>, vector<6x1x32x16xbf16>
    %31 = vector.shape_cast %30 : vector<6x1x32x16xbf16> to vector<6x32x16xbf16>
    %32 = vector.shape_cast %31 : vector<6x32x16xbf16> to vector<192x16xbf16>
    %c0_21 = arith.constant 0 : index
    %c16 = arith.constant 16 : index
    %33 = vector.load %arg11[%c0_21, %c16] : memref<192x144xbf16, #tpu.memory_space<vmem>>, vector<192x16xbf16>
    tpu.vector_store %arg11[%c0_21, %c16], %32 {strides = array<i32>} : memref<192x144xbf16, #tpu.memory_space<vmem>>, vector<192x16xbf16>,
    %c0_22 = arith.constant 0 : index
    %c0_23 = arith.constant 0 : index
    %c1_24 = arith.constant 1 : index
    %c0_25 = arith.constant 0 : index
    %34 = vector.load %arg10[%c0_22, %c0_23, %c1_24, %c0_25] : memref<6x2x36x16xbf16, #tpu.memory_space<vmem>>, vector<6x1x32x16xbf16>
    %35 = vector.shape_cast %34 : vector<6x1x32x16xbf16> to vector<6x32x16xbf16>
    %36 = vector.shape_cast %35 : vector<6x32x16xbf16> to vector<192x16xbf16>
    %c0_26 = arith.constant 0 : index
    %c32 = arith.constant 32 : index
    %37 = vector.load %arg11[%c0_26, %c32] : memref<192x144xbf16, #tpu.memory_space<vmem>>, vector<192x16xbf16>
    tpu.vector_store %arg11[%c0_26, %c32], %36 {strides = array<i32>} : memref<192x144xbf16, #tpu.memory_space<vmem>>, vector<192x16xbf16>,
    %c0_27 = arith.constant 0 : index
    %c1_28 = arith.constant 1 : index
    %c1_29 = arith.constant 1 : index
    %c0_30 = arith.constant 0 : index
    %38 = vector.load %arg10[%c0_27, %c1_28, %c1_29, %c0_30] : memref<6x2x36x16xbf16, #tpu.memory_space<vmem>>, vector<6x1x32x16xbf16>
    %39 = vector.shape_cast %38 : vector<6x1x32x16xbf16> to vector<6x32x16xbf16>
    %40 = vector.shape_cast %39 : vector<6x32x16xbf16> to vector<192x16xbf16>
    %c0_31 = arith.constant 0 : index
    %c48 = arith.constant 48 : index
    %41 = vector.load %arg11[%c0_31, %c48] : memref<192x144xbf16, #tpu.memory_space<vmem>>, vector<192x16xbf16>
    tpu.vector_store %arg11[%c0_31, %c48], %40 {strides = array<i32>} : memref<192x144xbf16, #tpu.memory_space<vmem>>, vector<192x16xbf16>,
    %c0_32 = arith.constant 0 : index
    %c0_33 = arith.constant 0 : index
    %c2 = arith.constant 2 : index
    %c0_34 = arith.constant 0 : index
    %42 = vector.load %arg10[%c0_32, %c0_33, %c2, %c0_34] : memref<6x2x36x16xbf16, #tpu.memory_space<vmem>>, vector<6x1x32x16xbf16>
    %43 = vector.shape_cast %42 : vector<6x1x32x16xbf16> to vector<6x32x16xbf16>
    %44 = vector.shape_cast %43 : vector<6x32x16xbf16> to vector<192x16xbf16>
    %c0_35 = arith.constant 0 : index
    %c64 = arith.constant 64 : index
    %45 = vector.load %arg11[%c0_35, %c64] : memref<192x144xbf16, #tpu.memory_space<vmem>>, vector<192x16xbf16>
    tpu.vector_store %arg11[%c0_35, %c64], %44 {strides = array<i32>} : memref<192x144xbf16, #tpu.memory_space<vmem>>, vector<192x16xbf16>,
    %c0_36 = arith.constant 0 : index
    %c1_37 = arith.constant 1 : index
    %c2_38 = arith.constant 2 : index
    %c0_39 = arith.constant 0 : index
    %46 = vector.load %arg10[%c0_36, %c1_37, %c2_38, %c0_39] : memref<6x2x36x16xbf16, #tpu.memory_space<vmem>>, vector<6x1x32x16xbf16>
    %47 = vector.shape_cast %46 : vector<6x1x32x16xbf16> to vector<6x32x16xbf16>
    %48 = vector.shape_cast %47 : vector<6x32x16xbf16> to vector<192x16xbf16>
    %c0_40 = arith.constant 0 : index
    %c80 = arith.constant 80 : index
    %49 = vector.load %arg11[%c0_40, %c80] : memref<192x144xbf16, #tpu.memory_space<vmem>>, vector<192x16xbf16>
    tpu.vector_store %arg11[%c0_40, %c80], %48 {strides = array<i32>} : memref<192x144xbf16, #tpu.memory_space<vmem>>, vector<192x16xbf16>,
    %c0_41 = arith.constant 0 : index
    %c0_42 = arith.constant 0 : index
    %c3 = arith.constant 3 : index
    %c0_43 = arith.constant 0 : index
    %50 = vector.load %arg10[%c0_41, %c0_42, %c3, %c0_43] : memref<6x2x36x16xbf16, #tpu.memory_space<vmem>>, vector<6x1x32x16xbf16>
    %51 = vector.shape_cast %50 : vector<6x1x32x16xbf16> to vector<6x32x16xbf16>
    %52 = vector.shape_cast %51 : vector<6x32x16xbf16> to vector<192x16xbf16>
    %c0_44 = arith.constant 0 : index
    %c96 = arith.constant 96 : index
    %53 = vector.load %arg11[%c0_44, %c96] : memref<192x144xbf16, #tpu.memory_space<vmem>>, vector<192x16xbf16>
    tpu.vector_store %arg11[%c0_44, %c96], %52 {strides = array<i32>} : memref<192x144xbf16, #tpu.memory_space<vmem>>, vector<192x16xbf16>,
    %c0_45 = arith.constant 0 : index
    %c1_46 = arith.constant 1 : index
    %c3_47 = arith.constant 3 : index
    %c0_48 = arith.constant 0 : index
    %54 = vector.load %arg10[%c0_45, %c1_46, %c3_47, %c0_48] : memref<6x2x36x16xbf16, #tpu.memory_space<vmem>>, vector<6x1x32x16xbf16>
    %55 = vector.shape_cast %54 : vector<6x1x32x16xbf16> to vector<6x32x16xbf16>
    %56 = vector.shape_cast %55 : vector<6x32x16xbf16> to vector<192x16xbf16>
    %c0_49 = arith.constant 0 : index
    %c112 = arith.constant 112 : index
    %57 = vector.load %arg11[%c0_49, %c112] : memref<192x144xbf16, #tpu.memory_space<vmem>>, vector<192x16xbf16>
    tpu.vector_store %arg11[%c0_49, %c112], %56 {strides = array<i32>} : memref<192x144xbf16, #tpu.memory_space<vmem>>, vector<192x16xbf16>,
    %c0_50 = arith.constant 0 : index
    %c0_51 = arith.constant 0 : index
    %c4 = arith.constant 4 : index
    %c0_52 = arith.constant 0 : index
    %58 = vector.load %arg10[%c0_50, %c0_51, %c4, %c0_52] : memref<6x2x36x16xbf16, #tpu.memory_space<vmem>>, vector<6x1x32x16xbf16>
    %59 = vector.shape_cast %58 : vector<6x1x32x16xbf16> to vector<6x32x16xbf16>
    %60 = vector.shape_cast %59 : vector<6x32x16xbf16> to vector<192x16xbf16>
    %c0_53 = arith.constant 0 : index
    %c128 = arith.constant 128 : index
    %61 = vector.load %arg11[%c0_53, %c128] : memref<192x144xbf16, #tpu.memory_space<vmem>>, vector<192x16xbf16>
    tpu.vector_store %arg11[%c0_53, %c128], %60 {strides = array<i32>} : memref<192x144xbf16, #tpu.memory_space<vmem>>, vector<192x16xbf16>,
    %c0_54 = arith.constant 0 : index
    %c0_55 = arith.constant 0 : index
    %62 = vector.load %arg11[%c0_54, %c0_55] : memref<192x144xbf16, #tpu.memory_space<vmem>>, vector<192x144xbf16>
    %c0_56 = arith.constant 0 : index
    %c0_57 = arith.constant 0 : index
    %63 = vector.load %arg4[%c0_56, %c0_57] : memref<144x32xbf16, #tpu.memory_space<vmem>>, vector<144x32xbf16>
    %cst_58 = arith.constant dense<0.000000e+00> : vector<192x32xf32>
    %64 = tpu.matmul %62, %63, %cst_58 {dimension_numbers = #tpu.dot_dimension_numbers<[1], [0], [0], [1], [0, 0, 1, 1], [], []>} : vector<192x144xbf16>, vector<144x32xbf16>, vector<192x32xf32> -> vector<192x32xf32>
    %cst_59 = arith.constant dense<0.000000e+00> : vector<32xf32>
    %65 = vector.multi_reduction <add>, %64, %cst_59 [0] : vector<192x32xf32> to vector<32xf32>
    %66 = vector.shape_cast %65 : vector<32xf32> to vector<1x32xf32>
    %67 = vector.shape_cast %66 : vector<1x32xf32> to vector<1x1x32xf32>
    %c0_60 = arith.constant 0 : index
    %c0_61 = arith.constant 0 : index
    %c0_62 = arith.constant 0 : index
    %68 = vector.load %arg8[%c0_60, %c0_61, %c0_62] : memref<1x1x32xf32, #tpu.memory_space<vmem>>, vector<1x1x32xf32>
    tpu.vector_store %arg8[%c0_60, %c0_61, %c0_62], %67 {strides = array<i32>} : memref<1x1x32xf32, #tpu.memory_space<vmem>>, vector<1x1x32xf32>,
    %69 = arith.mulf %64, %64 : vector<192x32xf32>
    %cst_63 = arith.constant dense<0.000000e+00> : vector<32xf32>
    %70 = vector.multi_reduction <add>, %69, %cst_63 [0] : vector<192x32xf32> to vector<32xf32>
    %71 = vector.shape_cast %70 : vector<32xf32> to vector<1x32xf32>
    %72 = vector.shape_cast %71 : vector<1x32xf32> to vector<1x1x32xf32>
    %c0_64 = arith.constant 0 : index
    %c0_65 = arith.constant 0 : index
    %c0_66 = arith.constant 0 : index
    %73 = vector.load %arg9[%c0_64, %c0_65, %c0_66] : memref<1x1x32xf32, #tpu.memory_space<vmem>>, vector<1x1x32xf32>
    tpu.vector_store %arg9[%c0_64, %c0_65, %c0_66], %72 {strides = array<i32>} : memref<1x1x32xf32, #tpu.memory_space<vmem>>, vector<1x1x32xf32>,
    %74 = arith.truncf %64 : vector<192x32xf32> to vector<192x32xbf16>
    %75 = vector.shape_cast %74 : vector<192x32xbf16> to vector<6x32x32xbf16>
    %c0_67 = arith.constant 0 : index
    %c0_68 = arith.constant 0 : index
    %c0_69 = arith.constant 0 : index
    %76 = vector.load %arg6[%c0_67, %c0_68, %c0_69] : memref<6x32x32xbf16, #tpu.memory_space<vmem>>, vector<6x32x32xbf16>
    tpu.vector_store %arg6[%c0_67, %c0_68, %c0_69], %75 {strides = array<i32>} : memref<6x32x32xbf16, #tpu.memory_space<vmem>>, vector<6x32x32xbf16>,
    %c0_70 = arith.constant 0 : index
    %c64_71 = arith.constant 64 : index
    %77 = vector.load %arg11[%c0_70, %c64_71] : memref<192x144xbf16, #tpu.memory_space<vmem>>, vector<192x16xbf16>
    %c0_72 = arith.constant 0 : index
    %c0_73 = arith.constant 0 : index
    %78 = vector.load %arg5[%c0_72, %c0_73] : memref<16x32xbf16, #tpu.memory_space<vmem>>, vector<16x32xbf16>
    %cst_74 = arith.constant dense<0.000000e+00> : vector<192x32xf32>
    %79 = tpu.matmul %77, %78, %cst_74 {dimension_numbers = #tpu.dot_dimension_numbers<[1], [0], [0], [1], [0, 0, 1, 1], [], []>} : vector<192x16xbf16>, vector<16x32xbf16>, vector<192x32xf32> -> vector<192x32xf32>
    %80 = arith.truncf %79 : vector<192x32xf32> to vector<192x32xbf16>
    %c0_75 = arith.constant 0 : index
    %c0_76 = arith.constant 0 : index
    %81 = vector.load %arg7[%c0_75, %c0_76] : memref<192x32xbf16, #tpu.memory_space<vmem>>, vector<192x32xbf16>
    tpu.vector_store %arg7[%c0_75, %c0_76], %80 {strides = array<i32>} : memref<192x32xbf16, #tpu.memory_space<vmem>>, vector<192x32xbf16>,
    return
  }
  func.func @transform_0(%arg0: i32) -> (i32, i32, i32, i32) {
    %c0_i32 = arith.constant 0 : i32
    %c0_i32_0 = arith.constant 0 : i32
    %c0_i32_1 = arith.constant 0 : i32
    %c0_i32_2 = arith.constant 0 : i32
    return %arg0, %c0_i32, %c0_i32_0, %c0_i32_1 : i32, i32, i32, i32
  }
  func.func @transform_1(%arg0: i32) -> (i32, i32) {
    %c0_i32 = arith.constant 0 : i32
    %c0_i32_0 = arith.constant 0 : i32
    %c0_i32_1 = arith.constant 0 : i32
    return %c0_i32, %c0_i32_0 : i32, i32
  }
  func.func @transform_2(%arg0: i32) -> (i32, i32) {
    %c0_i32 = arith.constant 0 : i32
    %c0_i32_0 = arith.constant 0 : i32
    %c0_i32_1 = arith.constant 0 : i32
    return %c0_i32, %c0_i32_0 : i32, i32
  }
  func.func @transform_3(%arg0: i32) -> (i32, i32) {
    %c0_i32 = arith.constant 0 : i32
    %c0_i32_0 = arith.constant 0 : i32
    %c0_i32_1 = arith.constant 0 : i32
    return %c0_i32, %c0_i32_0 : i32, i32
  }
  func.func @transform_4(%arg0: i32) -> (i32, i32) {
    %c0_i32 = arith.constant 0 : i32
    %c0_i32_0 = arith.constant 0 : i32
    %c0_i32_1 = arith.constant 0 : i32
    return %c0_i32, %c0_i32_0 : i32, i32
  }
  func.func @transform_5(%arg0: i32) -> (i32, i32, i32) {
    %c0_i32 = arith.constant 0 : i32
    %c0_i32_0 = arith.constant 0 : i32
    %c0_i32_1 = arith.constant 0 : i32
    return %arg0, %c0_i32, %c0_i32_0 : i32, i32, i32
  }
  func.func @transform_6(%arg0: i32) -> (i32, i32) {
    %c0_i32 = arith.constant 0 : i32
    %c0_i32_0 = arith.constant 0 : i32
    return %arg0, %c0_i32 : i32, i32
  }
  func.func @transform_7(%arg0: i32) -> (i32, i32, i32) {
    %c0_i32 = arith.constant 0 : i32
    %c0_i32_0 = arith.constant 0 : i32
    %c0_i32_1 = arith.constant 0 : i32
    return %arg0, %c0_i32, %c0_i32_0 : i32, i32, i32
  }
  func.func @transform_8(%arg0: i32) -> (i32, i32, i32) {
    %c0_i32 = arith.constant 0 : i32
    %c0_i32_0 = arith.constant 0 : i32
    %c0_i32_1 = arith.constant 0 : i32
    return %arg0, %c0_i32, %c0_i32_0 : i32, i32, i32
  }
}

</mosaic_0001>

<llo_original>
// kernel: tpu_custom_call.1
$region0: #{tpu_custom_call.1}
  #allocation0 [shape = 'u32[]', space=smem, size = 0x4, offset = 0x4, fixed_abs, tag = 'smem constant byte address 0x4 - core index']
  #allocation1 [shape = 'u32[144,128]{1,0:T(1,128)}', space=vmem, size = 0x12000, scoped, tag = 'internal scratch']
  #allocation2 [shape = 'bf16[6,2,36,16]{3,2,1,0:T(8,128)(2,1)}', space=vmem, size = 0x1e000, scoped, tag = 'scratch operand']
  #allocation3 [shape = 'bf16[192,144]{1,0:T(16,128)(2,1)}', space=vmem, size = 0x18000, scoped, tag = 'scratch operand']
  %s0 = inlined_call_operand.vmem [shape: bf16[18,2,36,16], index: 0, kind: input, shape index: {}]
  %s1 = inlined_call_operand.vmem [shape: f32[1,16], index: 1, kind: input, shape index: {}]
  %s2 = inlined_call_operand.vmem [shape: f32[1,16], index: 2, kind: input, shape index: {}]
  %s3 = inlined_call_operand.vmem [shape: bf16[144,32], index: 3, kind: input, shape index: {}]
  %s4 = inlined_call_operand.vmem [shape: bf16[16,32], index: 4, kind: input, shape index: {}]
  %s5 = inlined_call_operand.hbm [shape: bf16[18,32,32], index: 5, kind: output, shape index: {0}]
  %s6 = inlined_call_operand.vmem [shape: bf16[576,32], index: 6, kind: output, shape index: {1}]
  %s7 = inlined_call_operand.hbm [shape: f32[3,1,32], index: 7, kind: output, shape index: {2}]
  %s8 = inlined_call_operand.hbm [shape: f32[3,1,32], index: 8, kind: output, shape index: {3}]
  %9 = xla_tuple %s5, %s6, %s7, %s8
  %s10 = sld [smem:[#allocation0]]
  $region77: #{tpu_custom_call.1} parent=0
    _
  %s12 = ssub.s32 1, %s10
  %s13 = scalar_select 0, %s12, %s10
  $region1: #{tpu_custom_call.1} parent=0
    #allocation4 [shape = 'u8[98304]{0}', space=vmem, size = 0x18000, scoped, tag = 'output window, operand 0']
    #allocation5 [shape = 's32[2]{0}', space=sflag, size = 0x8, scoped, tag = 'scoped memory for tpu_custom_call.1']
    #allocation6 [shape = 'u8[1024]{0}', space=vmem, size = 0x400, scoped, tag = 'output window, operand 2']
    #allocation7 [shape = 's32[2]{0}', space=sflag, size = 0x8, scoped, tag = 'scoped memory for tpu_custom_call.1']
    #allocation8 [shape = 'u8[1024]{0}', space=vmem, size = 0x400, scoped, tag = 'output window, operand 3']
    %14 = vsyncpa [#allocation5], 0
    %s15 = scalar_lea.sflag [#allocation5], 1
    %16 = vsyncpa %s15, 0
    %17 = vsyncpa [#allocation7], 0
    %s18 = scalar_lea.sflag [#allocation7], 1
    %19 = vsyncpa %s18, 0
    loop: start=0, step=1, limit=5
    $region2: #{tpu_custom_call.1} parent=1 // loop_pre_header
      _
    $region3: #{tpu_custom_call.1} parent=1 // loop_header
      %s21 = sphi 0, %s25
      %p22 = scmp.ge.s32.totalorder %s21, 5
      %s31 = sphi 0, %s33
      %s34 = sphi 0, %s31
      %s35 = sphi 0, %s34
      %s51 = sphi 0, %s35
      %s55 = sphi 0, %s55
      %s57 = sphi 0, %s55
      %s58 = sphi 0, %s57
      %s72 = sphi 0, %s58
      %s76 = sphi 0, %s76
      %s78 = sphi 0, %s76
      %s79 = sphi 0, %s78
      %s93 = sphi 0, %s79
      %s97 = sphi 0, %s97
      %s99 = sphi 0, %s97
      %s100 = sphi 0, %s99
      %s114 = sphi 0, %s100
      %s118 = sphi 0, %s118
      %s120 = sphi 0, %s118
      %s121 = sphi 0, %s120
      %s135 = sphi 0, %s121
      %s141 = sphi 0, %s143
      %s144 = sphi 0, %s141
      %s145 = sphi 0, %s144
      %s161 = sphi 0, %s145
      %s167 = sphi 0, %s169
      %s170 = sphi 0, %s167
      %s171 = sphi 0, %s170
      %s187 = sphi 0, %s171
      %s193 = sphi 0, %s195
      %s196 = sphi 0, %s193
      %s197 = sphi 0, %s196
      %s213 = sphi 0, %s197
      %s219 = sphi 0, %s221
      %s222 = sphi 0, %s219
      %s223 = sphi 0, %s222
      %s239 = sphi 0, %s223
    $region4: #{tpu_custom_call.1} parent=1 // loop_header_branch
      %24 = sbr.rel (%p22) target = $region8
    $region5: #{tpu_custom_call.1} parent=1 // loop_body
      %s26 = ssub.s32 %s21, 1
      %s27 = ssub.s32 %s21, 2
      %s28 = sadd.s32 %s21, 1
      %s29 = ssub.s32 %s21, %s28
      %p30 = scmp.eq.s32.totalorder %s29, 0
      %s32 = sadd.s32 %s31, 1
      %s33 = scalar_select %p30, %s31, %s32
      %p36 = pneg %p30
      %p37 = scmp.eq.s32.totalorder %s21, 2
      %p38 = por %p36, %p37
      %p39 = scmp.ne.s32.totalorder %s31, %s34
      %p40 = scmp.eq.s32.totalorder %s21, 0
      %p41 = por %p39, %p40
      %p42 = scmp.ne.s32.totalorder %s31, %s34
      %p43 = scmp.eq.s32.totalorder %s26, 2
      %p44 = por %p42, %p43
      %p45 = scmp.ne.s32.totalorder %s34, %s35
      %p46 = scmp.eq.s32.totalorder %s26, 0
      %p47 = por %p45, %p46
      %p48 = scmp.ne.s32.totalorder %s34, %s35
      %p49 = scmp.eq.s32.totalorder %s27, 2
      %p50 = por %p48, %p49
      %p52 = scmp.ne.s32.totalorder %s35, %s51
      %p53 = scmp.eq.s32.totalorder %s27, 0
      %p54 = por %p52, %p53
      %s56 = sadd.s32 %s55, 1
      %p59 = scmp.eq.s32.totalorder %s21, 2
      %p60 = scmp.ne.s32.totalorder %s55, %s57
      %p61 = scmp.eq.s32.totalorder %s21, 0
      %p62 = por %p60, %p61
      %p63 = scmp.ne.s32.totalorder %s55, %s57
      %p64 = scmp.eq.s32.totalorder %s26, 2
      %p65 = por %p63, %p64
      %p66 = scmp.ne.s32.totalorder %s57, %s58
      %p67 = scmp.eq.s32.totalorder %s26, 0
      %p68 = por %p66, %p67
      %p69 = scmp.ne.s32.totalorder %s57, %s58
      %p70 = scmp.eq.s32.totalorder %s27, 2
      %p71 = por %p69, %p70
      %p73 = scmp.ne.s32.totalorder %s58, %s72
      %p74 = scmp.eq.s32.totalorder %s27, 0
      %p75 = por %p73, %p74
      %s77 = sadd.s32 %s76, 1
      %p80 = scmp.eq.s32.totalorder %s21, 2
      %p81 = scmp.ne.s32.totalorder %s76, %s78
      %p82 = scmp.eq.s32.totalorder %s21, 0
      %p83 = por %p81, %p82
      %p84 = scmp.ne.s32.totalorder %s76, %s78
      %p85 = scmp.eq.s32.totalorder %s26, 2
      %p86 = por %p84, %p85
      %p87 = scmp.ne.s32.totalorder %s78, %s79
      %p88 = scmp.eq.s32.totalorder %s26, 0
      %p89 = por %p87, %p88
      %p90 = scmp.ne.s32.totalorder %s78, %s79
      %p91 = scmp.eq.s32.totalorder %s27, 2
      %p92 = por %p90, %p91
      %p94 = scmp.ne.s32.totalorder %s79, %s93
      %p95 = scmp.eq.s32.totalorder %s27, 0
      %p96 = por %p94, %p95
      %s98 = sadd.s32 %s97, 1
      %p101 = scmp.eq.s32.totalorder %s21, 2
      %p102 = scmp.ne.s32.totalorder %s97, %s99
      %p103 = scmp.eq.s32.totalorder %s21, 0
      %p104 = por %p102, %p103
      %p105 = scmp.ne.s32.totalorder %s97, %s99
      %p106 = scmp.eq.s32.totalorder %s26, 2
      %p107 = por %p105, %p106
      %p108 = scmp.ne.s32.totalorder %s99, %s100
      %p109 = scmp.eq.s32.totalorder %s26, 0
      %p110 = por %p108, %p109
      %p111 = scmp.ne.s32.totalorder %s99, %s100
      %p112 = scmp.eq.s32.totalorder %s27, 2
      %p113 = por %p111, %p112
      %p115 = scmp.ne.s32.totalorder %s100, %s114
      %p116 = scmp.eq.s32.totalorder %s27, 0
      %p117 = por %p115, %p116
      %s119 = sadd.s32 %s118, 1
      %p122 = scmp.eq.s32.totalorder %s21, 2
      %p123 = scmp.ne.s32.totalorder %s118, %s120
      %p124 = scmp.eq.s32.totalorder %s21, 0
      %p125 = por %p123, %p124
      %p126 = scmp.ne.s32.totalorder %s118, %s120
      %p127 = scmp.eq.s32.totalorder %s26, 2
      %p128 = por %p126, %p127
      %p129 = scmp.ne.s32.totalorder %s120, %s121
      %p130 = scmp.eq.s32.totalorder %s26, 0
      %p131 = por %p129, %p130
      %p132 = scmp.ne.s32.totalorder %s120, %s121
      %p133 = scmp.eq.s32.totalorder %s27, 2
      %p134 = por %p132, %p133
      %p136 = scmp.ne.s32.totalorder %s121, %s135
      %p137 = scmp.eq.s32.totalorder %s27, 0
      %p138 = por %p136, %p137
      %s139 = ssub.s32 %s21, %s28
      %p140 = scmp.eq.s32.totalorder %s139, 0
      %s142 = sadd.s32 %s141, 1
      %s143 = scalar_select %p140, %s141, %s142
      %p146 = pneg %p140
      %p147 = scmp.eq.s32.totalorder %s21, 2
      %p148 = por %p146, %p147
      %p149 = scmp.ne.s32.totalorder %s141, %s144
      %p150 = scmp.eq.s32.totalorder %s21, 0
      %p151 = por %p149, %p150
      %p152 = scmp.ne.s32.totalorder %s141, %s144
      %p153 = scmp.eq.s32.totalorder %s26, 2
      %p154 = por %p152, %p153
      %p155 = scmp.ne.s32.totalorder %s144, %s145
      %p156 = scmp.eq.s32.totalorder %s26, 0
      %p157 = por %p155, %p156
      %p158 = scmp.ne.s32.totalorder %s144, %s145
      %p159 = scmp.eq.s32.totalorder %s27, 2
      %p160 = por %p158, %p159
      %p162 = scmp.ne.s32.totalorder %s145, %s161
      %p163 = scmp.eq.s32.totalorder %s27, 0
      %p164 = por %p162, %p163
      %s165 = ssub.s32 %s21, %s28
      %p166 = scmp.eq.s32.totalorder %s165, 0
      %s168 = sadd.s32 %s167, 1
      %s169 = scalar_select %p166, %s167, %s168
      %p172 = pneg %p166
      %p173 = scmp.eq.s32.totalorder %s21, 2
      %p174 = por %p172, %p173
      %p175 = scmp.ne.s32.totalorder %s167, %s170
      %p176 = scmp.eq.s32.totalorder %s21, 0
      %p177 = por %p175, %p176
      %p178 = scmp.ne.s32.totalorder %s167, %s170
      %p179 = scmp.eq.s32.totalorder %s26, 2
      %p180 = por %p178, %p179
      %p181 = scmp.ne.s32.totalorder %s170, %s171
      %p182 = scmp.eq.s32.totalorder %s26, 0
      %p183 = por %p181, %p182
      %p184 = scmp.ne.s32.totalorder %s170, %s171
      %p185 = scmp.eq.s32.totalorder %s27, 2
      %p186 = por %p184, %p185
      %p188 = scmp.ne.s32.totalorder %s171, %s187
      %p189 = scmp.eq.s32.totalorder %s27, 0
      %p190 = por %p188, %p189
      %s191 = ssub.s32 %s21, %s28
      %p192 = scmp.eq.s32.totalorder %s191, 0
      %s194 = sadd.s32 %s193, 1
      %s195 = scalar_select %p192, %s193, %s194
      %p198 = pneg %p192
      %p199 = scmp.eq.s32.totalorder %s21, 2
      %p200 = por %p198, %p199
      %p201 = scmp.ne.s32.totalorder %s193, %s196
      %p202 = scmp.eq.s32.totalorder %s21, 0
      %p203 = por %p201, %p202
      %p204 = scmp.ne.s32.totalorder %s193, %s196
      %p205 = scmp.eq.s32.totalorder %s26, 2
      %p206 = por %p204, %p205
      %p207 = scmp.ne.s32.totalorder %s196, %s197
      %p208 = scmp.eq.s32.totalorder %s26, 0
      %p209 = por %p207, %p208
      %p210 = scmp.ne.s32.totalorder %s196, %s197
      %p211 = scmp.eq.s32.totalorder %s27, 2
      %p212 = por %p210, %p211
      %p214 = scmp.ne.s32.totalorder %s197, %s213
      %p215 = scmp.eq.s32.totalorder %s27, 0
      %p216 = por %p214, %p215
      %s217 = ssub.s32 %s21, %s28
      %p218 = scmp.eq.s32.totalorder %s217, 0
      %s220 = sadd.s32 %s219, 1
      %s221 = scalar_select %p218, %s219, %s220
      %p224 = pneg %p218
      %p225 = scmp.eq.s32.totalorder %s21, 2
      %p226 = por %p224, %p225
      %p227 = scmp.ne.s32.totalorder %s219, %s222
      %p228 = scmp.eq.s32.totalorder %s21, 0
      %p229 = por %p227, %p228
      %p230 = scmp.ne.s32.totalorder %s219, %s222
      %p231 = scmp.eq.s32.totalorder %s26, 2
      %p232 = por %p230, %p231
      %p233 = scmp.ne.s32.totalorder %s222, %s223
      %p234 = scmp.eq.s32.totalorder %s26, 0
      %p235 = por %p233, %p234
      %p236 = scmp.ne.s32.totalorder %s222, %s223
      %p237 = scmp.eq.s32.totalorder %s27, 2
      %p238 = por %p236, %p237
      %p240 = scmp.ne.s32.totalorder %s223, %s239
      %p241 = scmp.eq.s32.totalorder %s27, 0
      %p242 = por %p240, %p241
      %p243 = scmp.le.s32.totalorder 1, %s21
      %p244 = scmp.lt.s32.totalorder %s21, 4
      %p245 = pnand %p243, %p244
      %p246 = pneg %p245
      // Predicated region
      $region9: #{tpu_custom_call.1} parent=5 // pred_check
        _
      $region10: #{tpu_custom_call.1} parent=5 // pred_check_branch
        %248 = sbr.rel (%p245) target = $region12
      $region11: #{tpu_custom_call.1} parent=5 // pred_region
        %s249 = ssub.s32 %s21, 1
        // Predicated region
        $region13: #{tpu_custom_call.1} parent=11 // pred_check
          %p250 = pneg %p68
        $region14: #{tpu_custom_call.1} parent=11 // pred_check_branch
          %252 = sbr.rel (%p250) target = $region16
        $region15: #{tpu_custom_call.1} parent=11 // pred_region
          _
        $region16: #{tpu_custom_call.1} parent=11 // pred_fallthru
          _
        // Predicated region
        $region17: #{tpu_custom_call.1} parent=11 // pred_check
          %p253 = pneg %p89
        $region18: #{tpu_custom_call.1} parent=11 // pred_check_branch
          %255 = sbr.rel (%p253) target = $region20
        $region19: #{tpu_custom_call.1} parent=11 // pred_region
          _
        $region20: #{tpu_custom_call.1} parent=11 // pred_fallthru
          _
        // Predicated region
        $region21: #{tpu_custom_call.1} parent=11 // pred_check
          %p256 = pneg %p110
        $region22: #{tpu_custom_call.1} parent=11 // pred_check_branch
          %258 = sbr.rel (%p256) target = $region24
        $region23: #{tpu_custom_call.1} parent=11 // pred_region
          _
        $region24: #{tpu_custom_call.1} parent=11 // pred_fallthru
          _
        // Predicated region
        $region25: #{tpu_custom_call.1} parent=11 // pred_check
          %p259 = pneg %p131
        $region26: #{tpu_custom_call.1} parent=11 // pred_check_branch
          %261 = sbr.rel (%p259) target = $region28
        $region27: #{tpu_custom_call.1} parent=11 // pred_region
          _
        $region28: #{tpu_custom_call.1} parent=11 // pred_fallthru
          _
      $region12: #{tpu_custom_call.1} parent=5 // pred_fallthru
        _
      %p262 = scmp.lt.s32.totalorder %s21, 3
      // Predicated region
      $region29: #{tpu_custom_call.1} parent=5 // pred_check
        %p263 = pneg %p262
      $region30: #{tpu_custom_call.1} parent=5 // pred_check_branch
        %265 = sbr.rel (%p263) target = $region32
      $region31: #{tpu_custom_call.1} parent=5 // pred_region
        // Predicated region
        $region33: #{tpu_custom_call.1} parent=31 // pred_check
          %p266 = pneg %p41
        $region34: #{tpu_custom_call.1} parent=31 // pred_check_branch
          %268 = sbr.rel (%p266) target = $region36
        $region35: #{tpu_custom_call.1} parent=31 // pred_region
          %s269 = smul.u32 6, %s21
          %p270 = scmp.lt.s32.totalorder %s269, 17
          %s271 = scalar_select %p270, %s269, 17
          %s272 = smul.addr %s271, 10
          %s273 = smul.addr %s272, 4
          %s274 = scalar_lea.vmem %s0, %s273
          %s275 = smul.u32 6, %s21
        $region36: #{tpu_custom_call.1} parent=31 // pred_fallthru
          _
      $region32: #{tpu_custom_call.1} parent=5 // pred_fallthru
        _
      %p276 = scmp.le.s32.totalorder 1, %s21
      %p277 = scmp.lt.s32.totalorder %s21, 4
      %p278 = pnand %p276, %p277
      %p279 = pneg %p278
      // Predicated region
      $region37: #{tpu_custom_call.1} parent=5 // pred_check
        _
      $region38: #{tpu_custom_call.1} parent=5 // pred_check_branch
        %281 = sbr.rel (%p278) target = $region40
      $region39: #{tpu_custom_call.1} parent=5 // pred_region
        %s282 = ssub.s32 %s21, 1
        %s283 = smul.u32 6, %s26
        %p284 = scmp.lt.s32.totalorder %s283, 17
        %s285 = scalar_select %p284, %s283, 17
        %s286 = smul.addr %s285, 10
        %s287 = smul.addr %s286, 4
        %s288 = scalar_lea.vmem %s0, %s287
        %p289 = pneg %p47
        %p290 = pneg %p44
        %p291 = pneg %p68
        %p292 = pneg %p65
        %p293 = pneg %p89
        %p294 = pneg %p86
        %p295 = pneg %p110
        %p296 = pneg %p107
        %p297 = pneg %p131
        %p298 = pneg %p128
        %p299 = pneg %p157
        %p300 = pneg %p154
        %s301 = sand.u32 %s144, 1
        %s302 = scalar_lea.sflag [#allocation5], %s301
        %s303 = sand.u32 %s144, 1
        %s304 = smul.addr %s303, 96
        %s305 = scalar_lea.vmem [#allocation4], %s304
        %p306 = pneg %p183
        %p307 = pneg %p180
        %s308 = smul.u32 24, %s26
        %p309 = scmp.lt.s32.totalorder %s308, 71
        %s310 = scalar_select %p309, %s308, 71
        %s311 = smul.addr %s310, 4
        %s312 = scalar_lea.vmem %s6, %s311
        %p313 = pneg %p209
        %p314 = pneg %p206
        %s315 = sand.u32 %s26, 1
        %s316 = scalar_lea.sflag [#allocation7], %s315
        %s317 = sand.u32 %s196, 1
        %s318 = scalar_lea.vmem [#allocation6], %s317
        %p319 = pneg %p235
        %p320 = pneg %p232
        %s321 = sand.u32 %s26, 1
        %s322 = scalar_lea.sflag [#allocation7], %s321
        %s323 = sand.u32 %s222, 1
        %s324 = scalar_lea.vmem [#allocation8], %s323
        %s325 = smul.u32 6, %s26
        %p326 = scmp.lt.s32.totalorder %s325, 17
        %s327 = scalar_select %p326, %s325, 17
        %s328 = smul.addr %s327, 10
        %s329 = smul.addr %s328, 4
        %s330 = scalar_lea.vmem %s0, %s329
        %s331 = smul.u32 6, %s26
        %s332 = smul.u32 6, %s26
        %s333 = smul.u32 24, %s26
        %p334 = scmp.lt.s32.totalorder %s333, 71
        %s335 = scalar_select %p334, %s333, 71
        %s336 = smul.addr %s335, 4
        %s337 = scalar_lea.vmem %s6, %s336
        %s338 = smul.u32 24, %s26
        %v340 = vld [vmem:[%s330] sm:$0xf]
        %v341 = vld [vmem:[%s330 + $0x4] sm:$0xf]
        %v342 = vld [vmem:[%s330 + $0x8] sm:$0xf]
        %v343 = vld [vmem:[%s330 + $0xc] sm:$0xf]
        %v344 = vld [vmem:[%s330 + $0x10] sm:$0x3]
        %v345 = vld [vmem:[%s330 + $0x14] sm:$0xf]
        %v346 = vld [vmem:[%s330 + $0x18] sm:$0xf]
        %v347 = vld [vmem:[%s330 + $0x1c] sm:$0xf]
        %v348 = vld [vmem:[%s330 + $0x20] sm:$0xf]
        %v349 = vld [vmem:[%s330 + $0x24] sm:$0x3]
        %v350 = vld [vmem:[%s330 + $0x28] sm:$0xf]
        %v351 = vld [vmem:[%s330 + $0x2c] sm:$0xf]
        %v352 = vld [vmem:[%s330 + $0x30] sm:$0xf]
        %v353 = vld [vmem:[%s330 + $0x34] sm:$0xf]
        %v354 = vld [vmem:[%s330 + $0x38] sm:$0x3]
        %v355 = vld [vmem:[%s330 + $0x3c] sm:$0xf]
        %v356 = vld [vmem:[%s330 + $0x40] sm:$0xf]
        %v357 = vld [vmem:[%s330 + $0x44] sm:$0xf]
        %v358 = vld [vmem:[%s330 + $0x48] sm:$0xf]
        %v359 = vld [vmem:[%s330 + $0x4c] sm:$0x3]
        %v360 = vld [vmem:[%s330 + $0x50] sm:$0xf]
        %v361 = vld [vmem:[%s330 + $0x54] sm:$0xf]
        %v362 = vld [vmem:[%s330 + $0x58] sm:$0xf]
        %v363 = vld [vmem:[%s330 + $0x5c] sm:$0xf]
        %v364 = vld [vmem:[%s330 + $0x60] sm:$0x3]
        %v365 = vld [vmem:[%s330 + $0x64] sm:$0xf]
        %v366 = vld [vmem:[%s330 + $0x68] sm:$0xf]
        %v367 = vld [vmem:[%s330 + $0x6c] sm:$0xf]
        %v368 = vld [vmem:[%s330 + $0x70] sm:$0xf]
        %v369 = vld [vmem:[%s330 + $0x74] sm:$0x3]
        %v370 = vld [vmem:[%s330 + $0x78] sm:$0xf]
        %v371 = vld [vmem:[%s330 + $0x7c] sm:$0xf]
        %v372 = vld [vmem:[%s330 + $0x80] sm:$0xf]
        %v373 = vld [vmem:[%s330 + $0x84] sm:$0xf]
        %v374 = vld [vmem:[%s330 + $0x88] sm:$0x3]
        %v375 = vld [vmem:[%s330 + $0x8c] sm:$0xf]
        %v376 = vld [vmem:[%s330 + $0x90] sm:$0xf]
        %v377 = vld [vmem:[%s330 + $0x94] sm:$0xf]
        %v378 = vld [vmem:[%s330 + $0x98] sm:$0xf]
        %v379 = vld [vmem:[%s330 + $0x9c] sm:$0x3]
        %v380 = vld [vmem:[%s330 + $0xa0] sm:$0xf]
        %v381 = vld [vmem:[%s330 + $0xa4] sm:$0xf]
        %v382 = vld [vmem:[%s330 + $0xa8] sm:$0xf]
        %v383 = vld [vmem:[%s330 + $0xac] sm:$0xf]
        %v384 = vld [vmem:[%s330 + $0xb0] sm:$0x3]
        %v385 = vld [vmem:[%s330 + $0xb4] sm:$0xf]
        %v386 = vld [vmem:[%s330 + $0xb8] sm:$0xf]
        %v387 = vld [vmem:[%s330 + $0xbc] sm:$0xf]
        %v388 = vld [vmem:[%s330 + $0xc0] sm:$0xf]
        %v389 = vld [vmem:[%s330 + $0xc4] sm:$0x3]
        %v390 = vld [vmem:[%s330 + $0xc8] sm:$0xf]
        %v391 = vld [vmem:[%s330 + $0xcc] sm:$0xf]
        %v392 = vld [vmem:[%s330 + $0xd0] sm:$0xf]
        %v393 = vld [vmem:[%s330 + $0xd4] sm:$0xf]
        %v394 = vld [vmem:[%s330 + $0xd8] sm:$0x3]
        %v395 = vld [vmem:[%s330 + $0xdc] sm:$0xf]
        %v396 = vld [vmem:[%s330 + $0xe0] sm:$0xf]
        %v397 = vld [vmem:[%s330 + $0xe4] sm:$0xf]
        %v398 = vld [vmem:[%s330 + $0xe8] sm:$0xf]
        %v399 = vld [vmem:[%s330 + $0xec] sm:$0x3]
        %v400 = vunpack.c.l.bf16 %v340
        %v401 = vunpack.c.l.bf16 %v341
        %v402 = vunpack.c.l.bf16 %v342
        %v403 = vunpack.c.l.bf16 %v343
        %v404 = vunpack.c.l.bf16 %v344
        %v405 = vunpack.c.l.bf16 %v345
        %v406 = vunpack.c.l.bf16 %v346
        %v407 = vunpack.c.l.bf16 %v347
        %v408 = vunpack.c.l.bf16 %v348
        %v409 = vunpack.c.l.bf16 %v349
        %v410 = vunpack.c.l.bf16 %v350
        %v411 = vunpack.c.l.bf16 %v351
        %v412 = vunpack.c.l.bf16 %v352
        %v413 = vunpack.c.l.bf16 %v353
        %v414 = vunpack.c.l.bf16 %v354
        %v415 = vunpack.c.l.bf16 %v355
        %v416 = vunpack.c.l.bf16 %v356
        %v417 = vunpack.c.l.bf16 %v357
        %v418 = vunpack.c.l.bf16 %v358
        %v419 = vunpack.c.l.bf16 %v359
        %v420 = vunpack.c.l.bf16 %v360
        %v421 = vunpack.c.l.bf16 %v361
        %v422 = vunpack.c.l.bf16 %v362
        %v423 = vunpack.c.l.bf16 %v363
        %v424 = vunpack.c.l.bf16 %v364
        %v425 = vunpack.c.l.bf16 %v365
        %v426 = vunpack.c.l.bf16 %v366
        %v427 = vunpack.c.l.bf16 %v367
        %v428 = vunpack.c.l.bf16 %v368
        %v429 = vunpack.c.l.bf16 %v369
        %v430 = vunpack.c.l.bf16 %v370
        %v431 = vunpack.c.l.bf16 %v371
        %v432 = vunpack.c.l.bf16 %v372
        %v433 = vunpack.c.l.bf16 %v373
        %v434 = vunpack.c.l.bf16 %v374
        %v435 = vunpack.c.l.bf16 %v375
        %v436 = vunpack.c.l.bf16 %v376
        %v437 = vunpack.c.l.bf16 %v377
        %v438 = vunpack.c.l.bf16 %v378
        %v439 = vunpack.c.l.bf16 %v379
        %v440 = vunpack.c.l.bf16 %v380
        %v441 = vunpack.c.l.bf16 %v381
        %v442 = vunpack.c.l.bf16 %v382
        %v443 = vunpack.c.l.bf16 %v383
        %v444 = vunpack.c.l.bf16 %v384
        %v445 = vunpack.c.l.bf16 %v385
        %v446 = vunpack.c.l.bf16 %v386
        %v447 = vunpack.c.l.bf16 %v387
        %v448 = vunpack.c.l.bf16 %v388
        %v449 = vunpack.c.l.bf16 %v389
        %v450 = vunpack.c.l.bf16 %v390
        %v451 = vunpack.c.l.bf16 %v391
        %v452 = vunpack.c.l.bf16 %v392
        %v453 = vunpack.c.l.bf16 %v393
        %v454 = vunpack.c.l.bf16 %v394
        %v455 = vunpack.c.l.bf16 %v395
        %v456 = vunpack.c.l.bf16 %v396
        %v457 = vunpack.c.l.bf16 %v397
        %v458 = vunpack.c.l.bf16 %v398
        %v459 = vunpack.c.l.bf16 %v399
        %v460 = vld [vmem:[%s1] sm:$0x1]
        %v461 = vld [vmem:[%s2] sm:$0x1]
        %v463 = vlaneseq
        %v464 = vshrl.u32 %v463, 7
        %v465 = vsub.s32 0, %v464
        %v466 = vrot.slane %v460, %v465
        %v468 = vmul.f32 %v400, %v466
        %v469 = vmul.f32 %v401, %v466
        %v470 = vmul.f32 %v402, %v466
        %v471 = vmul.f32 %v403, %v466
        %v472 = vmul.f32 %v404, %v466
        %v473 = vmul.f32 %v405, %v466
        %v474 = vmul.f32 %v406, %v466
        %v475 = vmul.f32 %v407, %v466
        %v476 = vmul.f32 %v408, %v466
        %v477 = vmul.f32 %v409, %v466
        %v478 = vmul.f32 %v410, %v466
        %v479 = vmul.f32 %v411, %v466
        %v480 = vmul.f32 %v412, %v466
        %v481 = vmul.f32 %v413, %v466
        %v482 = vmul.f32 %v414, %v466
        %v483 = vmul.f32 %v415, %v466
        %v484 = vmul.f32 %v416, %v466
        %v485 = vmul.f32 %v417, %v466
        %v486 = vmul.f32 %v418, %v466
        %v487 = vmul.f32 %v419, %v466
        %v488 = vmul.f32 %v420, %v466
        %v489 = vmul.f32 %v421, %v466
        %v490 = vmul.f32 %v422, %v466
        %v491 = vmul.f32 %v423, %v466
        %v492 = vmul.f32 %v424, %v466
        %v493 = vmul.f32 %v425, %v466
        %v494 = vmul.f32 %v426, %v466
        %v495 = vmul.f32 %v427, %v466
        %v496 = vmul.f32 %v428, %v466
        %v497 = vmul.f32 %v429, %v466
        %v498 = vmul.f32 %v430, %v466
        %v499 = vmul.f32 %v431, %v466
        %v500 = vmul.f32 %v432, %v466
        %v501 = vmul.f32 %v433, %v466
        %v502 = vmul.f32 %v434, %v466
        %v503 = vmul.f32 %v435, %v466
        %v504 = vmul.f32 %v436, %v466
        %v505 = vmul.f32 %v437, %v466
        %v506 = vmul.f32 %v438, %v466
        %v507 = vmul.f32 %v439, %v466
        %v508 = vmul.f32 %v440, %v466
        %v509 = vmul.f32 %v441, %v466
        %v510 = vmul.f32 %v442, %v466
        %v511 = vmul.f32 %v443, %v466
        %v512 = vmul.f32 %v444, %v466
        %v513 = vmul.f32 %v445, %v466
        %v514 = vmul.f32 %v446, %v466
        %v515 = vmul.f32 %v447, %v466
        %v516 = vmul.f32 %v448, %v466
        %v517 = vmul.f32 %v449, %v466
        %v518 = vmul.f32 %v450, %v466
        %v519 = vmul.f32 %v451, %v466
        %v520 = vmul.f32 %v452, %v466
        %v521 = vmul.f32 %v453, %v466
        %v522 = vmul.f32 %v454, %v466
        %v523 = vmul.f32 %v455, %v466
        %v524 = vmul.f32 %v456, %v466
        %v525 = vmul.f32 %v457, %v466
        %v526 = vmul.f32 %v458, %v466
        %v527 = vmul.f32 %v459, %v466
        %v529 = vlaneseq
        %v530 = vshrl.u32 %v529, 7
        %v531 = vsub.s32 0, %v530
        %v532 = vrot.slane %v461, %v531
        %v534 = vadd.f32 %v468, %v532
        %v535 = vadd.f32 %v469, %v532
        %v536 = vadd.f32 %v470, %v532
        %v537 = vadd.f32 %v471, %v532
        %v538 = vadd.f32 %v472, %v532
        %v539 = vadd.f32 %v473, %v532
        %v540 = vadd.f32 %v474, %v532
        %v541 = vadd.f32 %v475, %v532
        %v542 = vadd.f32 %v476, %v532
        %v543 = vadd.f32 %v477, %v532
        %v544 = vadd.f32 %v478, %v532
        %v545 = vadd.f32 %v479, %v532
        %v546 = vadd.f32 %v480, %v532
        %v547 = vadd.f32 %v481, %v532
        %v548 = vadd.f32 %v482, %v532
        %v549 = vadd.f32 %v483, %v532
        %v550 = vadd.f32 %v484, %v532
        %v551 = vadd.f32 %v485, %v532
        %v552 = vadd.f32 %v486, %v532
        %v553 = vadd.f32 %v487, %v532
        %v554 = vadd.f32 %v488, %v532
        %v555 = vadd.f32 %v489, %v532
        %v556 = vadd.f32 %v490, %v532
        %v557 = vadd.f32 %v491, %v532
        %v558 = vadd.f32 %v492, %v532
        %v559 = vadd.f32 %v493, %v532
        %v560 = vadd.f32 %v494, %v532
        %v561 = vadd.f32 %v495, %v532
        %v562 = vadd.f32 %v496, %v532
        %v563 = vadd.f32 %v497, %v532
        %v564 = vadd.f32 %v498, %v532
        %v565 = vadd.f32 %v499, %v532
        %v566 = vadd.f32 %v500, %v532
        %v567 = vadd.f32 %v501, %v532
        %v568 = vadd.f32 %v502, %v532
        %v569 = vadd.f32 %v503, %v532
        %v570 = vadd.f32 %v504, %v532
        %v571 = vadd.f32 %v505, %v532
        %v572 = vadd.f32 %v506, %v532
        %v573 = vadd.f32 %v507, %v532
        %v574 = vadd.f32 %v508, %v532
        %v575 = vadd.f32 %v509, %v532
        %v576 = vadd.f32 %v510, %v532
        %v577 = vadd.f32 %v511, %v532
        %v578 = vadd.f32 %v512, %v532
        %v579 = vadd.f32 %v513, %v532
        %v580 = vadd.f32 %v514, %v532
        %v581 = vadd.f32 %v515, %v532
        %v582 = vadd.f32 %v516, %v532
        %v583 = vadd.f32 %v517, %v532
        %v584 = vadd.f32 %v518, %v532
        %v585 = vadd.f32 %v519, %v532
        %v586 = vadd.f32 %v520, %v532
        %v587 = vadd.f32 %v521, %v532
        %v588 = vadd.f32 %v522, %v532
        %v589 = vadd.f32 %v523, %v532
        %v590 = vadd.f32 %v524, %v532
        %v591 = vadd.f32 %v525, %v532
        %v592 = vadd.f32 %v526, %v532
        %v593 = vadd.f32 %v527, %v532
        %v594 = vmax.f32 %v534, 0.0
        %v595 = vmax.f32 %v535, 0.0
        %v596 = vmax.f32 %v536, 0.0
        %v597 = vmax.f32 %v537, 0.0
        %v598 = vmax.f32 %v538, 0.0
        %v599 = vmax.f32 %v539, 0.0
        %v600 = vmax.f32 %v540, 0.0
        %v601 = vmax.f32 %v541, 0.0
        %v602 = vmax.f32 %v542, 0.0
        %v603 = vmax.f32 %v543, 0.0
        %v604 = vmax.f32 %v544, 0.0
        %v605 = vmax.f32 %v545, 0.0
        %v606 = vmax.f32 %v546, 0.0
        %v607 = vmax.f32 %v547, 0.0
        %v608 = vmax.f32 %v548, 0.0
        %v609 = vmax.f32 %v549, 0.0
        %v610 = vmax.f32 %v550, 0.0
        %v611 = vmax.f32 %v551, 0.0
        %v612 = vmax.f32 %v552, 0.0
        %v613 = vmax.f32 %v553, 0.0
        %v614 = vmax.f32 %v554, 0.0
        %v615 = vmax.f32 %v555, 0.0
        %v616 = vmax.f32 %v556, 0.0
        %v617 = vmax.f32 %v557, 0.0
        %v618 = vmax.f32 %v558, 0.0
        %v619 = vmax.f32 %v559, 0.0
        %v620 = vmax.f32 %v560, 0.0
        %v621 = vmax.f32 %v561, 0.0
        %v622 = vmax.f32 %v562, 0.0
        %v623 = vmax.f32 %v563, 0.0
        %v624 = vmax.f32 %v564, 0.0
        %v625 = vmax.f32 %v565, 0.0
        %v626 = vmax.f32 %v566, 0.0
        %v627 = vmax.f32 %v567, 0.0
        %v628 = vmax.f32 %v568, 0.0
        %v629 = vmax.f32 %v569, 0.0
        %v630 = vmax.f32 %v570, 0.0
        %v631 = vmax.f32 %v571, 0.0
        %v632 = vmax.f32 %v572, 0.0
        %v633 = vmax.f32 %v573, 0.0
        %v634 = vmax.f32 %v574, 0.0
        %v635 = vmax.f32 %v575, 0.0
        %v636 = vmax.f32 %v576, 0.0
        %v637 = vmax.f32 %v577, 0.0
        %v638 = vmax.f32 %v578, 0.0
        %v639 = vmax.f32 %v579, 0.0
        %v640 = vmax.f32 %v580, 0.0
        %v641 = vmax.f32 %v581, 0.0
        %v642 = vmax.f32 %v582, 0.0
        %v643 = vmax.f32 %v583, 0.0
        %v644 = vmax.f32 %v584, 0.0
        %v645 = vmax.f32 %v585, 0.0
        %v646 = vmax.f32 %v586, 0.0
        %v647 = vmax.f32 %v587, 0.0
        %v648 = vmax.f32 %v588, 0.0
        %v649 = vmax.f32 %v589, 0.0
        %v650 = vmax.f32 %v590, 0.0
        %v651 = vmax.f32 %v591, 0.0
        %v652 = vmax.f32 %v592, 0.0
        %v653 = vmax.f32 %v593, 0.0
        %v654 = vlaneseq
        %v655 = vshrl.u32 %v654, 7
        %v656 = vadd.s32 %v655, 8
        %v657 = vadd.s32 %v655, 16
        %v658 = vadd.s32 %v655, 24
        %v659 = vadd.s32 %v655, 32
        %v660 = vmul.u32 %v655, 2
        %v661 = vmul.u32 %v656, 2
        %v662 = vmul.u32 %v657, 2
        %v663 = vmul.u32 %v658, 2
        %v664 = vmul.u32 %v659, 2
        %v665 = vadd.s32 %v660, 1
        %v666 = vadd.s32 %v661, 1
        %v667 = vadd.s32 %v662, 1
        %v668 = vadd.s32 %v663, 1
        %v669 = vadd.s32 %v664, 1
        %vm670 = vcmp.ge.s32.totalorder %v660, 4
        %vm671 = vcmp.ge.s32.totalorder %v661, 4
        %vm672 = vcmp.ge.s32.totalorder %v662, 4
        %vm673 = vcmp.ge.s32.totalorder %v663, 4
        %vm674 = vcmp.ge.s32.totalorder %v664, 4
        %vm675 = vcmp.ge.s32.totalorder %v665, 4
        %vm676 = vcmp.ge.s32.totalorder %v666, 4
        %vm677 = vcmp.ge.s32.totalorder %v667, 4
        %vm678 = vcmp.ge.s32.totalorder %v668, 4
        %vm679 = vcmp.ge.s32.totalorder %v669, 4
        %vm680 = vcmp.lt.s32.totalorder %v660, 68
        %vm681 = vcmp.lt.s32.totalorder %v661, 68
        %vm682 = vcmp.lt.s32.totalorder %v662, 68
        %vm683 = vcmp.lt.s32.totalorder %v663, 68
        %vm684 = vcmp.lt.s32.totalorder %v664, 68
        %vm685 = vcmp.lt.s32.totalorder %v665, 68
        %vm686 = vcmp.lt.s32.totalorder %v666, 68
        %vm687 = vcmp.lt.s32.totalorder %v667, 68
        %vm688 = vcmp.lt.s32.totalorder %v668, 68
        %vm689 = vcmp.lt.s32.totalorder %v669, 68
        %vm690 = vmand %vm670, %vm680
        %vm691 = vmand %vm671, %vm681
        %vm692 = vmand %vm672, %vm682
        %vm693 = vmand %vm673, %vm683
        %vm694 = vmand %vm674, %vm684
        %vm695 = vmand %vm675, %vm685
        %vm696 = vmand %vm676, %vm686
        %vm697 = vmand %vm677, %vm687
        %vm698 = vmand %vm678, %vm688
        %vm699 = vmand %vm679, %vm689
        %v700 = vsel %vm690, %v594, 0.0
        %v701 = vsel %vm691, %v595, 0.0
        %v702 = vsel %vm692, %v596, 0.0
        %v703 = vsel %vm693, %v597, 0.0
        %v704 = vsel %vm694, %v598, 0.0
        %v705 = vsel %vm695, %v599, 0.0
        %v706 = vsel %vm696, %v600, 0.0
        %v707 = vsel %vm697, %v601, 0.0
        %v708 = vsel %vm698, %v602, 0.0
        %v709 = vsel %vm699, %v603, 0.0
        %v710 = vsel %vm690, %v604, 0.0
        %v711 = vsel %vm691, %v605, 0.0
        %v712 = vsel %vm692, %v606, 0.0
        %v713 = vsel %vm693, %v607, 0.0
        %v714 = vsel %vm694, %v608, 0.0
        %v715 = vsel %vm695, %v609, 0.0
        %v716 = vsel %vm696, %v610, 0.0
        %v717 = vsel %vm697, %v611, 0.0
        %v718 = vsel %vm698, %v612, 0.0
        %v719 = vsel %vm699, %v613, 0.0
        %v720 = vsel %vm690, %v614, 0.0
        %v721 = vsel %vm691, %v615, 0.0
        %v722 = vsel %vm692, %v616, 0.0
        %v723 = vsel %vm693, %v617, 0.0
        %v724 = vsel %vm694, %v618, 0.0
        %v725 = vsel %vm695, %v619, 0.0
        %v726 = vsel %vm696, %v620, 0.0
        %v727 = vsel %vm697, %v621, 0.0
        %v728 = vsel %vm698, %v622, 0.0
        %v729 = vsel %vm699, %v623, 0.0
        %v730 = vsel %vm690, %v624, 0.0
        %v731 = vsel %vm691, %v625, 0.0
        %v732 = vsel %vm692, %v626, 0.0
        %v733 = vsel %vm693, %v627, 0.0
        %v734 = vsel %vm694, %v628, 0.0
        %v735 = vsel %vm695, %v629, 0.0
        %v736 = vsel %vm696, %v630, 0.0
        %v737 = vsel %vm697, %v631, 0.0
        %v738 = vsel %vm698, %v632, 0.0
        %v739 = vsel %vm699, %v633, 0.0
        %v740 = vsel %vm690, %v634, 0.0
        %v741 = vsel %vm691, %v635, 0.0
        %v742 = vsel %vm692, %v636, 0.0
        %v743 = vsel %vm693, %v637, 0.0
        %v744 = vsel %vm694, %v638, 0.0
        %v745 = vsel %vm695, %v639, 0.0
        %v746 = vsel %vm696, %v640, 0.0
        %v747 = vsel %vm697, %v641, 0.0
        %v748 = vsel %vm698, %v642, 0.0
        %v749 = vsel %vm699, %v643, 0.0
        %v750 = vsel %vm690, %v644, 0.0
        %v751 = vsel %vm691, %v645, 0.0
        %v752 = vsel %vm692, %v646, 0.0
        %v753 = vsel %vm693, %v647, 0.0
        %v754 = vsel %vm694, %v648, 0.0
        %v755 = vsel %vm695, %v649, 0.0
        %v756 = vsel %vm696, %v650, 0.0
        %v757 = vsel %vm697, %v651, 0.0
        %v758 = vsel %vm698, %v652, 0.0
        %v759 = vsel %vm699, %v653, 0.0
        %v760 = vpack.c.bf16 %v701, %v700
        %v761 = vpack.c.bf16 %v703, %v702
        %v762 = vpack.c.bf16 %v704, %v704
        %v763 = vpack.c.bf16 %v706, %v705
        %v764 = vpack.c.bf16 %v708, %v707
        %v765 = vpack.c.bf16 %v709, %v709
        %v766 = vpack.c.bf16 %v711, %v710
        %v767 = vpack.c.bf16 %v713, %v712
        %v768 = vpack.c.bf16 %v714, %v714
        %v769 = vpack.c.bf16 %v716, %v715
        %v770 = vpack.c.bf16 %v718, %v717
        %v771 = vpack.c.bf16 %v719, %v719
        %v772 = vpack.c.bf16 %v721, %v720
        %v773 = vpack.c.bf16 %v723, %v722
        %v774 = vpack.c.bf16 %v724, %v724
        %v775 = vpack.c.bf16 %v726, %v725
        %v776 = vpack.c.bf16 %v728, %v727
        %v777 = vpack.c.bf16 %v729, %v729
        %v778 = vpack.c.bf16 %v731, %v730
        %v779 = vpack.c.bf16 %v733, %v732
        %v780 = vpack.c.bf16 %v734, %v734
        %v781 = vpack.c.bf16 %v736, %v735
        %v782 = vpack.c.bf16 %v738, %v737
        %v783 = vpack.c.bf16 %v739, %v739
        %v784 = vpack.c.bf16 %v741, %v740
        %v785 = vpack.c.bf16 %v743, %v742
        %v786 = vpack.c.bf16 %v744, %v744
        %v787 = vpack.c.bf16 %v746, %v745
        %v788 = vpack.c.bf16 %v748, %v747
        %v789 = vpack.c.bf16 %v749, %v749
        %v790 = vpack.c.bf16 %v751, %v750
        %v791 = vpack.c.bf16 %v753, %v752
        %v792 = vpack.c.bf16 %v754, %v754
        %v793 = vpack.c.bf16 %v756, %v755
        %v794 = vpack.c.bf16 %v758, %v757
        %v795 = vpack.c.bf16 %v759, %v759
        %v832 = vunpack.c.l.b16 %v760
        %v833 = vunpack.c.h.b16 %v760
        %v834 = vunpack.c.l.b16 %v761
        %v835 = vunpack.c.h.b16 %v761
        %v836 = vunpack.c.l.b16 %v762
        %v837 = vunpack.c.l.b16 %v763
        %v838 = vunpack.c.h.b16 %v763
        %v839 = vunpack.c.l.b16 %v764
        %v840 = vunpack.c.h.b16 %v764
        %v841 = vunpack.c.l.b16 %v765
        %v842 = vunpack.c.l.b16 %v766
        %v843 = vunpack.c.h.b16 %v766
        %v844 = vunpack.c.l.b16 %v767
        %v845 = vunpack.c.h.b16 %v767
        %v846 = vunpack.c.l.b16 %v768
        %v847 = vunpack.c.l.b16 %v769
        %v848 = vunpack.c.h.b16 %v769
        %v849 = vunpack.c.l.b16 %v770
        %v850 = vunpack.c.h.b16 %v770
        %v851 = vunpack.c.l.b16 %v771
        %v852 = vunpack.c.l.b16 %v772
        %v853 = vunpack.c.h.b16 %v772
        %v854 = vunpack.c.l.b16 %v773
        %v855 = vunpack.c.h.b16 %v773
        %v856 = vunpack.c.l.b16 %v774
        %v857 = vunpack.c.l.b16 %v775
        %v858 = vunpack.c.h.b16 %v775
        %v859 = vunpack.c.l.b16 %v776
        %v860 = vunpack.c.h.b16 %v776
        %v861 = vunpack.c.l.b16 %v777
        %v862 = vunpack.c.l.b16 %v778
        %v863 = vunpack.c.h.b16 %v778
        %v864 = vunpack.c.l.b16 %v779
        %v865 = vunpack.c.h.b16 %v779
        %v866 = vunpack.c.l.b16 %v780
        %v867 = vunpack.c.l.b16 %v781
        %v868 = vunpack.c.h.b16 %v781
        %v869 = vunpack.c.l.b16 %v782
        %v870 = vunpack.c.h.b16 %v782
        %v871 = vunpack.c.l.b16 %v783
        %v872 = vunpack.c.l.b16 %v784
        %v873 = vunpack.c.h.b16 %v784
        %v874 = vunpack.c.l.b16 %v785
        %v875 = vunpack.c.h.b16 %v785
        %v876 = vunpack.c.l.b16 %v786
        %v877 = vunpack.c.l.b16 %v787
        %v878 = vunpack.c.h.b16 %v787
        %v879 = vunpack.c.l.b16 %v788
        %v880 = vunpack.c.h.b16 %v788
        %v881 = vunpack.c.l.b16 %v789
        %v882 = vunpack.c.l.b16 %v790
        %v883 = vunpack.c.h.b16 %v790
        %v884 = vunpack.c.l.b16 %v791
        %v885 = vunpack.c.h.b16 %v791
        %v886 = vunpack.c.l.b16 %v792
        %v887 = vunpack.c.l.b16 %v793
        %v888 = vunpack.c.h.b16 %v793
        %v889 = vunpack.c.l.b16 %v794
        %v890 = vunpack.c.h.b16 %v794
        %v891 = vunpack.c.l.b16 %v795
        %v892 = vpack.c.b16 %v832, %v832
        %v893 = vpack.c.b16 %v833, %v833
        %v894 = vpack.c.b16 %v834, %v834
        %v895 = vpack.c.b16 %v835, %v835
        %v896 = vpack.c.b16 %v836, %v836
        %v897 = vpack.c.b16 %v837, %v837
        %v898 = vpack.c.b16 %v838, %v838
        %v899 = vpack.c.b16 %v839, %v839
        %v900 = vpack.c.b16 %v840, %v840
        %v901 = vpack.c.b16 %v841, %v841
        %v902 = vpack.c.b16 %v842, %v842
        %v903 = vpack.c.b16 %v843, %v843
        %v904 = vpack.c.b16 %v844, %v844
        %v905 = vpack.c.b16 %v845, %v845
        %v906 = vpack.c.b16 %v846, %v846
        %v907 = vpack.c.b16 %v847, %v847
        %v908 = vpack.c.b16 %v848, %v848
        %v909 = vpack.c.b16 %v849, %v849
        %v910 = vpack.c.b16 %v850, %v850
        %v911 = vpack.c.b16 %v851, %v851
        %v912 = vpack.c.b16 %v852, %v852
        %v913 = vpack.c.b16 %v853, %v853
        %v914 = vpack.c.b16 %v854, %v854
        %v915 = vpack.c.b16 %v855, %v855
        %v916 = vpack.c.b16 %v856, %v856
        %v917 = vpack.c.b16 %v857, %v857
        %v918 = vpack.c.b16 %v858, %v858
        %v919 = vpack.c.b16 %v859, %v859
        %v920 = vpack.c.b16 %v860, %v860
        %v921 = vpack.c.b16 %v861, %v861
        %v922 = vpack.c.b16 %v862, %v862
        %v923 = vpack.c.b16 %v863, %v863
        %v924 = vpack.c.b16 %v864, %v864
        %v925 = vpack.c.b16 %v865, %v865
        %v926 = vpack.c.b16 %v866, %v866
        %v927 = vpack.c.b16 %v867, %v867
        %v928 = vpack.c.b16 %v868, %v868
        %v929 = vpack.c.b16 %v869, %v869
        %v930 = vpack.c.b16 %v870, %v870
        %v931 = vpack.c.b16 %v871, %v871
        %v932 = vpack.c.b16 %v872, %v872
        %v933 = vpack.c.b16 %v873, %v873
        %v934 = vpack.c.b16 %v874, %v874
        %v935 = vpack.c.b16 %v875, %v875
        %v936 = vpack.c.b16 %v876, %v876
        %v937 = vpack.c.b16 %v877, %v877
        %v938 = vpack.c.b16 %v878, %v878
        %v939 = vpack.c.b16 %v879, %v879
        %v940 = vpack.c.b16 %v880, %v880
        %v941 = vpack.c.b16 %v881, %v881
        %v942 = vpack.c.b16 %v882, %v882
        %v943 = vpack.c.b16 %v883, %v883
        %v944 = vpack.c.b16 %v884, %v884
        %v945 = vpack.c.b16 %v885, %v885
        %v946 = vpack.c.b16 %v886, %v886
        %v947 = vpack.c.b16 %v887, %v887
        %v948 = vpack.c.b16 %v888, %v888
        %v949 = vpack.c.b16 %v889, %v889
        %v950 = vpack.c.b16 %v890, %v890
        %v951 = vpack.c.b16 %v891, %v891
        %vm1012 = vcmask 125952
        %1013 = vst.msk [vmem:[#allocation2] sm:$0xf] %vm1012, %v892
        %1014 = vst.msk [vmem:[#allocation2 + $0x4] sm:$0xf] %vm1012, %v893
        %1015 = vst.msk [vmem:[#allocation2 + $0x8] sm:$0xf] %vm1012, %v894
        %1016 = vst.msk [vmem:[#allocation2 + $0xc] sm:$0xf] %vm1012, %v895
        %vm1017 = vcmask 123904
        %1018 = vst.msk [vmem:[#allocation2 + $0x10] sm:$0x3] %vm1017, %v896
        %1019 = vst.msk [vmem:[#allocation2 + $0x14] sm:$0xf] %vm1012, %v897
        %1020 = vst.msk [vmem:[#allocation2 + $0x18] sm:$0xf] %vm1012, %v898
        %1021 = vst.msk [vmem:[#allocation2 + $0x1c] sm:$0xf] %vm1012, %v899
        %1022 = vst.msk [vmem:[#allocation2 + $0x20] sm:$0xf] %vm1012, %v900
        %1023 = vst.msk [vmem:[#allocation2 + $0x24] sm:$0x3] %vm1017, %v901
        %1024 = vst.msk [vmem:[#allocation2 + $0x28] sm:$0xf] %vm1012, %v902
        %1025 = vst.msk [vmem:[#allocation2 + $0x2c] sm:$0xf] %vm1012, %v903
        %1026 = vst.msk [vmem:[#allocation2 + $0x30] sm:$0xf] %vm1012, %v904
        %1027 = vst.msk [vmem:[#allocation2 + $0x34] sm:$0xf] %vm1012, %v905
        %1028 = vst.msk [vmem:[#allocation2 + $0x38] sm:$0x3] %vm1017, %v906
        %1029 = vst.msk [vmem:[#allocation2 + $0x3c] sm:$0xf] %vm1012, %v907
        %1030 = vst.msk [vmem:[#allocation2 + $0x40] sm:$0xf] %vm1012, %v908
        %1031 = vst.msk [vmem:[#allocation2 + $0x44] sm:$0xf] %vm1012, %v909
        %1032 = vst.msk [vmem:[#allocation2 + $0x48] sm:$0xf] %vm1012, %v910
        %1033 = vst.msk [vmem:[#allocation2 + $0x4c] sm:$0x3] %vm1017, %v911
        %1034 = vst.msk [vmem:[#allocation2 + $0x50] sm:$0xf] %vm1012, %v912
        %1035 = vst.msk [vmem:[#allocation2 + $0x54] sm:$0xf] %vm1012, %v913
        %1036 = vst.msk [vmem:[#allocation2 + $0x58] sm:$0xf] %vm1012, %v914
        %1037 = vst.msk [vmem:[#allocation2 + $0x5c] sm:$0xf] %vm1012, %v915
        %1038 = vst.msk [vmem:[#allocation2 + $0x60] sm:$0x3] %vm1017, %v916
        %1039 = vst.msk [vmem:[#allocation2 + $0x64] sm:$0xf] %vm1012, %v917
        %1040 = vst.msk [vmem:[#allocation2 + $0x68] sm:$0xf] %vm1012, %v918
        %1041 = vst.msk [vmem:[#allocation2 + $0x6c] sm:$0xf] %vm1012, %v919
        %1042 = vst.msk [vmem:[#allocation2 + $0x70] sm:$0xf] %vm1012, %v920
        %1043 = vst.msk [vmem:[#allocation2 + $0x74] sm:$0x3] %vm1017, %v921
        %1044 = vst.msk [vmem:[#allocation2 + $0x78] sm:$0xf] %vm1012, %v922
        %1045 = vst.msk [vmem:[#allocation2 + $0x7c] sm:$0xf] %vm1012, %v923
        %1046 = vst.msk [vmem:[#allocation2 + $0x80] sm:$0xf] %vm1012, %v924
        %1047 = vst.msk [vmem:[#allocation2 + $0x84] sm:$0xf] %vm1012, %v925
        %1048 = vst.msk [vmem:[#allocation2 + $0x88] sm:$0x3] %vm1017, %v926
        %1049 = vst.msk [vmem:[#allocation2 + $0x8c] sm:$0xf] %vm1012, %v927
        %1050 = vst.msk [vmem:[#allocation2 + $0x90] sm:$0xf] %vm1012, %v928
        %1051 = vst.msk [vmem:[#allocation2 + $0x94] sm:$0xf] %vm1012, %v929
        %1052 = vst.msk [vmem:[#allocation2 + $0x98] sm:$0xf] %vm1012, %v930
        %1053 = vst.msk [vmem:[#allocation2 + $0x9c] sm:$0x3] %vm1017, %v931
        %1054 = vst.msk [vmem:[#allocation2 + $0xa0] sm:$0xf] %vm1012, %v932
        %1055 = vst.msk [vmem:[#allocation2 + $0xa4] sm:$0xf] %vm1012, %v933
        %1056 = vst.msk [vmem:[#allocation2 + $0xa8] sm:$0xf] %vm1012, %v934
        %1057 = vst.msk [vmem:[#allocation2 + $0xac] sm:$0xf] %vm1012, %v935
        %1058 = vst.msk [vmem:[#allocation2 + $0xb0] sm:$0x3] %vm1017, %v936
        %1059 = vst.msk [vmem:[#allocation2 + $0xb4] sm:$0xf] %vm1012, %v937
        %1060 = vst.msk [vmem:[#allocation2 + $0xb8] sm:$0xf] %vm1012, %v938
        %1061 = vst.msk [vmem:[#allocation2 + $0xbc] sm:$0xf] %vm1012, %v939
        %1062 = vst.msk [vmem:[#allocation2 + $0xc0] sm:$0xf] %vm1012, %v940
        %1063 = vst.msk [vmem:[#allocation2 + $0xc4] sm:$0x3] %vm1017, %v941
        %1064 = vst.msk [vmem:[#allocation2 + $0xc8] sm:$0xf] %vm1012, %v942
        %1065 = vst.msk [vmem:[#allocation2 + $0xcc] sm:$0xf] %vm1012, %v943
        %1066 = vst.msk [vmem:[#allocation2 + $0xd0] sm:$0xf] %vm1012, %v944
        %1067 = vst.msk [vmem:[#allocation2 + $0xd4] sm:$0xf] %vm1012, %v945
        %1068 = vst.msk [vmem:[#allocation2 + $0xd8] sm:$0x3] %vm1017, %v946
        %1069 = vst.msk [vmem:[#allocation2 + $0xdc] sm:$0xf] %vm1012, %v947
        %1070 = vst.msk [vmem:[#allocation2 + $0xe0] sm:$0xf] %vm1012, %v948
        %1071 = vst.msk [vmem:[#allocation2 + $0xe4] sm:$0xf] %vm1012, %v949
        %1072 = vst.msk [vmem:[#allocation2 + $0xe8] sm:$0xf] %vm1012, %v950
        %1073 = vst.msk [vmem:[#allocation2 + $0xec] sm:$0x3] %vm1017, %v951
        %v1074 = vld [vmem:[#allocation2] sm:$0xf]
        %v1075 = vld [vmem:[#allocation2 + $0x4] sm:$0xf]
        %v1076 = vld [vmem:[#allocation2 + $0x8] sm:$0xf]
        %v1077 = vld [vmem:[#allocation2 + $0xc] sm:$0xf]
        %v1078 = vld [vmem:[#allocation2 + $0x28] sm:$0xf]
        %v1079 = vld [vmem:[#allocation2 + $0x2c] sm:$0xf]
        %v1080 = vld [vmem:[#allocation2 + $0x30] sm:$0xf]
        %v1081 = vld [vmem:[#allocation2 + $0x34] sm:$0xf]
        %v1082 = vld [vmem:[#allocation2 + $0x50] sm:$0xf]
        %v1083 = vld [vmem:[#allocation2 + $0x54] sm:$0xf]
        %v1084 = vld [vmem:[#allocation2 + $0x58] sm:$0xf]
        %v1085 = vld [vmem:[#allocation2 + $0x5c] sm:$0xf]
        %v1086 = vld [vmem:[#allocation2 + $0x78] sm:$0xf]
        %v1087 = vld [vmem:[#allocation2 + $0x7c] sm:$0xf]
        %v1088 = vld [vmem:[#allocation2 + $0x80] sm:$0xf]
        %v1089 = vld [vmem:[#allocation2 + $0x84] sm:$0xf]
        %v1090 = vld [vmem:[#allocation2 + $0xa0] sm:$0xf]
        %v1091 = vld [vmem:[#allocation2 + $0xa4] sm:$0xf]
        %v1092 = vld [vmem:[#allocation2 + $0xa8] sm:$0xf]
        %v1093 = vld [vmem:[#allocation2 + $0xac] sm:$0xf]
        %v1094 = vld [vmem:[#allocation2 + $0xc8] sm:$0xf]
        %v1095 = vld [vmem:[#allocation2 + $0xcc] sm:$0xf]
        %v1096 = vld [vmem:[#allocation2 + $0xd0] sm:$0xf]
        %v1097 = vld [vmem:[#allocation2 + $0xd4] sm:$0xf]
        %v1122 = vunpack.c.l.b16 %v1074
        %v1123 = vunpack.c.l.b16 %v1075
        %v1124 = vunpack.c.l.b16 %v1076
        %v1125 = vunpack.c.l.b16 %v1077
        %v1126 = vunpack.c.l.b16 %v1078
        %v1127 = vunpack.c.l.b16 %v1079
        %v1128 = vunpack.c.l.b16 %v1080
        %v1129 = vunpack.c.l.b16 %v1081
        %v1130 = vunpack.c.l.b16 %v1082
        %v1131 = vunpack.c.l.b16 %v1083
        %v1132 = vunpack.c.l.b16 %v1084
        %v1133 = vunpack.c.l.b16 %v1085
        %v1134 = vunpack.c.l.b16 %v1086
        %v1135 = vunpack.c.l.b16 %v1087
        %v1136 = vunpack.c.l.b16 %v1088
        %v1137 = vunpack.c.l.b16 %v1089
        %v1138 = vunpack.c.l.b16 %v1090
        %v1139 = vunpack.c.l.b16 %v1091
        %v1140 = vunpack.c.l.b16 %v1092
        %v1141 = vunpack.c.l.b16 %v1093
        %v1142 = vunpack.c.l.b16 %v1094
        %v1143 = vunpack.c.l.b16 %v1095
        %v1144 = vunpack.c.l.b16 %v1096
        %v1145 = vunpack.c.l.b16 %v1097
        %v1146 = vpack.c.b16 %v1123, %v1122
        %v1147 = vpack.c.b16 %v1125, %v1124
        %v1148 = vpack.c.b16 %v1127, %v1126
        %v1149 = vpack.c.b16 %v1129, %v1128
        %v1150 = vpack.c.b16 %v1131, %v1130
        %v1151 = vpack.c.b16 %v1133, %v1132
        %v1152 = vpack.c.b16 %v1135, %v1134
        %v1153 = vpack.c.b16 %v1137, %v1136
        %v1154 = vpack.c.b16 %v1139, %v1138
        %v1155 = vpack.c.b16 %v1141, %v1140
        %v1156 = vpack.c.b16 %v1143, %v1142
        %v1157 = vpack.c.b16 %v1145, %v1144
        %vm1170 = vcmask 130048
        %1171 = vst.msk [vmem:[#allocation3] sm:$0xff] %vm1170, %v1146
        %1172 = vst.msk [vmem:[#allocation3 + $0x10] sm:$0xff] %vm1170, %v1147
        %1173 = vst.msk [vmem:[#allocation3 + $0x20] sm:$0xff] %vm1170, %v1148
        %1174 = vst.msk [vmem:[#allocation3 + $0x30] sm:$0xff] %vm1170, %v1149
        %1175 = vst.msk [vmem:[#allocation3 + $0x40] sm:$0xff] %vm1170, %v1150
        %1176 = vst.msk [vmem:[#allocation3 + $0x50] sm:$0xff] %vm1170, %v1151
        %1177 = vst.msk [vmem:[#allocation3 + $0x60] sm:$0xff] %vm1170, %v1152
        %1178 = vst.msk [vmem:[#allocation3 + $0x70] sm:$0xff] %vm1170, %v1153
        %1179 = vst.msk [vmem:[#allocation3 + $0x80] sm:$0xff] %vm1170, %v1154
        %1180 = vst.msk [vmem:[#allocation3 + $0x90] sm:$0xff] %vm1170, %v1155
        %1181 = vst.msk [vmem:[#allocation3 + $0xa0] sm:$0xff] %vm1170, %v1156
        %1182 = vst.msk [vmem:[#allocation3 + $0xb0] sm:$0xff] %vm1170, %v1157
        %s1183 = scalar_lea.vmem [#allocation2], 20
        %v1184 = vld [vmem:[%s1183] sm:$0xf]
        %v1185 = vld [vmem:[%s1183 + $0x4] sm:$0xf]
        %v1186 = vld [vmem:[%s1183 + $0x8] sm:$0xf]
        %v1187 = vld [vmem:[%s1183 + $0xc] sm:$0xf]
        %v1188 = vld [vmem:[%s1183 + $0x28] sm:$0xf]
        %v1189 = vld [vmem:[%s1183 + $0x2c] sm:$0xf]
        %v1190 = vld [vmem:[%s1183 + $0x30] sm:$0xf]
        %v1191 = vld [vmem:[%s1183 + $0x34] sm:$0xf]
        %v1192 = vld [vmem:[%s1183 + $0x50] sm:$0xf]
        %v1193 = vld [vmem:[%s1183 + $0x54] sm:$0xf]
        %v1194 = vld [vmem:[%s1183 + $0x58] sm:$0xf]
        %v1195 = vld [vmem:[%s1183 + $0x5c] sm:$0xf]
        %v1196 = vld [vmem:[%s1183 + $0x78] sm:$0xf]
        %v1197 = vld [vmem:[%s1183 + $0x7c] sm:$0xf]
        %v1198 = vld [vmem:[%s1183 + $0x80] sm:$0xf]
        %v1199 = vld [vmem:[%s1183 + $0x84] sm:$0xf]
        %v1200 = vld [vmem:[%s1183 + $0xa0] sm:$0xf]
        %v1201 = vld [vmem:[%s1183 + $0xa4] sm:$0xf]
        %v1202 = vld [vmem:[%s1183 + $0xa8] sm:$0xf]
        %v1203 = vld [vmem:[%s1183 + $0xac] sm:$0xf]
        %v1204 = vld [vmem:[%s1183 + $0xc8] sm:$0xf]
        %v1205 = vld [vmem:[%s1183 + $0xcc] sm:$0xf]
        %v1206 = vld [vmem:[%s1183 + $0xd0] sm:$0xf]
        %v1207 = vld [vmem:[%s1183 + $0xd4] sm:$0xf]
        %v1232 = vunpack.c.l.b16 %v1184
        %v1233 = vunpack.c.l.b16 %v1185
        %v1234 = vunpack.c.l.b16 %v1186
        %v1235 = vunpack.c.l.b16 %v1187
        %v1236 = vunpack.c.l.b16 %v1188
        %v1237 = vunpack.c.l.b16 %v1189
        %v1238 = vunpack.c.l.b16 %v1190
        %v1239 = vunpack.c.l.b16 %v1191
        %v1240 = vunpack.c.l.b16 %v1192
        %v1241 = vunpack.c.l.b16 %v1193
        %v1242 = vunpack.c.l.b16 %v1194
        %v1243 = vunpack.c.l.b16 %v1195
        %v1244 = vunpack.c.l.b16 %v1196
        %v1245 = vunpack.c.l.b16 %v1197
        %v1246 = vunpack.c.l.b16 %v1198
        %v1247 = vunpack.c.l.b16 %v1199
        %v1248 = vunpack.c.l.b16 %v1200
        %v1249 = vunpack.c.l.b16 %v1201
        %v1250 = vunpack.c.l.b16 %v1202
        %v1251 = vunpack.c.l.b16 %v1203
        %v1252 = vunpack.c.l.b16 %v1204
        %v1253 = vunpack.c.l.b16 %v1205
        %v1254 = vunpack.c.l.b16 %v1206
        %v1255 = vunpack.c.l.b16 %v1207
        %v1256 = vpack.c.b16 %v1233, %v1232
        %v1257 = vpack.c.b16 %v1235, %v1234
        %v1258 = vpack.c.b16 %v1237, %v1236
        %v1259 = vpack.c.b16 %v1239, %v1238
        %v1260 = vpack.c.b16 %v1241, %v1240
        %v1261 = vpack.c.b16 %v1243, %v1242
        %v1262 = vpack.c.b16 %v1245, %v1244
        %v1263 = vpack.c.b16 %v1247, %v1246
        %v1264 = vpack.c.b16 %v1249, %v1248
        %v1265 = vpack.c.b16 %v1251, %v1250
        %v1266 = vpack.c.b16 %v1253, %v1252
        %v1267 = vpack.c.b16 %v1255, %v1254
        %1268 = vrot.lane.b32.xlu0 %v1256, 16
        %v1269 = vpop.permute.xlu0 %1268
        %1270 = vrot.lane.b32.xlu0 %v1257, 16
        %v1271 = vpop.permute.xlu0 %1270
        %1272 = vrot.lane.b32.xlu0 %v1258, 16
        %v1273 = vpop.permute.xlu0 %1272
        %1274 = vrot.lane.b32.xlu0 %v1259, 16
        %v1275 = vpop.permute.xlu0 %1274
        %1276 = vrot.lane.b32.xlu0 %v1260, 16
        %v1277 = vpop.permute.xlu0 %1276
        %1278 = vrot.lane.b32.xlu0 %v1261, 16
        %v1279 = vpop.permute.xlu0 %1278
        %1280 = vrot.lane.b32.xlu0 %v1262, 16
        %v1281 = vpop.permute.xlu0 %1280
        %1282 = vrot.lane.b32.xlu0 %v1263, 16
        %v1283 = vpop.permute.xlu0 %1282
        %1284 = vrot.lane.b32.xlu0 %v1264, 16
        %v1285 = vpop.permute.xlu0 %1284
        %1286 = vrot.lane.b32.xlu0 %v1265, 16
        %v1287 = vpop.permute.xlu0 %1286
        %1288 = vrot.lane.b32.xlu0 %v1266, 16
        %v1289 = vpop.permute.xlu0 %1288
        %1290 = vrot.lane.b32.xlu0 %v1267, 16
        %v1291 = vpop.permute.xlu0 %1290
        %vm1304 = vcmask 261248
        %1305 = vst.msk [vmem:[#allocation3] sm:$0xff] %vm1304, %v1269
        %1306 = vst.msk [vmem:[#allocation3 + $0x10] sm:$0xff] %vm1304, %v1271
        %1307 = vst.msk [vmem:[#allocation3 + $0x20] sm:$0xff] %vm1304, %v1273
        %1308 = vst.msk [vmem:[#allocation3 + $0x30] sm:$0xff] %vm1304, %v1275
        %1309 = vst.msk [vmem:[#allocation3 + $0x40] sm:$0xff] %vm1304, %v1277
        %1310 = vst.msk [vmem:[#allocation3 + $0x50] sm:$0xff] %vm1304, %v1279
        %1311 = vst.msk [vmem:[#allocation3 + $0x60] sm:$0xff] %vm1304, %v1281
        %1312 = vst.msk [vmem:[#allocation3 + $0x70] sm:$0xff] %vm1304, %v1283
        %1313 = vst.msk [vmem:[#allocation3 + $0x80] sm:$0xff] %vm1304, %v1285
        %1314 = vst.msk [vmem:[#allocation3 + $0x90] sm:$0xff] %vm1304, %v1287
        %1315 = vst.msk [vmem:[#allocation3 + $0xa0] sm:$0xff] %vm1304, %v1289
        %1316 = vst.msk [vmem:[#allocation3 + $0xb0] sm:$0xff] %vm1304, %v1291
        %v1317 = vld [vmem:[#allocation2] sm:$0xf]
        %v1318 = vld [vmem:[#allocation2 + $0x4] sm:$0xf]
        %v1319 = vld [vmem:[#allocation2 + $0x8] sm:$0xf]
        %v1320 = vld [vmem:[#allocation2 + $0xc] sm:$0xf]
        %v1321 = vld [vmem:[#allocation2 + $0x10] sm:$0x1]
        %v1322 = vld [vmem:[#allocation2 + $0x28] sm:$0xf]
        %v1323 = vld [vmem:[#allocation2 + $0x2c] sm:$0xf]
        %v1324 = vld [vmem:[#allocation2 + $0x30] sm:$0xf]
        %v1325 = vld [vmem:[#allocation2 + $0x34] sm:$0xf]
        %v1326 = vld [vmem:[#allocation2 + $0x38] sm:$0x1]
        %v1327 = vld [vmem:[#allocation2 + $0x50] sm:$0xf]
        %v1328 = vld [vmem:[#allocation2 + $0x54] sm:$0xf]
        %v1329 = vld [vmem:[#allocation2 + $0x58] sm:$0xf]
        %v1330 = vld [vmem:[#allocation2 + $0x5c] sm:$0xf]
        %v1331 = vld [vmem:[#allocation2 + $0x60] sm:$0x1]
        %v1332 = vld [vmem:[#allocation2 + $0x78] sm:$0xf]
        %v1333 = vld [vmem:[#allocation2 + $0x7c] sm:$0xf]
        %v1334 = vld [vmem:[#allocation2 + $0x80] sm:$0xf]
        %v1335 = vld [vmem:[#allocation2 + $0x84] sm:$0xf]
        %v1336 = vld [vmem:[#allocation2 + $0x88] sm:$0x1]
        %v1337 = vld [vmem:[#allocation2 + $0xa0] sm:$0xf]
        %v1338 = vld [vmem:[#allocation2 + $0xa4] sm:$0xf]
        %v1339 = vld [vmem:[#allocation2 + $0xa8] sm:$0xf]
        %v1340 = vld [vmem:[#allocation2 + $0xac] sm:$0xf]
        %v1341 = vld [vmem:[#allocation2 + $0xb0] sm:$0x1]
        %v1342 = vld [vmem:[#allocation2 + $0xc8] sm:$0xf]
        %v1343 = vld [vmem:[#allocation2 + $0xcc] sm:$0xf]
        %v1344 = vld [vmem:[#allocation2 + $0xd0] sm:$0xf]
        %v1345 = vld [vmem:[#allocation2 + $0xd4] sm:$0xf]
        %v1346 = vld [vmem:[#allocation2 + $0xd8] sm:$0x1]
        %vm1347 = vsmask.f32 3328
        %vm1348 = vsmask.f32 7440
        %vm1349 = vmor %vm1347, %vm1348
        %v1351 = vshrl.u32 %v1317, 16
        %v1353 = vrot.slane %v1351, 4
        %v1354 = vshll.u32 %v1317, 16
        %v1356 = vrot.slane %v1354, 5
        %v1357 = vor.u32 %v1353, %v1356
        %v1358 = vrot.slane %v1357, 4
        %v1360 = vshll.u32 %v1318, 16
        %v1362 = vrot.slane %v1360, 5
        %v1363 = vsel %vm1349, %v1358, %v1362
        %v1364 = vshrl.u32 %v1318, 16
        %v1366 = vrot.slane %v1364, 4
        %v1367 = vor.u32 %v1366, %v1362
        %v1368 = vrot.slane %v1367, 4
        %v1370 = vshll.u32 %v1319, 16
        %v1372 = vrot.slane %v1370, 5
        %v1373 = vsel %vm1349, %v1368, %v1372
        %v1374 = vshrl.u32 %v1319, 16
        %v1376 = vrot.slane %v1374, 4
        %v1377 = vor.u32 %v1376, %v1372
        %v1378 = vrot.slane %v1377, 4
        %v1380 = vshll.u32 %v1320, 16
        %v1382 = vrot.slane %v1380, 5
        %v1383 = vsel %vm1349, %v1378, %v1382
        %v1384 = vshrl.u32 %v1320, 16
        %v1386 = vrot.slane %v1384, 4
        %v1387 = vor.u32 %v1386, %v1382
        %v1388 = vrot.slane %v1387, 4
        %v1390 = vshll.u32 %v1321, 16
        %v1392 = vrot.slane %v1390, 5
        %v1393 = vsel %vm1349, %v1388, %v1392
        %v1395 = vshrl.u32 %v1322, 16
        %v1397 = vrot.slane %v1395, 4
        %v1398 = vshll.u32 %v1322, 16
        %v1400 = vrot.slane %v1398, 5
        %v1401 = vor.u32 %v1397, %v1400
        %v1402 = vrot.slane %v1401, 4
        %v1404 = vshll.u32 %v1323, 16
        %v1406 = vrot.slane %v1404, 5
        %v1407 = vsel %vm1349, %v1402, %v1406
        %v1408 = vshrl.u32 %v1323, 16
        %v1410 = vrot.slane %v1408, 4
        %v1411 = vor.u32 %v1410, %v1406
        %v1412 = vrot.slane %v1411, 4
        %v1414 = vshll.u32 %v1324, 16
        %v1416 = vrot.slane %v1414, 5
        %v1417 = vsel %vm1349, %v1412, %v1416
        %v1418 = vshrl.u32 %v1324, 16
        %v1420 = vrot.slane %v1418, 4
        %v1421 = vor.u32 %v1420, %v1416
        %v1422 = vrot.slane %v1421, 4
        %v1424 = vshll.u32 %v1325, 16
        %v1426 = vrot.slane %v1424, 5
        %v1427 = vsel %vm1349, %v1422, %v1426
        %v1428 = vshrl.u32 %v1325, 16
        %v1430 = vrot.slane %v1428, 4
        %v1431 = vor.u32 %v1430, %v1426
        %v1432 = vrot.slane %v1431, 4
        %v1434 = vshll.u32 %v1326, 16
        %v1436 = vrot.slane %v1434, 5
        %v1437 = vsel %vm1349, %v1432, %v1436
        %v1439 = vshrl.u32 %v1327, 16
        %v1441 = vrot.slane %v1439, 4
        %v1442 = vshll.u32 %v1327, 16
        %v1444 = vrot.slane %v1442, 5
        %v1445 = vor.u32 %v1441, %v1444
        %v1446 = vrot.slane %v1445, 4
        %v1448 = vshll.u32 %v1328, 16
        %v1450 = vrot.slane %v1448, 5
        %v1451 = vsel %vm1349, %v1446, %v1450
        %v1452 = vshrl.u32 %v1328, 16
        %v1454 = vrot.slane %v1452, 4
        %v1455 = vor.u32 %v1454, %v1450
        %v1456 = vrot.slane %v1455, 4
        %v1458 = vshll.u32 %v1329, 16
        %v1460 = vrot.slane %v1458, 5
        %v1461 = vsel %vm1349, %v1456, %v1460
        %v1462 = vshrl.u32 %v1329, 16
        %v1464 = vrot.slane %v1462, 4
        %v1465 = vor.u32 %v1464, %v1460
        %v1466 = vrot.slane %v1465, 4
        %v1468 = vshll.u32 %v1330, 16
        %v1470 = vrot.slane %v1468, 5
        %v1471 = vsel %vm1349, %v1466, %v1470
        %v1472 = vshrl.u32 %v1330, 16
        %v1474 = vrot.slane %v1472, 4
        %v1475 = vor.u32 %v1474, %v1470
        %v1476 = vrot.slane %v1475, 4
        %v1478 = vshll.u32 %v1331, 16
        %v1480 = vrot.slane %v1478, 5
        %v1481 = vsel %vm1349, %v1476, %v1480
        %v1483 = vshrl.u32 %v1332, 16
        %v1485 = vrot.slane %v1483, 4
        %v1486 = vshll.u32 %v1332, 16
        %v1488 = vrot.slane %v1486, 5
        %v1489 = vor.u32 %v1485, %v1488
        %v1490 = vrot.slane %v1489, 4
        %v1492 = vshll.u32 %v1333, 16
        %v1494 = vrot.slane %v1492, 5
        %v1495 = vsel %vm1349, %v1490, %v1494
        %v1496 = vshrl.u32 %v1333, 16
        %v1498 = vrot.slane %v1496, 4
        %v1499 = vor.u32 %v1498, %v1494
        %v1500 = vrot.slane %v1499, 4
        %v1502 = vshll.u32 %v1334, 16
        %v1504 = vrot.slane %v1502, 5
        %v1505 = vsel %vm1349, %v1500, %v1504
        %v1506 = vshrl.u32 %v1334, 16
        %v1508 = vrot.slane %v1506, 4
        %v1509 = vor.u32 %v1508, %v1504
        %v1510 = vrot.slane %v1509, 4
        %v1512 = vshll.u32 %v1335, 16
        %v1514 = vrot.slane %v1512, 5
        %v1515 = vsel %vm1349, %v1510, %v1514
        %v1516 = vshrl.u32 %v1335, 16
        %v1518 = vrot.slane %v1516, 4
        %v1519 = vor.u32 %v1518, %v1514
        %v1520 = vrot.slane %v1519, 4
        %v1522 = vshll.u32 %v1336, 16
        %v1524 = vrot.slane %v1522, 5
        %v1525 = vsel %vm1349, %v1520, %v1524
        %v1527 = vshrl.u32 %v1337, 16
        %v1529 = vrot.slane %v1527, 4
        %v1530 = vshll.u32 %v1337, 16
        %v1532 = vrot.slane %v1530, 5
        %v1533 = vor.u32 %v1529, %v1532
        %v1534 = vrot.slane %v1533, 4
        %v1536 = vshll.u32 %v1338, 16
        %v1538 = vrot.slane %v1536, 5
        %v1539 = vsel %vm1349, %v1534, %v1538
        %v1540 = vshrl.u32 %v1338, 16
        %v1542 = vrot.slane %v1540, 4
        %v1543 = vor.u32 %v1542, %v1538
        %v1544 = vrot.slane %v1543, 4
        %v1546 = vshll.u32 %v1339, 16
        %v1548 = vrot.slane %v1546, 5
        %v1549 = vsel %vm1349, %v1544, %v1548
        %v1550 = vshrl.u32 %v1339, 16
        %v1552 = vrot.slane %v1550, 4
        %v1553 = vor.u32 %v1552, %v1548
        %v1554 = vrot.slane %v1553, 4
        %v1556 = vshll.u32 %v1340, 16
        %v1558 = vrot.slane %v1556, 5
        %v1559 = vsel %vm1349, %v1554, %v1558
        %v1560 = vshrl.u32 %v1340, 16
        %v1562 = vrot.slane %v1560, 4
        %v1563 = vor.u32 %v1562, %v1558
        %v1564 = vrot.slane %v1563, 4
        %v1566 = vshll.u32 %v1341, 16
        %v1568 = vrot.slane %v1566, 5
        %v1569 = vsel %vm1349, %v1564, %v1568
        %v1571 = vshrl.u32 %v1342, 16
        %v1573 = vrot.slane %v1571, 4
        %v1574 = vshll.u32 %v1342, 16
        %v1576 = vrot.slane %v1574, 5
        %v1577 = vor.u32 %v1573, %v1576
        %v1578 = vrot.slane %v1577, 4
        %v1580 = vshll.u32 %v1343, 16
        %v1582 = vrot.slane %v1580, 5
        %v1583 = vsel %vm1349, %v1578, %v1582
        %v1584 = vshrl.u32 %v1343, 16
        %v1586 = vrot.slane %v1584, 4
        %v1587 = vor.u32 %v1586, %v1582
        %v1588 = vrot.slane %v1587, 4
        %v1590 = vshll.u32 %v1344, 16
        %v1592 = vrot.slane %v1590, 5
        %v1593 = vsel %vm1349, %v1588, %v1592
        %v1594 = vshrl.u32 %v1344, 16
        %v1596 = vrot.slane %v1594, 4
        %v1597 = vor.u32 %v1596, %v1592
        %v1598 = vrot.slane %v1597, 4
        %v1600 = vshll.u32 %v1345, 16
        %v1602 = vrot.slane %v1600, 5
        %v1603 = vsel %vm1349, %v1598, %v1602
        %v1604 = vshrl.u32 %v1345, 16
        %v1606 = vrot.slane %v1604, 4
        %v1607 = vor.u32 %v1606, %v1602
        %v1608 = vrot.slane %v1607, 4
        %v1610 = vshll.u32 %v1346, 16
        %v1612 = vrot.slane %v1610, 5
        %v1613 = vsel %vm1349, %v1608, %v1612
        %v1614 = vunpack.c.l.b16 %v1363
        %v1615 = vunpack.c.l.b16 %v1373
        %v1616 = vunpack.c.l.b16 %v1383
        %v1617 = vunpack.c.l.b16 %v1393
        %v1618 = vunpack.c.l.b16 %v1407
        %v1619 = vunpack.c.l.b16 %v1417
        %v1620 = vunpack.c.l.b16 %v1427
        %v1621 = vunpack.c.l.b16 %v1437
        %v1622 = vunpack.c.l.b16 %v1451
        %v1623 = vunpack.c.l.b16 %v1461
        %v1624 = vunpack.c.l.b16 %v1471
        %v1625 = vunpack.c.l.b16 %v1481
        %v1626 = vunpack.c.l.b16 %v1495
        %v1627 = vunpack.c.l.b16 %v1505
        %v1628 = vunpack.c.l.b16 %v1515
        %v1629 = vunpack.c.l.b16 %v1525
        %v1630 = vunpack.c.l.b16 %v1539
        %v1631 = vunpack.c.l.b16 %v1549
        %v1632 = vunpack.c.l.b16 %v1559
        %v1633 = vunpack.c.l.b16 %v1569
        %v1634 = vunpack.c.l.b16 %v1583
        %v1635 = vunpack.c.l.b16 %v1593
        %v1636 = vunpack.c.l.b16 %v1603
        %v1637 = vunpack.c.l.b16 %v1613
        %v1638 = vpack.c.b16 %v1615, %v1614
        %v1639 = vpack.c.b16 %v1617, %v1616
        %v1640 = vpack.c.b16 %v1619, %v1618
        %v1641 = vpack.c.b16 %v1621, %v1620
        %v1642 = vpack.c.b16 %v1623, %v1622
        %v1643 = vpack.c.b16 %v1625, %v1624
        %v1644 = vpack.c.b16 %v1627, %v1626
        %v1645 = vpack.c.b16 %v1629, %v1628
        %v1646 = vpack.c.b16 %v1631, %v1630
        %v1647 = vpack.c.b16 %v1633, %v1632
        %v1648 = vpack.c.b16 %v1635, %v1634
        %v1649 = vpack.c.b16 %v1637, %v1636
        %1650 = vrot.lane.b32.xlu0 %v1638, 32
        %v1651 = vpop.permute.xlu0 %1650
        %1652 = vrot.lane.b32.xlu0 %v1639, 32
        %v1653 = vpop.permute.xlu0 %1652
        %1654 = vrot.lane.b32.xlu0 %v1640, 32
        %v1655 = vpop.permute.xlu0 %1654
        %1656 = vrot.lane.b32.xlu0 %v1641, 32
        %v1657 = vpop.permute.xlu0 %1656
        %1658 = vrot.lane.b32.xlu0 %v1642, 32
        %v1659 = vpop.permute.xlu0 %1658
        %1660 = vrot.lane.b32.xlu0 %v1643, 32
        %v1661 = vpop.permute.xlu0 %1660
        %1662 = vrot.lane.b32.xlu0 %v1644, 32
        %v1663 = vpop.permute.xlu0 %1662
        %1664 = vrot.lane.b32.xlu0 %v1645, 32
        %v1665 = vpop.permute.xlu0 %1664
        %1666 = vrot.lane.b32.xlu0 %v1646, 32
        %v1667 = vpop.permute.xlu0 %1666
        %1668 = vrot.lane.b32.xlu0 %v1647, 32
        %v1669 = vpop.permute.xlu0 %1668
        %1670 = vrot.lane.b32.xlu0 %v1648, 32
        %v1671 = vpop.permute.xlu0 %1670
        %1672 = vrot.lane.b32.xlu0 %v1649, 32
        %v1673 = vpop.permute.xlu0 %1672
        %vm1686 = vcmask 392448
        %1687 = vst.msk [vmem:[#allocation3] sm:$0xff] %vm1686, %v1651
        %1688 = vst.msk [vmem:[#allocation3 + $0x10] sm:$0xff] %vm1686, %v1653
        %1689 = vst.msk [vmem:[#allocation3 + $0x20] sm:$0xff] %vm1686, %v1655
        %1690 = vst.msk [vmem:[#allocation3 + $0x30] sm:$0xff] %vm1686, %v1657
        %1691 = vst.msk [vmem:[#allocation3 + $0x40] sm:$0xff] %vm1686, %v1659
        %1692 = vst.msk [vmem:[#allocation3 + $0x50] sm:$0xff] %vm1686, %v1661
        %1693 = vst.msk [vmem:[#allocation3 + $0x60] sm:$0xff] %vm1686, %v1663
        %1694 = vst.msk [vmem:[#allocation3 + $0x70] sm:$0xff] %vm1686, %v1665
        %1695 = vst.msk [vmem:[#allocation3 + $0x80] sm:$0xff] %vm1686, %v1667
        %1696 = vst.msk [vmem:[#allocation3 + $0x90] sm:$0xff] %vm1686, %v1669
        %1697 = vst.msk [vmem:[#allocation3 + $0xa0] sm:$0xff] %vm1686, %v1671
        %1698 = vst.msk [vmem:[#allocation3 + $0xb0] sm:$0xff] %vm1686, %v1673
        %v1699 = vld [vmem:[%s1183] sm:$0xf]
        %v1700 = vld [vmem:[%s1183 + $0x4] sm:$0xf]
        %v1701 = vld [vmem:[%s1183 + $0x8] sm:$0xf]
        %v1702 = vld [vmem:[%s1183 + $0xc] sm:$0xf]
        %v1703 = vld [vmem:[%s1183 + $0x10] sm:$0x1]
        %v1704 = vld [vmem:[%s1183 + $0x28] sm:$0xf]
        %v1705 = vld [vmem:[%s1183 + $0x2c] sm:$0xf]
        %v1706 = vld [vmem:[%s1183 + $0x30] sm:$0xf]
        %v1707 = vld [vmem:[%s1183 + $0x34] sm:$0xf]
        %v1708 = vld [vmem:[%s1183 + $0x38] sm:$0x1]
        %v1709 = vld [vmem:[%s1183 + $0x50] sm:$0xf]
        %v1710 = vld [vmem:[%s1183 + $0x54] sm:$0xf]
        %v1711 = vld [vmem:[%s1183 + $0x58] sm:$0xf]
        %v1712 = vld [vmem:[%s1183 + $0x5c] sm:$0xf]
        %v1713 = vld [vmem:[%s1183 + $0x60] sm:$0x1]
        %v1714 = vld [vmem:[%s1183 + $0x78] sm:$0xf]
        %v1715 = vld [vmem:[%s1183 + $0x7c] sm:$0xf]
        %v1716 = vld [vmem:[%s1183 + $0x80] sm:$0xf]
        %v1717 = vld [vmem:[%s1183 + $0x84] sm:$0xf]
        %v1718 = vld [vmem:[%s1183 + $0x88] sm:$0x1]
        %v1719 = vld [vmem:[%s1183 + $0xa0] sm:$0xf]
        %v1720 = vld [vmem:[%s1183 + $0xa4] sm:$0xf]
        %v1721 = vld [vmem:[%s1183 + $0xa8] sm:$0xf]
        %v1722 = vld [vmem:[%s1183 + $0xac] sm:$0xf]
        %v1723 = vld [vmem:[%s1183 + $0xb0] sm:$0x1]
        %v1724 = vld [vmem:[%s1183 + $0xc8] sm:$0xf]
        %v1725 = vld [vmem:[%s1183 + $0xcc] sm:$0xf]
        %v1726 = vld [vmem:[%s1183 + $0xd0] sm:$0xf]
        %v1727 = vld [vmem:[%s1183 + $0xd4] sm:$0xf]
        %v1728 = vld [vmem:[%s1183 + $0xd8] sm:$0x1]
        %v1730 = vshrl.u32 %v1699, 16
        %v1732 = vrot.slane %v1730, 4
        %v1733 = vshll.u32 %v1699, 16
        %v1735 = vrot.slane %v1733, 5
        %v1736 = vor.u32 %v1732, %v1735
        %v1737 = vrot.slane %v1736, 4
        %v1739 = vshll.u32 %v1700, 16
        %v1741 = vrot.slane %v1739, 5
        %v1742 = vsel %vm1349, %v1737, %v1741
        %v1743 = vshrl.u32 %v1700, 16
        %v1745 = vrot.slane %v1743, 4
        %v1746 = vor.u32 %v1745, %v1741
        %v1747 = vrot.slane %v1746, 4
        %v1749 = vshll.u32 %v1701, 16
        %v1751 = vrot.slane %v1749, 5
        %v1752 = vsel %vm1349, %v1747, %v1751
        %v1753 = vshrl.u32 %v1701, 16
        %v1755 = vrot.slane %v1753, 4
        %v1756 = vor.u32 %v1755, %v1751
        %v1757 = vrot.slane %v1756, 4
        %v1759 = vshll.u32 %v1702, 16
        %v1761 = vrot.slane %v1759, 5
        %v1762 = vsel %vm1349, %v1757, %v1761
        %v1763 = vshrl.u32 %v1702, 16
        %v1765 = vrot.slane %v1763, 4
        %v1766 = vor.u32 %v1765, %v1761
        %v1767 = vrot.slane %v1766, 4
        %v1769 = vshll.u32 %v1703, 16
        %v1771 = vrot.slane %v1769, 5
        %v1772 = vsel %vm1349, %v1767, %v1771
        %v1774 = vshrl.u32 %v1704, 16
        %v1776 = vrot.slane %v1774, 4
        %v1777 = vshll.u32 %v1704, 16
        %v1779 = vrot.slane %v1777, 5
        %v1780 = vor.u32 %v1776, %v1779
        %v1781 = vrot.slane %v1780, 4
        %v1783 = vshll.u32 %v1705, 16
        %v1785 = vrot.slane %v1783, 5
        %v1786 = vsel %vm1349, %v1781, %v1785
        %v1787 = vshrl.u32 %v1705, 16
        %v1789 = vrot.slane %v1787, 4
        %v1790 = vor.u32 %v1789, %v1785
        %v1791 = vrot.slane %v1790, 4
        %v1793 = vshll.u32 %v1706, 16
        %v1795 = vrot.slane %v1793, 5
        %v1796 = vsel %vm1349, %v1791, %v1795
        %v1797 = vshrl.u32 %v1706, 16
        %v1799 = vrot.slane %v1797, 4
        %v1800 = vor.u32 %v1799, %v1795
        %v1801 = vrot.slane %v1800, 4
        %v1803 = vshll.u32 %v1707, 16
        %v1805 = vrot.slane %v1803, 5
        %v1806 = vsel %vm1349, %v1801, %v1805
        %v1807 = vshrl.u32 %v1707, 16
        %v1809 = vrot.slane %v1807, 4
        %v1810 = vor.u32 %v1809, %v1805
        %v1811 = vrot.slane %v1810, 4
        %v1813 = vshll.u32 %v1708, 16
        %v1815 = vrot.slane %v1813, 5
        %v1816 = vsel %vm1349, %v1811, %v1815
        %v1818 = vshrl.u32 %v1709, 16
        %v1820 = vrot.slane %v1818, 4
        %v1821 = vshll.u32 %v1709, 16
        %v1823 = vrot.slane %v1821, 5
        %v1824 = vor.u32 %v1820, %v1823
        %v1825 = vrot.slane %v1824, 4
        %v1827 = vshll.u32 %v1710, 16
        %v1829 = vrot.slane %v1827, 5
        %v1830 = vsel %vm1349, %v1825, %v1829
        %v1831 = vshrl.u32 %v1710, 16
        %v1833 = vrot.slane %v1831, 4
        %v1834 = vor.u32 %v1833, %v1829
        %v1835 = vrot.slane %v1834, 4
        %v1837 = vshll.u32 %v1711, 16
        %v1839 = vrot.slane %v1837, 5
        %v1840 = vsel %vm1349, %v1835, %v1839
        %v1841 = vshrl.u32 %v1711, 16
        %v1843 = vrot.slane %v1841, 4
        %v1844 = vor.u32 %v1843, %v1839
        %v1845 = vrot.slane %v1844, 4
        %v1847 = vshll.u32 %v1712, 16
        %v1849 = vrot.slane %v1847, 5
        %v1850 = vsel %vm1349, %v1845, %v1849
        %v1851 = vshrl.u32 %v1712, 16
        %v1853 = vrot.slane %v1851, 4
        %v1854 = vor.u32 %v1853, %v1849
        %v1855 = vrot.slane %v1854, 4
        %v1857 = vshll.u32 %v1713, 16
        %v1859 = vrot.slane %v1857, 5
        %v1860 = vsel %vm1349, %v1855, %v1859
        %v1862 = vshrl.u32 %v1714, 16
        %v1864 = vrot.slane %v1862, 4
        %v1865 = vshll.u32 %v1714, 16
        %v1867 = vrot.slane %v1865, 5
        %v1868 = vor.u32 %v1864, %v1867
        %v1869 = vrot.slane %v1868, 4
        %v1871 = vshll.u32 %v1715, 16
        %v1873 = vrot.slane %v1871, 5
        %v1874 = vsel %vm1349, %v1869, %v1873
        %v1875 = vshrl.u32 %v1715, 16
        %v1877 = vrot.slane %v1875, 4
        %v1878 = vor.u32 %v1877, %v1873
        %v1879 = vrot.slane %v1878, 4
        %v1881 = vshll.u32 %v1716, 16
        %v1883 = vrot.slane %v1881, 5
        %v1884 = vsel %vm1349, %v1879, %v1883
        %v1885 = vshrl.u32 %v1716, 16
        %v1887 = vrot.slane %v1885, 4
        %v1888 = vor.u32 %v1887, %v1883
        %v1889 = vrot.slane %v1888, 4
        %v1891 = vshll.u32 %v1717, 16
        %v1893 = vrot.slane %v1891, 5
        %v1894 = vsel %vm1349, %v1889, %v1893
        %v1895 = vshrl.u32 %v1717, 16
        %v1897 = vrot.slane %v1895, 4
        %v1898 = vor.u32 %v1897, %v1893
        %v1899 = vrot.slane %v1898, 4
        %v1901 = vshll.u32 %v1718, 16
        %v1903 = vrot.slane %v1901, 5
        %v1904 = vsel %vm1349, %v1899, %v1903
        %v1906 = vshrl.u32 %v1719, 16
        %v1908 = vrot.slane %v1906, 4
        %v1909 = vshll.u32 %v1719, 16
        %v1911 = vrot.slane %v1909, 5
        %v1912 = vor.u32 %v1908, %v1911
        %v1913 = vrot.slane %v1912, 4
        %v1915 = vshll.u32 %v1720, 16
        %v1917 = vrot.slane %v1915, 5
        %v1918 = vsel %vm1349, %v1913, %v1917
        %v1919 = vshrl.u32 %v1720, 16
        %v1921 = vrot.slane %v1919, 4
        %v1922 = vor.u32 %v1921, %v1917
        %v1923 = vrot.slane %v1922, 4
        %v1925 = vshll.u32 %v1721, 16
        %v1927 = vrot.slane %v1925, 5
        %v1928 = vsel %vm1349, %v1923, %v1927
        %v1929 = vshrl.u32 %v1721, 16
        %v1931 = vrot.slane %v1929, 4
        %v1932 = vor.u32 %v1931, %v1927
        %v1933 = vrot.slane %v1932, 4
        %v1935 = vshll.u32 %v1722, 16
        %v1937 = vrot.slane %v1935, 5
        %v1938 = vsel %vm1349, %v1933, %v1937
        %v1939 = vshrl.u32 %v1722, 16
        %v1941 = vrot.slane %v1939, 4
        %v1942 = vor.u32 %v1941, %v1937
        %v1943 = vrot.slane %v1942, 4
        %v1945 = vshll.u32 %v1723, 16
        %v1947 = vrot.slane %v1945, 5
        %v1948 = vsel %vm1349, %v1943, %v1947
        %v1950 = vshrl.u32 %v1724, 16
        %v1952 = vrot.slane %v1950, 4
        %v1953 = vshll.u32 %v1724, 16
        %v1955 = vrot.slane %v1953, 5
        %v1956 = vor.u32 %v1952, %v1955
        %v1957 = vrot.slane %v1956, 4
        %v1959 = vshll.u32 %v1725, 16
        %v1961 = vrot.slane %v1959, 5
        %v1962 = vsel %vm1349, %v1957, %v1961
        %v1963 = vshrl.u32 %v1725, 16
        %v1965 = vrot.slane %v1963, 4
        %v1966 = vor.u32 %v1965, %v1961
        %v1967 = vrot.slane %v1966, 4
        %v1969 = vshll.u32 %v1726, 16
        %v1971 = vrot.slane %v1969, 5
        %v1972 = vsel %vm1349, %v1967, %v1971
        %v1973 = vshrl.u32 %v1726, 16
        %v1975 = vrot.slane %v1973, 4
        %v1976 = vor.u32 %v1975, %v1971
        %v1977 = vrot.slane %v1976, 4
        %v1979 = vshll.u32 %v1727, 16
        %v1981 = vrot.slane %v1979, 5
        %v1982 = vsel %vm1349, %v1977, %v1981
        %v1983 = vshrl.u32 %v1727, 16
        %v1985 = vrot.slane %v1983, 4
        %v1986 = vor.u32 %v1985, %v1981
        %v1987 = vrot.slane %v1986, 4
        %v1989 = vshll.u32 %v1728, 16
        %v1991 = vrot.slane %v1989, 5
        %v1992 = vsel %vm1349, %v1987, %v1991
        %v1993 = vunpack.c.l.b16 %v1742
        %v1994 = vunpack.c.l.b16 %v1752
        %v1995 = vunpack.c.l.b16 %v1762
        %v1996 = vunpack.c.l.b16 %v1772
        %v1997 = vunpack.c.l.b16 %v1786
        %v1998 = vunpack.c.l.b16 %v1796
        %v1999 = vunpack.c.l.b16 %v1806
        %v2000 = vunpack.c.l.b16 %v1816
        %v2001 = vunpack.c.l.b16 %v1830
        %v2002 = vunpack.c.l.b16 %v1840
        %v2003 = vunpack.c.l.b16 %v1850
        %v2004 = vunpack.c.l.b16 %v1860
        %v2005 = vunpack.c.l.b16 %v1874
        %v2006 = vunpack.c.l.b16 %v1884
        %v2007 = vunpack.c.l.b16 %v1894
        %v2008 = vunpack.c.l.b16 %v1904
        %v2009 = vunpack.c.l.b16 %v1918
        %v2010 = vunpack.c.l.b16 %v1928
        %v2011 = vunpack.c.l.b16 %v1938
        %v2012 = vunpack.c.l.b16 %v1948
        %v2013 = vunpack.c.l.b16 %v1962
        %v2014 = vunpack.c.l.b16 %v1972
        %v2015 = vunpack.c.l.b16 %v1982
        %v2016 = vunpack.c.l.b16 %v1992
        %v2017 = vpack.c.b16 %v1994, %v1993
        %v2018 = vpack.c.b16 %v1996, %v1995
        %v2019 = vpack.c.b16 %v1998, %v1997
        %v2020 = vpack.c.b16 %v2000, %v1999
        %v2021 = vpack.c.b16 %v2002, %v2001
        %v2022 = vpack.c.b16 %v2004, %v2003
        %v2023 = vpack.c.b16 %v2006, %v2005
        %v2024 = vpack.c.b16 %v2008, %v2007
        %v2025 = vpack.c.b16 %v2010, %v2009
        %v2026 = vpack.c.b16 %v2012, %v2011
        %v2027 = vpack.c.b16 %v2014, %v2013
        %v2028 = vpack.c.b16 %v2016, %v2015
        %2029 = vrot.lane.b32.xlu0 %v2017, 48
        %v2030 = vpop.permute.xlu0 %2029
        %2031 = vrot.lane.b32.xlu0 %v2018, 48
        %v2032 = vpop.permute.xlu0 %2031
        %2033 = vrot.lane.b32.xlu0 %v2019, 48
        %v2034 = vpop.permute.xlu0 %2033
        %2035 = vrot.lane.b32.xlu0 %v2020, 48
        %v2036 = vpop.permute.xlu0 %2035
        %2037 = vrot.lane.b32.xlu0 %v2021, 48
        %v2038 = vpop.permute.xlu0 %2037
        %2039 = vrot.lane.b32.xlu0 %v2022, 48
        %v2040 = vpop.permute.xlu0 %2039
        %2041 = vrot.lane.b32.xlu0 %v2023, 48
        %v2042 = vpop.permute.xlu0 %2041
        %2043 = vrot.lane.b32.xlu0 %v2024, 48
        %v2044 = vpop.permute.xlu0 %2043
        %2045 = vrot.lane.b32.xlu0 %v2025, 48
        %v2046 = vpop.permute.xlu0 %2045
        %2047 = vrot.lane.b32.xlu0 %v2026, 48
        %v2048 = vpop.permute.xlu0 %2047
        %2049 = vrot.lane.b32.xlu0 %v2027, 48
        %v2050 = vpop.permute.xlu0 %2049
        %2051 = vrot.lane.b32.xlu0 %v2028, 48
        %v2052 = vpop.permute.xlu0 %2051
        %vm2065 = vcmask 523648
        %2066 = vst.msk [vmem:[#allocation3] sm:$0xff] %vm2065, %v2030
        %2067 = vst.msk [vmem:[#allocation3 + $0x10] sm:$0xff] %vm2065, %v2032
        %2068 = vst.msk [vmem:[#allocation3 + $0x20] sm:$0xff] %vm2065, %v2034
        %2069 = vst.msk [vmem:[#allocation3 + $0x30] sm:$0xff] %vm2065, %v2036
        %2070 = vst.msk [vmem:[#allocation3 + $0x40] sm:$0xff] %vm2065, %v2038
        %2071 = vst.msk [vmem:[#allocation3 + $0x50] sm:$0xff] %vm2065, %v2040
        %2072 = vst.msk [vmem:[#allocation3 + $0x60] sm:$0xff] %vm2065, %v2042
        %2073 = vst.msk [vmem:[#allocation3 + $0x70] sm:$0xff] %vm2065, %v2044
        %2074 = vst.msk [vmem:[#allocation3 + $0x80] sm:$0xff] %vm2065, %v2046
        %2075 = vst.msk [vmem:[#allocation3 + $0x90] sm:$0xff] %vm2065, %v2048
        %2076 = vst.msk [vmem:[#allocation3 + $0xa0] sm:$0xff] %vm2065, %v2050
        %2077 = vst.msk [vmem:[#allocation3 + $0xb0] sm:$0xff] %vm2065, %v2052
        %v2078 = vld [vmem:[#allocation2] sm:$0xe]
        %v2079 = vld [vmem:[#allocation2 + $0x4] sm:$0xf]
        %v2080 = vld [vmem:[#allocation2 + $0x8] sm:$0xf]
        %v2081 = vld [vmem:[#allocation2 + $0xc] sm:$0xf]
        %v2082 = vld [vmem:[#allocation2 + $0x10] sm:$0x1]
        %v2083 = vld [vmem:[#allocation2 + $0x28] sm:$0xe]
        %v2084 = vld [vmem:[#allocation2 + $0x2c] sm:$0xf]
        %v2085 = vld [vmem:[#allocation2 + $0x30] sm:$0xf]
        %v2086 = vld [vmem:[#allocation2 + $0x34] sm:$0xf]
        %v2087 = vld [vmem:[#allocation2 + $0x38] sm:$0x1]
        %v2088 = vld [vmem:[#allocation2 + $0x50] sm:$0xe]
        %v2089 = vld [vmem:[#allocation2 + $0x54] sm:$0xf]
        %v2090 = vld [vmem:[#allocation2 + $0x58] sm:$0xf]
        %v2091 = vld [vmem:[#allocation2 + $0x5c] sm:$0xf]
        %v2092 = vld [vmem:[#allocation2 + $0x60] sm:$0x1]
        %v2093 = vld [vmem:[#allocation2 + $0x78] sm:$0xe]
        %v2094 = vld [vmem:[#allocation2 + $0x7c] sm:$0xf]
        %v2095 = vld [vmem:[#allocation2 + $0x80] sm:$0xf]
        %v2096 = vld [vmem:[#allocation2 + $0x84] sm:$0xf]
        %v2097 = vld [vmem:[#allocation2 + $0x88] sm:$0x1]
        %v2098 = vld [vmem:[#allocation2 + $0xa0] sm:$0xe]
        %v2099 = vld [vmem:[#allocation2 + $0xa4] sm:$0xf]
        %v2100 = vld [vmem:[#allocation2 + $0xa8] sm:$0xf]
        %v2101 = vld [vmem:[#allocation2 + $0xac] sm:$0xf]
        %v2102 = vld [vmem:[#allocation2 + $0xb0] sm:$0x1]
        %v2103 = vld [vmem:[#allocation2 + $0xc8] sm:$0xe]
        %v2104 = vld [vmem:[#allocation2 + $0xcc] sm:$0xf]
        %v2105 = vld [vmem:[#allocation2 + $0xd0] sm:$0xf]
        %v2106 = vld [vmem:[#allocation2 + $0xd4] sm:$0xf]
        %v2107 = vld [vmem:[#allocation2 + $0xd8] sm:$0x1]
        %vm2138 = vcmask 1042432
        %vm2139 = vcmask 1046532
        %vm2140 = vmor %vm2138, %vm2139
        %v2141 = vrot.slane %v2078, 5
        %v2142 = vrot.slane %v2141, 4
        %v2143 = vrot.slane %v2079, 5
        %v2144 = vsel %vm2140, %v2142, %v2143
        %v2145 = vrot.slane %v2143, 4
        %v2146 = vrot.slane %v2080, 5
        %v2147 = vsel %vm2140, %v2145, %v2146
        %v2148 = vrot.slane %v2146, 4
        %v2149 = vrot.slane %v2081, 5
        %v2150 = vsel %vm2140, %v2148, %v2149
        %v2151 = vrot.slane %v2149, 4
        %v2152 = vrot.slane %v2082, 5
        %v2153 = vsel %vm2140, %v2151, %v2152
        %v2154 = vrot.slane %v2083, 5
        %v2155 = vrot.slane %v2154, 4
        %v2156 = vrot.slane %v2084, 5
        %v2157 = vsel %vm2140, %v2155, %v2156
        %v2158 = vrot.slane %v2156, 4
        %v2159 = vrot.slane %v2085, 5
        %v2160 = vsel %vm2140, %v2158, %v2159
        %v2161 = vrot.slane %v2159, 4
        %v2162 = vrot.slane %v2086, 5
        %v2163 = vsel %vm2140, %v2161, %v2162
        %v2164 = vrot.slane %v2162, 4
        %v2165 = vrot.slane %v2087, 5
        %v2166 = vsel %vm2140, %v2164, %v2165
        %v2167 = vrot.slane %v2088, 5
        %v2168 = vrot.slane %v2167, 4
        %v2169 = vrot.slane %v2089, 5
        %v2170 = vsel %vm2140, %v2168, %v2169
        %v2171 = vrot.slane %v2169, 4
        %v2172 = vrot.slane %v2090, 5
        %v2173 = vsel %vm2140, %v2171, %v2172
        %v2174 = vrot.slane %v2172, 4
        %v2175 = vrot.slane %v2091, 5
        %v2176 = vsel %vm2140, %v2174, %v2175
        %v2177 = vrot.slane %v2175, 4
        %v2178 = vrot.slane %v2092, 5
        %v2179 = vsel %vm2140, %v2177, %v2178
        %v2180 = vrot.slane %v2093, 5
        %v2181 = vrot.slane %v2180, 4
        %v2182 = vrot.slane %v2094, 5
        %v2183 = vsel %vm2140, %v2181, %v2182
        %v2184 = vrot.slane %v2182, 4
        %v2185 = vrot.slane %v2095, 5
        %v2186 = vsel %vm2140, %v2184, %v2185
        %v2187 = vrot.slane %v2185, 4
        %v2188 = vrot.slane %v2096, 5
        %v2189 = vsel %vm2140, %v2187, %v2188
        %v2190 = vrot.slane %v2188, 4
        %v2191 = vrot.slane %v2097, 5
        %v2192 = vsel %vm2140, %v2190, %v2191
        %v2193 = vrot.slane %v2098, 5
        %v2194 = vrot.slane %v2193, 4
        %v2195 = vrot.slane %v2099, 5
        %v2196 = vsel %vm2140, %v2194, %v2195
        %v2197 = vrot.slane %v2195, 4
        %v2198 = vrot.slane %v2100, 5
        %v2199 = vsel %vm2140, %v2197, %v2198
        %v2200 = vrot.slane %v2198, 4
        %v2201 = vrot.slane %v2101, 5
        %v2202 = vsel %vm2140, %v2200, %v2201
        %v2203 = vrot.slane %v2201, 4
        %v2204 = vrot.slane %v2102, 5
        %v2205 = vsel %vm2140, %v2203, %v2204
        %v2206 = vrot.slane %v2103, 5
        %v2207 = vrot.slane %v2206, 4
        %v2208 = vrot.slane %v2104, 5
        %v2209 = vsel %vm2140, %v2207, %v2208
        %v2210 = vrot.slane %v2208, 4
        %v2211 = vrot.slane %v2105, 5
        %v2212 = vsel %vm2140, %v2210, %v2211
        %v2213 = vrot.slane %v2211, 4
        %v2214 = vrot.slane %v2106, 5
        %v2215 = vsel %vm2140, %v2213, %v2214
        %v2216 = vrot.slane %v2214, 4
        %v2217 = vrot.slane %v2107, 5
        %v2218 = vsel %vm2140, %v2216, %v2217
        %v2219 = vunpack.c.l.b16 %v2144
        %v2220 = vunpack.c.l.b16 %v2147
        %v2221 = vunpack.c.l.b16 %v2150
        %v2222 = vunpack.c.l.b16 %v2153
        %v2223 = vunpack.c.l.b16 %v2157
        %v2224 = vunpack.c.l.b16 %v2160
        %v2225 = vunpack.c.l.b16 %v2163
        %v2226 = vunpack.c.l.b16 %v2166
        %v2227 = vunpack.c.l.b16 %v2170
        %v2228 = vunpack.c.l.b16 %v2173
        %v2229 = vunpack.c.l.b16 %v2176
        %v2230 = vunpack.c.l.b16 %v2179
        %v2231 = vunpack.c.l.b16 %v2183
        %v2232 = vunpack.c.l.b16 %v2186
        %v2233 = vunpack.c.l.b16 %v2189
        %v2234 = vunpack.c.l.b16 %v2192
        %v2235 = vunpack.c.l.b16 %v2196
        %v2236 = vunpack.c.l.b16 %v2199
        %v2237 = vunpack.c.l.b16 %v2202
        %v2238 = vunpack.c.l.b16 %v2205
        %v2239 = vunpack.c.l.b16 %v2209
        %v2240 = vunpack.c.l.b16 %v2212
        %v2241 = vunpack.c.l.b16 %v2215
        %v2242 = vunpack.c.l.b16 %v2218
        %v2243 = vpack.c.b16 %v2220, %v2219
        %v2244 = vpack.c.b16 %v2222, %v2221
        %v2245 = vpack.c.b16 %v2224, %v2223
        %v2246 = vpack.c.b16 %v2226, %v2225
        %v2247 = vpack.c.b16 %v2228, %v2227
        %v2248 = vpack.c.b16 %v2230, %v2229
        %v2249 = vpack.c.b16 %v2232, %v2231
        %v2250 = vpack.c.b16 %v2234, %v2233
        %v2251 = vpack.c.b16 %v2236, %v2235
        %v2252 = vpack.c.b16 %v2238, %v2237
        %v2253 = vpack.c.b16 %v2240, %v2239
        %v2254 = vpack.c.b16 %v2242, %v2241
        %2255 = vrot.lane.b32.xlu0 %v2243, 64
        %v2256 = vpop.permute.xlu0 %2255
        %2257 = vrot.lane.b32.xlu0 %v2244, 64
        %v2258 = vpop.permute.xlu0 %2257
        %2259 = vrot.lane.b32.xlu0 %v2245, 64
        %v2260 = vpop.permute.xlu0 %2259
        %2261 = vrot.lane.b32.xlu0 %v2246, 64
        %v2262 = vpop.permute.xlu0 %2261
        %2263 = vrot.lane.b32.xlu0 %v2247, 64
        %v2264 = vpop.permute.xlu0 %2263
        %2265 = vrot.lane.b32.xlu0 %v2248, 64
        %v2266 = vpop.permute.xlu0 %2265
        %2267 = vrot.lane.b32.xlu0 %v2249, 64
        %v2268 = vpop.permute.xlu0 %2267
        %2269 = vrot.lane.b32.xlu0 %v2250, 64
        %v2270 = vpop.permute.xlu0 %2269
        %2271 = vrot.lane.b32.xlu0 %v2251, 64
        %v2272 = vpop.permute.xlu0 %2271
        %2273 = vrot.lane.b32.xlu0 %v2252, 64
        %v2274 = vpop.permute.xlu0 %2273
        %2275 = vrot.lane.b32.xlu0 %v2253, 64
        %v2276 = vpop.permute.xlu0 %2275
        %2277 = vrot.lane.b32.xlu0 %v2254, 64
        %v2278 = vpop.permute.xlu0 %2277
        %vm2291 = vcmask 654848
        %2292 = vst.msk [vmem:[#allocation3] sm:$0xff] %vm2291, %v2256
        %2293 = vst.msk [vmem:[#allocation3 + $0x10] sm:$0xff] %vm2291, %v2258
        %2294 = vst.msk [vmem:[#allocation3 + $0x20] sm:$0xff] %vm2291, %v2260
        %2295 = vst.msk [vmem:[#allocation3 + $0x30] sm:$0xff] %vm2291, %v2262
        %2296 = vst.msk [vmem:[#allocation3 + $0x40] sm:$0xff] %vm2291, %v2264
        %2297 = vst.msk [vmem:[#allocation3 + $0x50] sm:$0xff] %vm2291, %v2266
        %2298 = vst.msk [vmem:[#allocation3 + $0x60] sm:$0xff] %vm2291, %v2268
        %2299 = vst.msk [vmem:[#allocation3 + $0x70] sm:$0xff] %vm2291, %v2270
        %2300 = vst.msk [vmem:[#allocation3 + $0x80] sm:$0xff] %vm2291, %v2272
        %2301 = vst.msk [vmem:[#allocation3 + $0x90] sm:$0xff] %vm2291, %v2274
        %2302 = vst.msk [vmem:[#allocation3 + $0xa0] sm:$0xff] %vm2291, %v2276
        %2303 = vst.msk [vmem:[#allocation3 + $0xb0] sm:$0xff] %vm2291, %v2278
        %v2304 = vld [vmem:[%s1183] sm:$0xe]
        %v2305 = vld [vmem:[%s1183 + $0x4] sm:$0xf]
        %v2306 = vld [vmem:[%s1183 + $0x8] sm:$0xf]
        %v2307 = vld [vmem:[%s1183 + $0xc] sm:$0xf]
        %v2308 = vld [vmem:[%s1183 + $0x10] sm:$0x1]
        %v2309 = vld [vmem:[%s1183 + $0x28] sm:$0xe]
        %v2310 = vld [vmem:[%s1183 + $0x2c] sm:$0xf]
        %v2311 = vld [vmem:[%s1183 + $0x30] sm:$0xf]
        %v2312 = vld [vmem:[%s1183 + $0x34] sm:$0xf]
        %v2313 = vld [vmem:[%s1183 + $0x38] sm:$0x1]
        %v2314 = vld [vmem:[%s1183 + $0x50] sm:$0xe]
        %v2315 = vld [vmem:[%s1183 + $0x54] sm:$0xf]
        %v2316 = vld [vmem:[%s1183 + $0x58] sm:$0xf]
        %v2317 = vld [vmem:[%s1183 + $0x5c] sm:$0xf]
        %v2318 = vld [vmem:[%s1183 + $0x60] sm:$0x1]
        %v2319 = vld [vmem:[%s1183 + $0x78] sm:$0xe]
        %v2320 = vld [vmem:[%s1183 + $0x7c] sm:$0xf]
        %v2321 = vld [vmem:[%s1183 + $0x80] sm:$0xf]
        %v2322 = vld [vmem:[%s1183 + $0x84] sm:$0xf]
        %v2323 = vld [vmem:[%s1183 + $0x88] sm:$0x1]
        %v2324 = vld [vmem:[%s1183 + $0xa0] sm:$0xe]
        %v2325 = vld [vmem:[%s1183 + $0xa4] sm:$0xf]
        %v2326 = vld [vmem:[%s1183 + $0xa8] sm:$0xf]
        %v2327 = vld [vmem:[%s1183 + $0xac] sm:$0xf]
        %v2328 = vld [vmem:[%s1183 + $0xb0] sm:$0x1]
        %v2329 = vld [vmem:[%s1183 + $0xc8] sm:$0xe]
        %v2330 = vld [vmem:[%s1183 + $0xcc] sm:$0xf]
        %v2331 = vld [vmem:[%s1183 + $0xd0] sm:$0xf]
        %v2332 = vld [vmem:[%s1183 + $0xd4] sm:$0xf]
        %v2333 = vld [vmem:[%s1183 + $0xd8] sm:$0x1]
        %v2364 = vrot.slane %v2304, 5
        %v2365 = vrot.slane %v2364, 4
        %v2366 = vrot.slane %v2305, 5
        %v2367 = vsel %vm2140, %v2365, %v2366
        %v2368 = vrot.slane %v2366, 4
        %v2369 = vrot.slane %v2306, 5
        %v2370 = vsel %vm2140, %v2368, %v2369
        %v2371 = vrot.slane %v2369, 4
        %v2372 = vrot.slane %v2307, 5
        %v2373 = vsel %vm2140, %v2371, %v2372
        %v2374 = vrot.slane %v2372, 4
        %v2375 = vrot.slane %v2308, 5
        %v2376 = vsel %vm2140, %v2374, %v2375
        %v2377 = vrot.slane %v2309, 5
        %v2378 = vrot.slane %v2377, 4
        %v2379 = vrot.slane %v2310, 5
        %v2380 = vsel %vm2140, %v2378, %v2379
        %v2381 = vrot.slane %v2379, 4
        %v2382 = vrot.slane %v2311, 5
        %v2383 = vsel %vm2140, %v2381, %v2382
        %v2384 = vrot.slane %v2382, 4
        %v2385 = vrot.slane %v2312, 5
        %v2386 = vsel %vm2140, %v2384, %v2385
        %v2387 = vrot.slane %v2385, 4
        %v2388 = vrot.slane %v2313, 5
        %v2389 = vsel %vm2140, %v2387, %v2388
        %v2390 = vrot.slane %v2314, 5
        %v2391 = vrot.slane %v2390, 4
        %v2392 = vrot.slane %v2315, 5
        %v2393 = vsel %vm2140, %v2391, %v2392
        %v2394 = vrot.slane %v2392, 4
        %v2395 = vrot.slane %v2316, 5
        %v2396 = vsel %vm2140, %v2394, %v2395
        %v2397 = vrot.slane %v2395, 4
        %v2398 = vrot.slane %v2317, 5
        %v2399 = vsel %vm2140, %v2397, %v2398
        %v2400 = vrot.slane %v2398, 4
        %v2401 = vrot.slane %v2318, 5
        %v2402 = vsel %vm2140, %v2400, %v2401
        %v2403 = vrot.slane %v2319, 5
        %v2404 = vrot.slane %v2403, 4
        %v2405 = vrot.slane %v2320, 5
        %v2406 = vsel %vm2140, %v2404, %v2405
        %v2407 = vrot.slane %v2405, 4
        %v2408 = vrot.slane %v2321, 5
        %v2409 = vsel %vm2140, %v2407, %v2408
        %v2410 = vrot.slane %v2408, 4
        %v2411 = vrot.slane %v2322, 5
        %v2412 = vsel %vm2140, %v2410, %v2411
        %v2413 = vrot.slane %v2411, 4
        %v2414 = vrot.slane %v2323, 5
        %v2415 = vsel %vm2140, %v2413, %v2414
        %v2416 = vrot.slane %v2324, 5
        %v2417 = vrot.slane %v2416, 4
        %v2418 = vrot.slane %v2325, 5
        %v2419 = vsel %vm2140, %v2417, %v2418
        %v2420 = vrot.slane %v2418, 4
        %v2421 = vrot.slane %v2326, 5
        %v2422 = vsel %vm2140, %v2420, %v2421
        %v2423 = vrot.slane %v2421, 4
        %v2424 = vrot.slane %v2327, 5
        %v2425 = vsel %vm2140, %v2423, %v2424
        %v2426 = vrot.slane %v2424, 4
        %v2427 = vrot.slane %v2328, 5
        %v2428 = vsel %vm2140, %v2426, %v2427
        %v2429 = vrot.slane %v2329, 5
        %v2430 = vrot.slane %v2429, 4
        %v2431 = vrot.slane %v2330, 5
        %v2432 = vsel %vm2140, %v2430, %v2431
        %v2433 = vrot.slane %v2431, 4
        %v2434 = vrot.slane %v2331, 5
        %v2435 = vsel %vm2140, %v2433, %v2434
        %v2436 = vrot.slane %v2434, 4
        %v2437 = vrot.slane %v2332, 5
        %v2438 = vsel %vm2140, %v2436, %v2437
        %v2439 = vrot.slane %v2437, 4
        %v2440 = vrot.slane %v2333, 5
        %v2441 = vsel %vm2140, %v2439, %v2440
        %v2442 = vunpack.c.l.b16 %v2367
        %v2443 = vunpack.c.l.b16 %v2370
        %v2444 = vunpack.c.l.b16 %v2373
        %v2445 = vunpack.c.l.b16 %v2376
        %v2446 = vunpack.c.l.b16 %v2380
        %v2447 = vunpack.c.l.b16 %v2383
        %v2448 = vunpack.c.l.b16 %v2386
        %v2449 = vunpack.c.l.b16 %v2389
        %v2450 = vunpack.c.l.b16 %v2393
        %v2451 = vunpack.c.l.b16 %v2396
        %v2452 = vunpack.c.l.b16 %v2399
        %v2453 = vunpack.c.l.b16 %v2402
        %v2454 = vunpack.c.l.b16 %v2406
        %v2455 = vunpack.c.l.b16 %v2409
        %v2456 = vunpack.c.l.b16 %v2412
        %v2457 = vunpack.c.l.b16 %v2415
        %v2458 = vunpack.c.l.b16 %v2419
        %v2459 = vunpack.c.l.b16 %v2422
        %v2460 = vunpack.c.l.b16 %v2425
        %v2461 = vunpack.c.l.b16 %v2428
        %v2462 = vunpack.c.l.b16 %v2432
        %v2463 = vunpack.c.l.b16 %v2435
        %v2464 = vunpack.c.l.b16 %v2438
        %v2465 = vunpack.c.l.b16 %v2441
        %v2466 = vpack.c.b16 %v2443, %v2442
        %v2467 = vpack.c.b16 %v2445, %v2444
        %v2468 = vpack.c.b16 %v2447, %v2446
        %v2469 = vpack.c.b16 %v2449, %v2448
        %v2470 = vpack.c.b16 %v2451, %v2450
        %v2471 = vpack.c.b16 %v2453, %v2452
        %v2472 = vpack.c.b16 %v2455, %v2454
        %v2473 = vpack.c.b16 %v2457, %v2456
        %v2474 = vpack.c.b16 %v2459, %v2458
        %v2475 = vpack.c.b16 %v2461, %v2460
        %v2476 = vpack.c.b16 %v2463, %v2462
        %v2477 = vpack.c.b16 %v2465, %v2464
        %2478 = vrot.lane.b32.xlu0 %v2466, 80
        %v2479 = vpop.permute.xlu0 %2478
        %2480 = vrot.lane.b32.xlu0 %v2467, 80
        %v2481 = vpop.permute.xlu0 %2480
        %2482 = vrot.lane.b32.xlu0 %v2468, 80
        %v2483 = vpop.permute.xlu0 %2482
        %2484 = vrot.lane.b32.xlu0 %v2469, 80
        %v2485 = vpop.permute.xlu0 %2484
        %2486 = vrot.lane.b32.xlu0 %v2470, 80
        %v2487 = vpop.permute.xlu0 %2486
        %2488 = vrot.lane.b32.xlu0 %v2471, 80
        %v2489 = vpop.permute.xlu0 %2488
        %2490 = vrot.lane.b32.xlu0 %v2472, 80
        %v2491 = vpop.permute.xlu0 %2490
        %2492 = vrot.lane.b32.xlu0 %v2473, 80
        %v2493 = vpop.permute.xlu0 %2492
        %2494 = vrot.lane.b32.xlu0 %v2474, 80
        %v2495 = vpop.permute.xlu0 %2494
        %2496 = vrot.lane.b32.xlu0 %v2475, 80
        %v2497 = vpop.permute.xlu0 %2496
        %2498 = vrot.lane.b32.xlu0 %v2476, 80
        %v2499 = vpop.permute.xlu0 %2498
        %2500 = vrot.lane.b32.xlu0 %v2477, 80
        %v2501 = vpop.permute.xlu0 %2500
        %vm2514 = vcmask 786048
        %2515 = vst.msk [vmem:[#allocation3] sm:$0xff] %vm2514, %v2479
        %2516 = vst.msk [vmem:[#allocation3 + $0x10] sm:$0xff] %vm2514, %v2481
        %2517 = vst.msk [vmem:[#allocation3 + $0x20] sm:$0xff] %vm2514, %v2483
        %2518 = vst.msk [vmem:[#allocation3 + $0x30] sm:$0xff] %vm2514, %v2485
        %2519 = vst.msk [vmem:[#allocation3 + $0x40] sm:$0xff] %vm2514, %v2487
        %2520 = vst.msk [vmem:[#allocation3 + $0x50] sm:$0xff] %vm2514, %v2489
        %2521 = vst.msk [vmem:[#allocation3 + $0x60] sm:$0xff] %vm2514, %v2491
        %2522 = vst.msk [vmem:[#allocation3 + $0x70] sm:$0xff] %vm2514, %v2493
        %2523 = vst.msk [vmem:[#allocation3 + $0x80] sm:$0xff] %vm2514, %v2495
        %2524 = vst.msk [vmem:[#allocation3 + $0x90] sm:$0xff] %vm2514, %v2497
        %2525 = vst.msk [vmem:[#allocation3 + $0xa0] sm:$0xff] %vm2514, %v2499
        %2526 = vst.msk [vmem:[#allocation3 + $0xb0] sm:$0xff] %vm2514, %v2501
        %v2527 = vld [vmem:[#allocation2] sm:$0xe]
        %v2528 = vld [vmem:[#allocation2 + $0x4] sm:$0xf]
        %v2529 = vld [vmem:[#allocation2 + $0x8] sm:$0xf]
        %v2530 = vld [vmem:[#allocation2 + $0xc] sm:$0xf]
        %v2531 = vld [vmem:[#allocation2 + $0x10] sm:$0x3]
        %v2532 = vld [vmem:[#allocation2 + $0x28] sm:$0xe]
        %v2533 = vld [vmem:[#allocation2 + $0x2c] sm:$0xf]
        %v2534 = vld [vmem:[#allocation2 + $0x30] sm:$0xf]
        %v2535 = vld [vmem:[#allocation2 + $0x34] sm:$0xf]
        %v2536 = vld [vmem:[#allocation2 + $0x38] sm:$0x3]
        %v2537 = vld [vmem:[#allocation2 + $0x50] sm:$0xe]
        %v2538 = vld [vmem:[#allocation2 + $0x54] sm:$0xf]
        %v2539 = vld [vmem:[#allocation2 + $0x58] sm:$0xf]
        %v2540 = vld [vmem:[#allocation2 + $0x5c] sm:$0xf]
        %v2541 = vld [vmem:[#allocation2 + $0x60] sm:$0x3]
        %v2542 = vld [vmem:[#allocation2 + $0x78] sm:$0xe]
        %v2543 = vld [vmem:[#allocation2 + $0x7c] sm:$0xf]
        %v2544 = vld [vmem:[#allocation2 + $0x80] sm:$0xf]
        %v2545 = vld [vmem:[#allocation2 + $0x84] sm:$0xf]
        %v2546 = vld [vmem:[#allocation2 + $0x88] sm:$0x3]
        %v2547 = vld [vmem:[#allocation2 + $0xa0] sm:$0xe]
        %v2548 = vld [vmem:[#allocation2 + $0xa4] sm:$0xf]
        %v2549 = vld [vmem:[#allocation2 + $0xa8] sm:$0xf]
        %v2550 = vld [vmem:[#allocation2 + $0xac] sm:$0xf]
        %v2551 = vld [vmem:[#allocation2 + $0xb0] sm:$0x3]
        %v2552 = vld [vmem:[#allocation2 + $0xc8] sm:$0xe]
        %v2553 = vld [vmem:[#allocation2 + $0xcc] sm:$0xf]
        %v2554 = vld [vmem:[#allocation2 + $0xd0] sm:$0xf]
        %v2555 = vld [vmem:[#allocation2 + $0xd4] sm:$0xf]
        %v2556 = vld [vmem:[#allocation2 + $0xd8] sm:$0x3]
        %vm2557 = vsmask.f32 2304
        %vm2558 = vsmask.f32 6416
        %vm2559 = vmor %vm2557, %vm2558
        %v2561 = vshrl.u32 %v2527, 16
        %v2563 = vrot.slane %v2561, 5
        %v2564 = vshll.u32 %v2527, 16
        %v2566 = vrot.slane %v2564, 6
        %v2567 = vor.u32 %v2563, %v2566
        %v2568 = vrot.slane %v2567, 4
        %v2570 = vshrl.u32 %v2528, 16
        %v2572 = vrot.slane %v2570, 5
        %v2573 = vshll.u32 %v2528, 16
        %v2575 = vrot.slane %v2573, 6
        %v2576 = vor.u32 %v2572, %v2575
        %v2577 = vsel %vm2559, %v2568, %v2576
        %v2578 = vrot.slane %v2576, 4
        %v2580 = vshrl.u32 %v2529, 16
        %v2582 = vrot.slane %v2580, 5
        %v2583 = vshll.u32 %v2529, 16
        %v2585 = vrot.slane %v2583, 6
        %v2586 = vor.u32 %v2582, %v2585
        %v2587 = vsel %vm2559, %v2578, %v2586
        %v2588 = vrot.slane %v2586, 4
        %v2590 = vshrl.u32 %v2530, 16
        %v2592 = vrot.slane %v2590, 5
        %v2593 = vshll.u32 %v2530, 16
        %v2595 = vrot.slane %v2593, 6
        %v2596 = vor.u32 %v2592, %v2595
        %v2597 = vsel %vm2559, %v2588, %v2596
        %v2598 = vrot.slane %v2596, 4
        %v2600 = vshrl.u32 %v2531, 16
        %v2602 = vrot.slane %v2600, 5
        %v2603 = vshll.u32 %v2531, 16
        %v2605 = vrot.slane %v2603, 6
        %v2606 = vor.u32 %v2602, %v2605
        %v2607 = vsel %vm2559, %v2598, %v2606
        %v2609 = vshrl.u32 %v2532, 16
        %v2611 = vrot.slane %v2609, 5
        %v2612 = vshll.u32 %v2532, 16
        %v2614 = vrot.slane %v2612, 6
        %v2615 = vor.u32 %v2611, %v2614
        %v2616 = vrot.slane %v2615, 4
        %v2618 = vshrl.u32 %v2533, 16
        %v2620 = vrot.slane %v2618, 5
        %v2621 = vshll.u32 %v2533, 16
        %v2623 = vrot.slane %v2621, 6
        %v2624 = vor.u32 %v2620, %v2623
        %v2625 = vsel %vm2559, %v2616, %v2624
        %v2626 = vrot.slane %v2624, 4
        %v2628 = vshrl.u32 %v2534, 16
        %v2630 = vrot.slane %v2628, 5
        %v2631 = vshll.u32 %v2534, 16
        %v2633 = vrot.slane %v2631, 6
        %v2634 = vor.u32 %v2630, %v2633
        %v2635 = vsel %vm2559, %v2626, %v2634
        %v2636 = vrot.slane %v2634, 4
        %v2638 = vshrl.u32 %v2535, 16
        %v2640 = vrot.slane %v2638, 5
        %v2641 = vshll.u32 %v2535, 16
        %v2643 = vrot.slane %v2641, 6
        %v2644 = vor.u32 %v2640, %v2643
        %v2645 = vsel %vm2559, %v2636, %v2644
        %v2646 = vrot.slane %v2644, 4
        %v2648 = vshrl.u32 %v2536, 16
        %v2650 = vrot.slane %v2648, 5
        %v2651 = vshll.u32 %v2536, 16
        %v2653 = vrot.slane %v2651, 6
        %v2654 = vor.u32 %v2650, %v2653
        %v2655 = vsel %vm2559, %v2646, %v2654
        %v2657 = vshrl.u32 %v2537, 16
        %v2659 = vrot.slane %v2657, 5
        %v2660 = vshll.u32 %v2537, 16
        %v2662 = vrot.slane %v2660, 6
        %v2663 = vor.u32 %v2659, %v2662
        %v2664 = vrot.slane %v2663, 4
        %v2666 = vshrl.u32 %v2538, 16
        %v2668 = vrot.slane %v2666, 5
        %v2669 = vshll.u32 %v2538, 16
        %v2671 = vrot.slane %v2669, 6
        %v2672 = vor.u32 %v2668, %v2671
        %v2673 = vsel %vm2559, %v2664, %v2672
        %v2674 = vrot.slane %v2672, 4
        %v2676 = vshrl.u32 %v2539, 16
        %v2678 = vrot.slane %v2676, 5
        %v2679 = vshll.u32 %v2539, 16
        %v2681 = vrot.slane %v2679, 6
        %v2682 = vor.u32 %v2678, %v2681
        %v2683 = vsel %vm2559, %v2674, %v2682
        %v2684 = vrot.slane %v2682, 4
        %v2686 = vshrl.u32 %v2540, 16
        %v2688 = vrot.slane %v2686, 5
        %v2689 = vshll.u32 %v2540, 16
        %v2691 = vrot.slane %v2689, 6
        %v2692 = vor.u32 %v2688, %v2691
        %v2693 = vsel %vm2559, %v2684, %v2692
        %v2694 = vrot.slane %v2692, 4
        %v2696 = vshrl.u32 %v2541, 16
        %v2698 = vrot.slane %v2696, 5
        %v2699 = vshll.u32 %v2541, 16
        %v2701 = vrot.slane %v2699, 6
        %v2702 = vor.u32 %v2698, %v2701
        %v2703 = vsel %vm2559, %v2694, %v2702
        %v2705 = vshrl.u32 %v2542, 16
        %v2707 = vrot.slane %v2705, 5
        %v2708 = vshll.u32 %v2542, 16
        %v2710 = vrot.slane %v2708, 6
        %v2711 = vor.u32 %v2707, %v2710
        %v2712 = vrot.slane %v2711, 4
        %v2714 = vshrl.u32 %v2543, 16
        %v2716 = vrot.slane %v2714, 5
        %v2717 = vshll.u32 %v2543, 16
        %v2719 = vrot.slane %v2717, 6
        %v2720 = vor.u32 %v2716, %v2719
        %v2721 = vsel %vm2559, %v2712, %v2720
        %v2722 = vrot.slane %v2720, 4
        %v2724 = vshrl.u32 %v2544, 16
        %v2726 = vrot.slane %v2724, 5
        %v2727 = vshll.u32 %v2544, 16
        %v2729 = vrot.slane %v2727, 6
        %v2730 = vor.u32 %v2726, %v2729
        %v2731 = vsel %vm2559, %v2722, %v2730
        %v2732 = vrot.slane %v2730, 4
        %v2734 = vshrl.u32 %v2545, 16
        %v2736 = vrot.slane %v2734, 5
        %v2737 = vshll.u32 %v2545, 16
        %v2739 = vrot.slane %v2737, 6
        %v2740 = vor.u32 %v2736, %v2739
        %v2741 = vsel %vm2559, %v2732, %v2740
        %v2742 = vrot.slane %v2740, 4
        %v2744 = vshrl.u32 %v2546, 16
        %v2746 = vrot.slane %v2744, 5
        %v2747 = vshll.u32 %v2546, 16
        %v2749 = vrot.slane %v2747, 6
        %v2750 = vor.u32 %v2746, %v2749
        %v2751 = vsel %vm2559, %v2742, %v2750
        %v2753 = vshrl.u32 %v2547, 16
        %v2755 = vrot.slane %v2753, 5
        %v2756 = vshll.u32 %v2547, 16
        %v2758 = vrot.slane %v2756, 6
        %v2759 = vor.u32 %v2755, %v2758
        %v2760 = vrot.slane %v2759, 4
        %v2762 = vshrl.u32 %v2548, 16
        %v2764 = vrot.slane %v2762, 5
        %v2765 = vshll.u32 %v2548, 16
        %v2767 = vrot.slane %v2765, 6
        %v2768 = vor.u32 %v2764, %v2767
        %v2769 = vsel %vm2559, %v2760, %v2768
        %v2770 = vrot.slane %v2768, 4
        %v2772 = vshrl.u32 %v2549, 16
        %v2774 = vrot.slane %v2772, 5
        %v2775 = vshll.u32 %v2549, 16
        %v2777 = vrot.slane %v2775, 6
        %v2778 = vor.u32 %v2774, %v2777
        %v2779 = vsel %vm2559, %v2770, %v2778
        %v2780 = vrot.slane %v2778, 4
        %v2782 = vshrl.u32 %v2550, 16
        %v2784 = vrot.slane %v2782, 5
        %v2785 = vshll.u32 %v2550, 16
        %v2787 = vrot.slane %v2785, 6
        %v2788 = vor.u32 %v2784, %v2787
        %v2789 = vsel %vm2559, %v2780, %v2788
        %v2790 = vrot.slane %v2788, 4
        %v2792 = vshrl.u32 %v2551, 16
        %v2794 = vrot.slane %v2792, 5
        %v2795 = vshll.u32 %v2551, 16
        %v2797 = vrot.slane %v2795, 6
        %v2798 = vor.u32 %v2794, %v2797
        %v2799 = vsel %vm2559, %v2790, %v2798
        %v2801 = vshrl.u32 %v2552, 16
        %v2803 = vrot.slane %v2801, 5
        %v2804 = vshll.u32 %v2552, 16
        %v2806 = vrot.slane %v2804, 6
        %v2807 = vor.u32 %v2803, %v2806
        %v2808 = vrot.slane %v2807, 4
        %v2810 = vshrl.u32 %v2553, 16
        %v2812 = vrot.slane %v2810, 5
        %v2813 = vshll.u32 %v2553, 16
        %v2815 = vrot.slane %v2813, 6
        %v2816 = vor.u32 %v2812, %v2815
        %v2817 = vsel %vm2559, %v2808, %v2816
        %v2818 = vrot.slane %v2816, 4
        %v2820 = vshrl.u32 %v2554, 16
        %v2822 = vrot.slane %v2820, 5
        %v2823 = vshll.u32 %v2554, 16
        %v2825 = vrot.slane %v2823, 6
        %v2826 = vor.u32 %v2822, %v2825
        %v2827 = vsel %vm2559, %v2818, %v2826
        %v2828 = vrot.slane %v2826, 4
        %v2830 = vshrl.u32 %v2555, 16
        %v2832 = vrot.slane %v2830, 5
        %v2833 = vshll.u32 %v2555, 16
        %v2835 = vrot.slane %v2833, 6
        %v2836 = vor.u32 %v2832, %v2835
        %v2837 = vsel %vm2559, %v2828, %v2836
        %v2838 = vrot.slane %v2836, 4
        %v2840 = vshrl.u32 %v2556, 16
        %v2842 = vrot.slane %v2840, 5
        %v2843 = vshll.u32 %v2556, 16
        %v2845 = vrot.slane %v2843, 6
        %v2846 = vor.u32 %v2842, %v2845
        %v2847 = vsel %vm2559, %v2838, %v2846
        %v2848 = vunpack.c.l.b16 %v2577
        %v2849 = vunpack.c.l.b16 %v2587
        %v2850 = vunpack.c.l.b16 %v2597
        %v2851 = vunpack.c.l.b16 %v2607
        %v2852 = vunpack.c.l.b16 %v2625
        %v2853 = vunpack.c.l.b16 %v2635
        %v2854 = vunpack.c.l.b16 %v2645
        %v2855 = vunpack.c.l.b16 %v2655
        %v2856 = vunpack.c.l.b16 %v2673
        %v2857 = vunpack.c.l.b16 %v2683
        %v2858 = vunpack.c.l.b16 %v2693
        %v2859 = vunpack.c.l.b16 %v2703
        %v2860 = vunpack.c.l.b16 %v2721
        %v2861 = vunpack.c.l.b16 %v2731
        %v2862 = vunpack.c.l.b16 %v2741
        %v2863 = vunpack.c.l.b16 %v2751
        %v2864 = vunpack.c.l.b16 %v2769
        %v2865 = vunpack.c.l.b16 %v2779
        %v2866 = vunpack.c.l.b16 %v2789
        %v2867 = vunpack.c.l.b16 %v2799
        %v2868 = vunpack.c.l.b16 %v2817
        %v2869 = vunpack.c.l.b16 %v2827
        %v2870 = vunpack.c.l.b16 %v2837
        %v2871 = vunpack.c.l.b16 %v2847
        %v2872 = vpack.c.b16 %v2849, %v2848
        %v2873 = vpack.c.b16 %v2851, %v2850
        %v2874 = vpack.c.b16 %v2853, %v2852
        %v2875 = vpack.c.b16 %v2855, %v2854
        %v2876 = vpack.c.b16 %v2857, %v2856
        %v2877 = vpack.c.b16 %v2859, %v2858
        %v2878 = vpack.c.b16 %v2861, %v2860
        %v2879 = vpack.c.b16 %v2863, %v2862
        %v2880 = vpack.c.b16 %v2865, %v2864
        %v2881 = vpack.c.b16 %v2867, %v2866
        %v2882 = vpack.c.b16 %v2869, %v2868
        %v2883 = vpack.c.b16 %v2871, %v2870
        %2884 = vrot.lane.b32.xlu0 %v2872, 96
        %v2885 = vpop.permute.xlu0 %2884
        %2886 = vrot.lane.b32.xlu0 %v2873, 96
        %v2887 = vpop.permute.xlu0 %2886
        %2888 = vrot.lane.b32.xlu0 %v2874, 96
        %v2889 = vpop.permute.xlu0 %2888
        %2890 = vrot.lane.b32.xlu0 %v2875, 96
        %v2891 = vpop.permute.xlu0 %2890
        %2892 = vrot.lane.b32.xlu0 %v2876, 96
        %v2893 = vpop.permute.xlu0 %2892
        %2894 = vrot.lane.b32.xlu0 %v2877, 96
        %v2895 = vpop.permute.xlu0 %2894
        %2896 = vrot.lane.b32.xlu0 %v2878, 96
        %v2897 = vpop.permute.xlu0 %2896
        %2898 = vrot.lane.b32.xlu0 %v2879, 96
        %v2899 = vpop.permute.xlu0 %2898
        %2900 = vrot.lane.b32.xlu0 %v2880, 96
        %v2901 = vpop.permute.xlu0 %2900
        %2902 = vrot.lane.b32.xlu0 %v2881, 96
        %v2903 = vpop.permute.xlu0 %2902
        %2904 = vrot.lane.b32.xlu0 %v2882, 96
        %v2905 = vpop.permute.xlu0 %2904
        %2906 = vrot.lane.b32.xlu0 %v2883, 96
        %v2907 = vpop.permute.xlu0 %2906
        %vm2920 = vcmask 917248
        %2921 = vst.msk [vmem:[#allocation3] sm:$0xff] %vm2920, %v2885
        %2922 = vst.msk [vmem:[#allocation3 + $0x10] sm:$0xff] %vm2920, %v2887
        %2923 = vst.msk [vmem:[#allocation3 + $0x20] sm:$0xff] %vm2920, %v2889
        %2924 = vst.msk [vmem:[#allocation3 + $0x30] sm:$0xff] %vm2920, %v2891
        %2925 = vst.msk [vmem:[#allocation3 + $0x40] sm:$0xff] %vm2920, %v2893
        %2926 = vst.msk [vmem:[#allocation3 + $0x50] sm:$0xff] %vm2920, %v2895
        %2927 = vst.msk [vmem:[#allocation3 + $0x60] sm:$0xff] %vm2920, %v2897
        %2928 = vst.msk [vmem:[#allocation3 + $0x70] sm:$0xff] %vm2920, %v2899
        %2929 = vst.msk [vmem:[#allocation3 + $0x80] sm:$0xff] %vm2920, %v2901
        %2930 = vst.msk [vmem:[#allocation3 + $0x90] sm:$0xff] %vm2920, %v2903
        %2931 = vst.msk [vmem:[#allocation3 + $0xa0] sm:$0xff] %vm2920, %v2905
        %2932 = vst.msk [vmem:[#allocation3 + $0xb0] sm:$0xff] %vm2920, %v2907
        %v2933 = vld [vmem:[%s1183] sm:$0xe]
        %v2934 = vld [vmem:[%s1183 + $0x4] sm:$0xf]
        %v2935 = vld [vmem:[%s1183 + $0x8] sm:$0xf]
        %v2936 = vld [vmem:[%s1183 + $0xc] sm:$0xf]
        %v2937 = vld [vmem:[%s1183 + $0x10] sm:$0x3]
        %v2938 = vld [vmem:[%s1183 + $0x28] sm:$0xe]
        %v2939 = vld [vmem:[%s1183 + $0x2c] sm:$0xf]
        %v2940 = vld [vmem:[%s1183 + $0x30] sm:$0xf]
        %v2941 = vld [vmem:[%s1183 + $0x34] sm:$0xf]
        %v2942 = vld [vmem:[%s1183 + $0x38] sm:$0x3]
        %v2943 = vld [vmem:[%s1183 + $0x50] sm:$0xe]
        %v2944 = vld [vmem:[%s1183 + $0x54] sm:$0xf]
        %v2945 = vld [vmem:[%s1183 + $0x58] sm:$0xf]
        %v2946 = vld [vmem:[%s1183 + $0x5c] sm:$0xf]
        %v2947 = vld [vmem:[%s1183 + $0x60] sm:$0x3]
        %v2948 = vld [vmem:[%s1183 + $0x78] sm:$0xe]
        %v2949 = vld [vmem:[%s1183 + $0x7c] sm:$0xf]
        %v2950 = vld [vmem:[%s1183 + $0x80] sm:$0xf]
        %v2951 = vld [vmem:[%s1183 + $0x84] sm:$0xf]
        %v2952 = vld [vmem:[%s1183 + $0x88] sm:$0x3]
        %v2953 = vld [vmem:[%s1183 + $0xa0] sm:$0xe]
        %v2954 = vld [vmem:[%s1183 + $0xa4] sm:$0xf]
        %v2955 = vld [vmem:[%s1183 + $0xa8] sm:$0xf]
        %v2956 = vld [vmem:[%s1183 + $0xac] sm:$0xf]
        %v2957 = vld [vmem:[%s1183 + $0xb0] sm:$0x3]
        %v2958 = vld [vmem:[%s1183 + $0xc8] sm:$0xe]
        %v2959 = vld [vmem:[%s1183 + $0xcc] sm:$0xf]
        %v2960 = vld [vmem:[%s1183 + $0xd0] sm:$0xf]
        %v2961 = vld [vmem:[%s1183 + $0xd4] sm:$0xf]
        %v2962 = vld [vmem:[%s1183 + $0xd8] sm:$0x3]
        %v2964 = vshrl.u32 %v2933, 16
        %v2966 = vrot.slane %v2964, 5
        %v2967 = vshll.u32 %v2933, 16
        %v2969 = vrot.slane %v2967, 6
        %v2970 = vor.u32 %v2966, %v2969
        %v2971 = vrot.slane %v2970, 4
        %v2973 = vshrl.u32 %v2934, 16
        %v2975 = vrot.slane %v2973, 5
        %v2976 = vshll.u32 %v2934, 16
        %v2978 = vrot.slane %v2976, 6
        %v2979 = vor.u32 %v2975, %v2978
        %v2980 = vsel %vm2559, %v2971, %v2979
        %v2981 = vrot.slane %v2979, 4
        %v2983 = vshrl.u32 %v2935, 16
        %v2985 = vrot.slane %v2983, 5
        %v2986 = vshll.u32 %v2935, 16
        %v2988 = vrot.slane %v2986, 6
        %v2989 = vor.u32 %v2985, %v2988
        %v2990 = vsel %vm2559, %v2981, %v2989
        %v2991 = vrot.slane %v2989, 4
        %v2993 = vshrl.u32 %v2936, 16
        %v2995 = vrot.slane %v2993, 5
        %v2996 = vshll.u32 %v2936, 16
        %v2998 = vrot.slane %v2996, 6
        %v2999 = vor.u32 %v2995, %v2998
        %v3000 = vsel %vm2559, %v2991, %v2999
        %v3001 = vrot.slane %v2999, 4
        %v3003 = vshrl.u32 %v2937, 16
        %v3005 = vrot.slane %v3003, 5
        %v3006 = vshll.u32 %v2937, 16
        %v3008 = vrot.slane %v3006, 6
        %v3009 = vor.u32 %v3005, %v3008
        %v3010 = vsel %vm2559, %v3001, %v3009
        %v3012 = vshrl.u32 %v2938, 16
        %v3014 = vrot.slane %v3012, 5
        %v3015 = vshll.u32 %v2938, 16
        %v3017 = vrot.slane %v3015, 6
        %v3018 = vor.u32 %v3014, %v3017
        %v3019 = vrot.slane %v3018, 4
        %v3021 = vshrl.u32 %v2939, 16
        %v3023 = vrot.slane %v3021, 5
        %v3024 = vshll.u32 %v2939, 16
        %v3026 = vrot.slane %v3024, 6
        %v3027 = vor.u32 %v3023, %v3026
        %v3028 = vsel %vm2559, %v3019, %v3027
        %v3029 = vrot.slane %v3027, 4
        %v3031 = vshrl.u32 %v2940, 16
        %v3033 = vrot.slane %v3031, 5
        %v3034 = vshll.u32 %v2940, 16
        %v3036 = vrot.slane %v3034, 6
        %v3037 = vor.u32 %v3033, %v3036
        %v3038 = vsel %vm2559, %v3029, %v3037
        %v3039 = vrot.slane %v3037, 4
        %v3041 = vshrl.u32 %v2941, 16
        %v3043 = vrot.slane %v3041, 5
        %v3044 = vshll.u32 %v2941, 16
        %v3046 = vrot.slane %v3044, 6
        %v3047 = vor.u32 %v3043, %v3046
        %v3048 = vsel %vm2559, %v3039, %v3047
        %v3049 = vrot.slane %v3047, 4
        %v3051 = vshrl.u32 %v2942, 16
        %v3053 = vrot.slane %v3051, 5
        %v3054 = vshll.u32 %v2942, 16
        %v3056 = vrot.slane %v3054, 6
        %v3057 = vor.u32 %v3053, %v3056
        %v3058 = vsel %vm2559, %v3049, %v3057
        %v3060 = vshrl.u32 %v2943, 16
        %v3062 = vrot.slane %v3060, 5
        %v3063 = vshll.u32 %v2943, 16
        %v3065 = vrot.slane %v3063, 6
        %v3066 = vor.u32 %v3062, %v3065
        %v3067 = vrot.slane %v3066, 4
        %v3069 = vshrl.u32 %v2944, 16
        %v3071 = vrot.slane %v3069, 5
        %v3072 = vshll.u32 %v2944, 16
        %v3074 = vrot.slane %v3072, 6
        %v3075 = vor.u32 %v3071, %v3074
        %v3076 = vsel %vm2559, %v3067, %v3075
        %v3077 = vrot.slane %v3075, 4
        %v3079 = vshrl.u32 %v2945, 16
        %v3081 = vrot.slane %v3079, 5
        %v3082 = vshll.u32 %v2945, 16
        %v3084 = vrot.slane %v3082, 6
        %v3085 = vor.u32 %v3081, %v3084
        %v3086 = vsel %vm2559, %v3077, %v3085
        %v3087 = vrot.slane %v3085, 4
        %v3089 = vshrl.u32 %v2946, 16
        %v3091 = vrot.slane %v3089, 5
        %v3092 = vshll.u32 %v2946, 16
        %v3094 = vrot.slane %v3092, 6
        %v3095 = vor.u32 %v3091, %v3094
        %v3096 = vsel %vm2559, %v3087, %v3095
        %v3097 = vrot.slane %v3095, 4
        %v3099 = vshrl.u32 %v2947, 16
        %v3101 = vrot.slane %v3099, 5
        %v3102 = vshll.u32 %v2947, 16
        %v3104 = vrot.slane %v3102, 6
        %v3105 = vor.u32 %v3101, %v3104
        %v3106 = vsel %vm2559, %v3097, %v3105
        %v3108 = vshrl.u32 %v2948, 16
        %v3110 = vrot.slane %v3108, 5
        %v3111 = vshll.u32 %v2948, 16
        %v3113 = vrot.slane %v3111, 6
        %v3114 = vor.u32 %v3110, %v3113
        %v3115 = vrot.slane %v3114, 4
        %v3117 = vshrl.u32 %v2949, 16
        %v3119 = vrot.slane %v3117, 5
        %v3120 = vshll.u32 %v2949, 16
        %v3122 = vrot.slane %v3120, 6
        %v3123 = vor.u32 %v3119, %v3122
        %v3124 = vsel %vm2559, %v3115, %v3123
        %v3125 = vrot.slane %v3123, 4
        %v3127 = vshrl.u32 %v2950, 16
        %v3129 = vrot.slane %v3127, 5
        %v3130 = vshll.u32 %v2950, 16
        %v3132 = vrot.slane %v3130, 6
        %v3133 = vor.u32 %v3129, %v3132
        %v3134 = vsel %vm2559, %v3125, %v3133
        %v3135 = vrot.slane %v3133, 4
        %v3137 = vshrl.u32 %v2951, 16
        %v3139 = vrot.slane %v3137, 5
        %v3140 = vshll.u32 %v2951, 16
        %v3142 = vrot.slane %v3140, 6
        %v3143 = vor.u32 %v3139, %v3142
        %v3144 = vsel %vm2559, %v3135, %v3143
        %v3145 = vrot.slane %v3143, 4
        %v3147 = vshrl.u32 %v2952, 16
        %v3149 = vrot.slane %v3147, 5
        %v3150 = vshll.u32 %v2952, 16
        %v3152 = vrot.slane %v3150, 6
        %v3153 = vor.u32 %v3149, %v3152
        %v3154 = vsel %vm2559, %v3145, %v3153
        %v3156 = vshrl.u32 %v2953, 16
        %v3158 = vrot.slane %v3156, 5
        %v3159 = vshll.u32 %v2953, 16
        %v3161 = vrot.slane %v3159, 6
        %v3162 = vor.u32 %v3158, %v3161
        %v3163 = vrot.slane %v3162, 4
        %v3165 = vshrl.u32 %v2954, 16
        %v3167 = vrot.slane %v3165, 5
        %v3168 = vshll.u32 %v2954, 16
        %v3170 = vrot.slane %v3168, 6
        %v3171 = vor.u32 %v3167, %v3170
        %v3172 = vsel %vm2559, %v3163, %v3171
        %v3173 = vrot.slane %v3171, 4
        %v3175 = vshrl.u32 %v2955, 16
        %v3177 = vrot.slane %v3175, 5
        %v3178 = vshll.u32 %v2955, 16
        %v3180 = vrot.slane %v3178, 6
        %v3181 = vor.u32 %v3177, %v3180
        %v3182 = vsel %vm2559, %v3173, %v3181
        %v3183 = vrot.slane %v3181, 4
        %v3185 = vshrl.u32 %v2956, 16
        %v3187 = vrot.slane %v3185, 5
        %v3188 = vshll.u32 %v2956, 16
        %v3190 = vrot.slane %v3188, 6
        %v3191 = vor.u32 %v3187, %v3190
        %v3192 = vsel %vm2559, %v3183, %v3191
        %v3193 = vrot.slane %v3191, 4
        %v3195 = vshrl.u32 %v2957, 16
        %v3197 = vrot.slane %v3195, 5
        %v3198 = vshll.u32 %v2957, 16
        %v3200 = vrot.slane %v3198, 6
        %v3201 = vor.u32 %v3197, %v3200
        %v3202 = vsel %vm2559, %v3193, %v3201
        %v3204 = vshrl.u32 %v2958, 16
        %v3206 = vrot.slane %v3204, 5
        %v3207 = vshll.u32 %v2958, 16
        %v3209 = vrot.slane %v3207, 6
        %v3210 = vor.u32 %v3206, %v3209
        %v3211 = vrot.slane %v3210, 4
        %v3213 = vshrl.u32 %v2959, 16
        %v3215 = vrot.slane %v3213, 5
        %v3216 = vshll.u32 %v2959, 16
        %v3218 = vrot.slane %v3216, 6
        %v3219 = vor.u32 %v3215, %v3218
        %v3220 = vsel %vm2559, %v3211, %v3219
        %v3221 = vrot.slane %v3219, 4
        %v3223 = vshrl.u32 %v2960, 16
        %v3225 = vrot.slane %v3223, 5
        %v3226 = vshll.u32 %v2960, 16
        %v3228 = vrot.slane %v3226, 6
        %v3229 = vor.u32 %v3225, %v3228
        %v3230 = vsel %vm2559, %v3221, %v3229
        %v3231 = vrot.slane %v3229, 4
        %v3233 = vshrl.u32 %v2961, 16
        %v3235 = vrot.slane %v3233, 5
        %v3236 = vshll.u32 %v2961, 16
        %v3238 = vrot.slane %v3236, 6
        %v3239 = vor.u32 %v3235, %v3238
        %v3240 = vsel %vm2559, %v3231, %v3239
        %v3241 = vrot.slane %v3239, 4
        %v3243 = vshrl.u32 %v2962, 16
        %v3245 = vrot.slane %v3243, 5
        %v3246 = vshll.u32 %v2962, 16
        %v3248 = vrot.slane %v3246, 6
        %v3249 = vor.u32 %v3245, %v3248
        %v3250 = vsel %vm2559, %v3241, %v3249
        %v3251 = vunpack.c.l.b16 %v2980
        %v3252 = vunpack.c.l.b16 %v2990
        %v3253 = vunpack.c.l.b16 %v3000
        %v3254 = vunpack.c.l.b16 %v3010
        %v3255 = vunpack.c.l.b16 %v3028
        %v3256 = vunpack.c.l.b16 %v3038
        %v3257 = vunpack.c.l.b16 %v3048
        %v3258 = vunpack.c.l.b16 %v3058
        %v3259 = vunpack.c.l.b16 %v3076
        %v3260 = vunpack.c.l.b16 %v3086
        %v3261 = vunpack.c.l.b16 %v3096
        %v3262 = vunpack.c.l.b16 %v3106
        %v3263 = vunpack.c.l.b16 %v3124
        %v3264 = vunpack.c.l.b16 %v3134
        %v3265 = vunpack.c.l.b16 %v3144
        %v3266 = vunpack.c.l.b16 %v3154
        %v3267 = vunpack.c.l.b16 %v3172
        %v3268 = vunpack.c.l.b16 %v3182
        %v3269 = vunpack.c.l.b16 %v3192
        %v3270 = vunpack.c.l.b16 %v3202
        %v3271 = vunpack.c.l.b16 %v3220
        %v3272 = vunpack.c.l.b16 %v3230
        %v3273 = vunpack.c.l.b16 %v3240
        %v3274 = vunpack.c.l.b16 %v3250
        %v3275 = vpack.c.b16 %v3252, %v3251
        %v3276 = vpack.c.b16 %v3254, %v3253
        %v3277 = vpack.c.b16 %v3256, %v3255
        %v3278 = vpack.c.b16 %v3258, %v3257
        %v3279 = vpack.c.b16 %v3260, %v3259
        %v3280 = vpack.c.b16 %v3262, %v3261
        %v3281 = vpack.c.b16 %v3264, %v3263
        %v3282 = vpack.c.b16 %v3266, %v3265
        %v3283 = vpack.c.b16 %v3268, %v3267
        %v3284 = vpack.c.b16 %v3270, %v3269
        %v3285 = vpack.c.b16 %v3272, %v3271
        %v3286 = vpack.c.b16 %v3274, %v3273
        %3287 = vrot.lane.b32.xlu0 %v3275, 112
        %v3288 = vpop.permute.xlu0 %3287
        %3289 = vrot.lane.b32.xlu0 %v3276, 112
        %v3290 = vpop.permute.xlu0 %3289
        %3291 = vrot.lane.b32.xlu0 %v3277, 112
        %v3292 = vpop.permute.xlu0 %3291
        %3293 = vrot.lane.b32.xlu0 %v3278, 112
        %v3294 = vpop.permute.xlu0 %3293
        %3295 = vrot.lane.b32.xlu0 %v3279, 112
        %v3296 = vpop.permute.xlu0 %3295
        %3297 = vrot.lane.b32.xlu0 %v3280, 112
        %v3298 = vpop.permute.xlu0 %3297
        %3299 = vrot.lane.b32.xlu0 %v3281, 112
        %v3300 = vpop.permute.xlu0 %3299
        %3301 = vrot.lane.b32.xlu0 %v3282, 112
        %v3302 = vpop.permute.xlu0 %3301
        %3303 = vrot.lane.b32.xlu0 %v3283, 112
        %v3304 = vpop.permute.xlu0 %3303
        %3305 = vrot.lane.b32.xlu0 %v3284, 112
        %v3306 = vpop.permute.xlu0 %3305
        %3307 = vrot.lane.b32.xlu0 %v3285, 112
        %v3308 = vpop.permute.xlu0 %3307
        %3309 = vrot.lane.b32.xlu0 %v3286, 112
        %v3310 = vpop.permute.xlu0 %3309
        %vm3323 = vcmask 1048448
        %3324 = vst.msk [vmem:[#allocation3] sm:$0xff] %vm3323, %v3288
        %3325 = vst.msk [vmem:[#allocation3 + $0x10] sm:$0xff] %vm3323, %v3290
        %3326 = vst.msk [vmem:[#allocation3 + $0x20] sm:$0xff] %vm3323, %v3292
        %3327 = vst.msk [vmem:[#allocation3 + $0x30] sm:$0xff] %vm3323, %v3294
        %3328 = vst.msk [vmem:[#allocation3 + $0x40] sm:$0xff] %vm3323, %v3296
        %3329 = vst.msk [vmem:[#allocation3 + $0x50] sm:$0xff] %vm3323, %v3298
        %3330 = vst.msk [vmem:[#allocation3 + $0x60] sm:$0xff] %vm3323, %v3300
        %3331 = vst.msk [vmem:[#allocation3 + $0x70] sm:$0xff] %vm3323, %v3302
        %3332 = vst.msk [vmem:[#allocation3 + $0x80] sm:$0xff] %vm3323, %v3304
        %3333 = vst.msk [vmem:[#allocation3 + $0x90] sm:$0xff] %vm3323, %v3306
        %3334 = vst.msk [vmem:[#allocation3 + $0xa0] sm:$0xff] %vm3323, %v3308
        %3335 = vst.msk [vmem:[#allocation3 + $0xb0] sm:$0xff] %vm3323, %v3310
        %v3336 = vld [vmem:[#allocation2] sm:$0xc]
        %v3337 = vld [vmem:[#allocation2 + $0x4] sm:$0xf]
        %v3338 = vld [vmem:[#allocation2 + $0x8] sm:$0xf]
        %v3339 = vld [vmem:[#allocation2 + $0xc] sm:$0xf]
        %v3340 = vld [vmem:[#allocation2 + $0x10] sm:$0x3]
        %v3341 = vld [vmem:[#allocation2 + $0x28] sm:$0xc]
        %v3342 = vld [vmem:[#allocation2 + $0x2c] sm:$0xf]
        %v3343 = vld [vmem:[#allocation2 + $0x30] sm:$0xf]
        %v3344 = vld [vmem:[#allocation2 + $0x34] sm:$0xf]
        %v3345 = vld [vmem:[#allocation2 + $0x38] sm:$0x3]
        %v3346 = vld [vmem:[#allocation2 + $0x50] sm:$0xc]
        %v3347 = vld [vmem:[#allocation2 + $0x54] sm:$0xf]
        %v3348 = vld [vmem:[#allocation2 + $0x58] sm:$0xf]
        %v3349 = vld [vmem:[#allocation2 + $0x5c] sm:$0xf]
        %v3350 = vld [vmem:[#allocation2 + $0x60] sm:$0x3]
        %v3351 = vld [vmem:[#allocation2 + $0x78] sm:$0xc]
        %v3352 = vld [vmem:[#allocation2 + $0x7c] sm:$0xf]
        %v3353 = vld [vmem:[#allocation2 + $0x80] sm:$0xf]
        %v3354 = vld [vmem:[#allocation2 + $0x84] sm:$0xf]
        %v3355 = vld [vmem:[#allocation2 + $0x88] sm:$0x3]
        %v3356 = vld [vmem:[#allocation2 + $0xa0] sm:$0xc]
        %v3357 = vld [vmem:[#allocation2 + $0xa4] sm:$0xf]
        %v3358 = vld [vmem:[#allocation2 + $0xa8] sm:$0xf]
        %v3359 = vld [vmem:[#allocation2 + $0xac] sm:$0xf]
        %v3360 = vld [vmem:[#allocation2 + $0xb0] sm:$0x3]
        %v3361 = vld [vmem:[#allocation2 + $0xc8] sm:$0xc]
        %v3362 = vld [vmem:[#allocation2 + $0xcc] sm:$0xf]
        %v3363 = vld [vmem:[#allocation2 + $0xd0] sm:$0xf]
        %v3364 = vld [vmem:[#allocation2 + $0xd4] sm:$0xf]
        %v3365 = vld [vmem:[#allocation2 + $0xd8] sm:$0x3]
        %vm3396 = vcmask 1041408
        %vm3397 = vcmask 1045508
        %vm3398 = vmor %vm3396, %vm3397
        %v3399 = vrot.slane %v3336, 6
        %v3400 = vrot.slane %v3399, 4
        %v3401 = vrot.slane %v3337, 6
        %v3402 = vsel %vm3398, %v3400, %v3401
        %v3403 = vrot.slane %v3401, 4
        %v3404 = vrot.slane %v3338, 6
        %v3405 = vsel %vm3398, %v3403, %v3404
        %v3406 = vrot.slane %v3404, 4
        %v3407 = vrot.slane %v3339, 6
        %v3408 = vsel %vm3398, %v3406, %v3407
        %v3409 = vrot.slane %v3407, 4
        %v3410 = vrot.slane %v3340, 6
        %v3411 = vsel %vm3398, %v3409, %v3410
        %v3412 = vrot.slane %v3341, 6
        %v3413 = vrot.slane %v3412, 4
        %v3414 = vrot.slane %v3342, 6
        %v3415 = vsel %vm3398, %v3413, %v3414
        %v3416 = vrot.slane %v3414, 4
        %v3417 = vrot.slane %v3343, 6
        %v3418 = vsel %vm3398, %v3416, %v3417
        %v3419 = vrot.slane %v3417, 4
        %v3420 = vrot.slane %v3344, 6
        %v3421 = vsel %vm3398, %v3419, %v3420
        %v3422 = vrot.slane %v3420, 4
        %v3423 = vrot.slane %v3345, 6
        %v3424 = vsel %vm3398, %v3422, %v3423
        %v3425 = vrot.slane %v3346, 6
        %v3426 = vrot.slane %v3425, 4
        %v3427 = vrot.slane %v3347, 6
        %v3428 = vsel %vm3398, %v3426, %v3427
        %v3429 = vrot.slane %v3427, 4
        %v3430 = vrot.slane %v3348, 6
        %v3431 = vsel %vm3398, %v3429, %v3430
        %v3432 = vrot.slane %v3430, 4
        %v3433 = vrot.slane %v3349, 6
        %v3434 = vsel %vm3398, %v3432, %v3433
        %v3435 = vrot.slane %v3433, 4
        %v3436 = vrot.slane %v3350, 6
        %v3437 = vsel %vm3398, %v3435, %v3436
        %v3438 = vrot.slane %v3351, 6
        %v3439 = vrot.slane %v3438, 4
        %v3440 = vrot.slane %v3352, 6
        %v3441 = vsel %vm3398, %v3439, %v3440
        %v3442 = vrot.slane %v3440, 4
        %v3443 = vrot.slane %v3353, 6
        %v3444 = vsel %vm3398, %v3442, %v3443
        %v3445 = vrot.slane %v3443, 4
        %v3446 = vrot.slane %v3354, 6
        %v3447 = vsel %vm3398, %v3445, %v3446
        %v3448 = vrot.slane %v3446, 4
        %v3449 = vrot.slane %v3355, 6
        %v3450 = vsel %vm3398, %v3448, %v3449
        %v3451 = vrot.slane %v3356, 6
        %v3452 = vrot.slane %v3451, 4
        %v3453 = vrot.slane %v3357, 6
        %v3454 = vsel %vm3398, %v3452, %v3453
        %v3455 = vrot.slane %v3453, 4
        %v3456 = vrot.slane %v3358, 6
        %v3457 = vsel %vm3398, %v3455, %v3456
        %v3458 = vrot.slane %v3456, 4
        %v3459 = vrot.slane %v3359, 6
        %v3460 = vsel %vm3398, %v3458, %v3459
        %v3461 = vrot.slane %v3459, 4
        %v3462 = vrot.slane %v3360, 6
        %v3463 = vsel %vm3398, %v3461, %v3462
        %v3464 = vrot.slane %v3361, 6
        %v3465 = vrot.slane %v3464, 4
        %v3466 = vrot.slane %v3362, 6
        %v3467 = vsel %vm3398, %v3465, %v3466
        %v3468 = vrot.slane %v3466, 4
        %v3469 = vrot.slane %v3363, 6
        %v3470 = vsel %vm3398, %v3468, %v3469
        %v3471 = vrot.slane %v3469, 4
        %v3472 = vrot.slane %v3364, 6
        %v3473 = vsel %vm3398, %v3471, %v3472
        %v3474 = vrot.slane %v3472, 4
        %v3475 = vrot.slane %v3365, 6
        %v3476 = vsel %vm3398, %v3474, %v3475
        %v3477 = vunpack.c.l.b16 %v3402
        %v3478 = vunpack.c.l.b16 %v3405
        %v3479 = vunpack.c.l.b16 %v3408
        %v3480 = vunpack.c.l.b16 %v3411
        %v3481 = vunpack.c.l.b16 %v3415
        %v3482 = vunpack.c.l.b16 %v3418
        %v3483 = vunpack.c.l.b16 %v3421
        %v3484 = vunpack.c.l.b16 %v3424
        %v3485 = vunpack.c.l.b16 %v3428
        %v3486 = vunpack.c.l.b16 %v3431
        %v3487 = vunpack.c.l.b16 %v3434
        %v3488 = vunpack.c.l.b16 %v3437
        %v3489 = vunpack.c.l.b16 %v3441
        %v3490 = vunpack.c.l.b16 %v3444
        %v3491 = vunpack.c.l.b16 %v3447
        %v3492 = vunpack.c.l.b16 %v3450
        %v3493 = vunpack.c.l.b16 %v3454
        %v3494 = vunpack.c.l.b16 %v3457
        %v3495 = vunpack.c.l.b16 %v3460
        %v3496 = vunpack.c.l.b16 %v3463
        %v3497 = vunpack.c.l.b16 %v3467
        %v3498 = vunpack.c.l.b16 %v3470
        %v3499 = vunpack.c.l.b16 %v3473
        %v3500 = vunpack.c.l.b16 %v3476
        %v3501 = vpack.c.b16 %v3478, %v3477
        %v3502 = vpack.c.b16 %v3480, %v3479
        %v3503 = vpack.c.b16 %v3482, %v3481
        %v3504 = vpack.c.b16 %v3484, %v3483
        %v3505 = vpack.c.b16 %v3486, %v3485
        %v3506 = vpack.c.b16 %v3488, %v3487
        %v3507 = vpack.c.b16 %v3490, %v3489
        %v3508 = vpack.c.b16 %v3492, %v3491
        %v3509 = vpack.c.b16 %v3494, %v3493
        %v3510 = vpack.c.b16 %v3496, %v3495
        %v3511 = vpack.c.b16 %v3498, %v3497
        %v3512 = vpack.c.b16 %v3500, %v3499
        %3525 = vst.msk [vmem:[#allocation3 + $0x8] sm:$0xff] %vm1170, %v3501
        %3526 = vst.msk [vmem:[#allocation3 + $0x18] sm:$0xff] %vm1170, %v3502
        %3527 = vst.msk [vmem:[#allocation3 + $0x28] sm:$0xff] %vm1170, %v3503
        %3528 = vst.msk [vmem:[#allocation3 + $0x38] sm:$0xff] %vm1170, %v3504
        %3529 = vst.msk [vmem:[#allocation3 + $0x48] sm:$0xff] %vm1170, %v3505
        %3530 = vst.msk [vmem:[#allocation3 + $0x58] sm:$0xff] %vm1170, %v3506
        %3531 = vst.msk [vmem:[#allocation3 + $0x68] sm:$0xff] %vm1170, %v3507
        %3532 = vst.msk [vmem:[#allocation3 + $0x78] sm:$0xff] %vm1170, %v3508
        %3533 = vst.msk [vmem:[#allocation3 + $0x88] sm:$0xff] %vm1170, %v3509
        %3534 = vst.msk [vmem:[#allocation3 + $0x98] sm:$0xff] %vm1170, %v3510
        %3535 = vst.msk [vmem:[#allocation3 + $0xa8] sm:$0xff] %vm1170, %v3511
        %3536 = vst.msk [vmem:[#allocation3 + $0xb8] sm:$0xff] %vm1170, %v3512
        %v3537 = vld [vmem:[#allocation3] sm:$0xff]
        %v3538 = vld [vmem:[#allocation3 + $0x8] sm:$0xff]
        %v3539 = vld [vmem:[#allocation3 + $0x10] sm:$0xff]
        %v3540 = vld [vmem:[#allocation3 + $0x18] sm:$0xff]
        %v3541 = vld [vmem:[#allocation3 + $0x20] sm:$0xff]
        %v3542 = vld [vmem:[#allocation3 + $0x28] sm:$0xff]
        %v3543 = vld [vmem:[#allocation3 + $0x30] sm:$0xff]
        %v3544 = vld [vmem:[#allocation3 + $0x38] sm:$0xff]
        %v3545 = vld [vmem:[#allocation3 + $0x40] sm:$0xff]
        %v3546 = vld [vmem:[#allocation3 + $0x48] sm:$0xff]
        %v3547 = vld [vmem:[#allocation3 + $0x50] sm:$0xff]
        %v3548 = vld [vmem:[#allocation3 + $0x58] sm:$0xff]
        %v3549 = vld [vmem:[#allocation3 + $0x60] sm:$0xff]
        %v3550 = vld [vmem:[#allocation3 + $0x68] sm:$0xff]
        %v3551 = vld [vmem:[#allocation3 + $0x70] sm:$0xff]
        %v3552 = vld [vmem:[#allocation3 + $0x78] sm:$0xff]
        %v3553 = vld [vmem:[#allocation3 + $0x80] sm:$0xff]
        %v3554 = vld [vmem:[#allocation3 + $0x88] sm:$0xff]
        %v3555 = vld [vmem:[#allocation3 + $0x90] sm:$0xff]
        %v3556 = vld [vmem:[#allocation3 + $0x98] sm:$0xff]
        %v3557 = vld [vmem:[#allocation3 + $0xa0] sm:$0xff]
        %v3558 = vld [vmem:[#allocation3 + $0xa8] sm:$0xff]
        %v3559 = vld [vmem:[#allocation3 + $0xb0] sm:$0xff]
        %v3560 = vld [vmem:[#allocation3 + $0xb8] sm:$0xff]
        %v3561 = vld [vmem:[%s3] sm:$0xf]
        %v3562 = vld [vmem:[%s3 + $0x4] sm:$0xf]
        %v3563 = vld [vmem:[%s3 + $0x8] sm:$0xf]
        %v3564 = vld [vmem:[%s3 + $0xc] sm:$0xf]
        %v3565 = vld [vmem:[%s3 + $0x10] sm:$0xf]
        %v3566 = vld [vmem:[%s3 + $0x14] sm:$0xf]
        %v3567 = vld [vmem:[%s3 + $0x18] sm:$0xf]
        %v3568 = vld [vmem:[%s3 + $0x1c] sm:$0xf]
        %v3569 = vld [vmem:[%s3 + $0x20] sm:$0xf]
        %v3570 = vld [vmem:[%s3 + $0x24] sm:$0xf]
        %v3571 = vld [vmem:[%s3 + $0x28] sm:$0xf]
        %v3572 = vld [vmem:[%s3 + $0x2c] sm:$0xf]
        %v3573 = vld [vmem:[%s3 + $0x30] sm:$0xf]
        %v3574 = vld [vmem:[%s3 + $0x34] sm:$0xf]
        %v3575 = vld [vmem:[%s3 + $0x38] sm:$0xf]
        %v3576 = vld [vmem:[%s3 + $0x3c] sm:$0xf]
        %v3577 = vld [vmem:[%s3 + $0x40] sm:$0xf]
        %v3578 = vld [vmem:[%s3 + $0x44] sm:$0xf]
        %v3597 = vunpack.c.l.b16 %v3561
        %v3598 = vunpack.c.l.b16 %v3562
        %v3599 = vunpack.c.l.b16 %v3563
        %v3600 = vunpack.c.l.b16 %v3564
        %v3601 = vunpack.c.l.b16 %v3565
        %v3602 = vunpack.c.l.b16 %v3566
        %v3603 = vunpack.c.l.b16 %v3567
        %v3604 = vunpack.c.l.b16 %v3568
        %v3605 = vunpack.c.l.b16 %v3569
        %v3606 = vunpack.c.l.b16 %v3570
        %v3607 = vunpack.c.l.b16 %v3571
        %v3608 = vunpack.c.l.b16 %v3572
        %v3609 = vunpack.c.l.b16 %v3573
        %v3610 = vunpack.c.l.b16 %v3574
        %v3611 = vunpack.c.l.b16 %v3575
        %v3612 = vunpack.c.l.b16 %v3576
        %v3613 = vunpack.c.l.b16 %v3577
        %v3614 = vunpack.c.l.b16 %v3578
        %v3615 = vpack.c.b16 %v3598, %v3597
        %v3616 = vpack.c.b16 %v3600, %v3599
        %v3617 = vpack.c.b16 %v3602, %v3601
        %v3618 = vpack.c.b16 %v3604, %v3603
        %v3619 = vpack.c.b16 %v3606, %v3605
        %v3620 = vpack.c.b16 %v3608, %v3607
        %v3621 = vpack.c.b16 %v3610, %v3609
        %v3622 = vpack.c.b16 %v3612, %v3611
        %v3623 = vpack.c.b16 %v3614, %v3613
        %v3634 = vsel %vm1170, %v3538, 0
        %v3637 = vsel %vm1170, %v3540, 0
        %v3640 = vsel %vm1170, %v3542, 0
        %v3643 = vsel %vm1170, %v3544, 0
        %v3646 = vsel %vm1170, %v3546, 0
        %v3649 = vsel %vm1170, %v3548, 0
        %v3652 = vsel %vm1170, %v3550, 0
        %v3655 = vsel %vm1170, %v3552, 0
        %v3658 = vsel %vm1170, %v3554, 0
        %v3661 = vsel %vm1170, %v3556, 0
        %v3664 = vsel %vm1170, %v3558, 0
        %v3667 = vsel %vm1170, %v3560, 0
        %3669 = vmatprep.subr.bf16.mxu0 0
        %3670 = vmatpush1.bf16.msra.mxu0 %v3615
        %3671 = vmatprep.subr.bf16.mxu0 0
        %3672 = vmatpush1.bf16.msra.mxu0 %v3616
        %3673 = vmatprep.subr.bf16.mxu0 0
        %3674 = vmatpush1.bf16.msra.mxu0 %v3617
        %3675 = vmatprep.subr.bf16.mxu0 0
        %3676 = vmatpush1.bf16.msra.mxu0 %v3618
        %3677 = vmatprep.subr.bf16.mxu0 0
        %3678 = vmatpush1.bf16.msra.mxu0 %v3619
        %3679 = vmatprep.subr.bf16.mxu0 0
        %3680 = vmatpush1.bf16.msra.mxu0 %v3620
        %3681 = vmatprep.subr.bf16.mxu0 0
        %3682 = vmatpush1.bf16.msra.mxu0 %v3621
        %3683 = vmatprep.subr.bf16.mxu0 0
        %3684 = vmatpush1.bf16.msra.mxu0 %v3622
        %3685 = vmatprep.subr.bf16.mxu0 0
        %3686 = vmatpush1.bf16.msra.mxu0 %v3623
        %3687 = vmatprep.subr.bf16.mxu0 0
        %3688 = vmatpush1.bf16.msra.mxu0 0
        %3689 = vmatprep.subr.bf16.mxu0 0
        %3690 = vmatpush1.bf16.msra.mxu0 0
        %3691 = vmatprep.subr.bf16.mxu0 0
        %3692 = vmatpush1.bf16.msra.mxu0 0
        %3693 = vmatprep.subr.bf16.mxu0 0
        %3694 = vmatpush1.bf16.msra.mxu0 0
        %3695 = vmatprep.subr.bf16.mxu0 0
        %3696 = vmatpush1.bf16.msra.mxu0 0
        %3697 = vmatprep.subr.bf16.mxu0 0
        %3698 = vmatpush1.bf16.msra.mxu0 0
        %3699 = vmatprep.subr.bf16.mxu0 0
        %3700 = vmatpush1.bf16.msra.mxu0 0
        %3701 = vmatprep.mubr.bf16.mxu0 %v3634
        %3702 = vmatmul.mubr.bf16.gmra.mrb[0].mxu0 %v3537
        %v3703 = vpop.f32.mrb[0].mxu0
        %v3704 = vadd.f32 0.0, %v3703
        %v3705 = vpop.f32.mrb[0].mxu0
        %v3706 = vpop.f32.mrb[0].mxu0
        %v3707 = vadd.f32 0.0, %v3706
        %v3708 = vpop.f32.mrb[0].mxu0
        %3709 = vmatprep.mubr.bf16.mxu0 %v3637
        %3710 = vmatmul.mubr.bf16.gmra.mrb[0].mxu0 %v3539
        %v3711 = vpop.f32.mrb[0].mxu0
        %v3712 = vadd.f32 0.0, %v3711
        %v3713 = vpop.f32.mrb[0].mxu0
        %v3714 = vpop.f32.mrb[0].mxu0
        %v3715 = vadd.f32 0.0, %v3714
        %v3716 = vpop.f32.mrb[0].mxu0
        %3717 = vmatprep.mubr.bf16.mxu0 %v3640
        %3718 = vmatmul.mubr.bf16.gmra.mrb[0].mxu0 %v3541
        %v3719 = vpop.f32.mrb[0].mxu0
        %v3720 = vadd.f32 0.0, %v3719
        %v3721 = vpop.f32.mrb[0].mxu0
        %v3722 = vpop.f32.mrb[0].mxu0
        %v3723 = vadd.f32 0.0, %v3722
        %v3724 = vpop.f32.mrb[0].mxu0
        %3725 = vmatprep.mubr.bf16.mxu0 %v3643
        %3726 = vmatmul.mubr.bf16.gmra.mrb[0].mxu0 %v3543
        %v3727 = vpop.f32.mrb[0].mxu0
        %v3728 = vadd.f32 0.0, %v3727
        %v3729 = vpop.f32.mrb[0].mxu0
        %v3730 = vpop.f32.mrb[0].mxu0
        %v3731 = vadd.f32 0.0, %v3730
        %v3732 = vpop.f32.mrb[0].mxu0
        %3733 = vmatprep.mubr.bf16.mxu0 %v3646
        %3734 = vmatmul.mubr.bf16.gmra.mrb[0].mxu0 %v3545
        %v3735 = vpop.f32.mrb[0].mxu0
        %v3736 = vadd.f32 0.0, %v3735
        %v3737 = vpop.f32.mrb[0].mxu0
        %v3738 = vpop.f32.mrb[0].mxu0
        %v3739 = vadd.f32 0.0, %v3738
        %v3740 = vpop.f32.mrb[0].mxu0
        %3741 = vmatprep.mubr.bf16.mxu0 %v3649
        %3742 = vmatmul.mubr.bf16.gmra.mrb[0].mxu0 %v3547
        %v3743 = vpop.f32.mrb[0].mxu0
        %v3744 = vadd.f32 0.0, %v3743
        %v3745 = vpop.f32.mrb[0].mxu0
        %v3746 = vpop.f32.mrb[0].mxu0
        %v3747 = vadd.f32 0.0, %v3746
        %v3748 = vpop.f32.mrb[0].mxu0
        %3749 = vmatprep.mubr.bf16.mxu0 %v3652
        %3750 = vmatmul.mubr.bf16.gmra.mrb[0].mxu0 %v3549
        %v3751 = vpop.f32.mrb[0].mxu0
        %v3752 = vadd.f32 0.0, %v3751
        %v3753 = vpop.f32.mrb[0].mxu0
        %v3754 = vpop.f32.mrb[0].mxu0
        %v3755 = vadd.f32 0.0, %v3754
        %v3756 = vpop.f32.mrb[0].mxu0
        %3757 = vmatprep.mubr.bf16.mxu0 %v3655
        %3758 = vmatmul.mubr.bf16.gmra.mrb[0].mxu0 %v3551
        %v3759 = vpop.f32.mrb[0].mxu0
        %v3760 = vadd.f32 0.0, %v3759
        %v3761 = vpop.f32.mrb[0].mxu0
        %v3762 = vpop.f32.mrb[0].mxu0
        %v3763 = vadd.f32 0.0, %v3762
        %v3764 = vpop.f32.mrb[0].mxu0
        %3765 = vmatprep.mubr.bf16.mxu0 %v3658
        %3766 = vmatmul.mubr.bf16.gmra.mrb[0].mxu0 %v3553
        %v3767 = vpop.f32.mrb[0].mxu0
        %v3768 = vadd.f32 0.0, %v3767
        %v3769 = vpop.f32.mrb[0].mxu0
        %v3770 = vpop.f32.mrb[0].mxu0
        %v3771 = vadd.f32 0.0, %v3770
        %v3772 = vpop.f32.mrb[0].mxu0
        %3773 = vmatprep.mubr.bf16.mxu0 %v3661
        %3774 = vmatmul.mubr.bf16.gmra.mrb[0].mxu0 %v3555
        %v3775 = vpop.f32.mrb[0].mxu0
        %v3776 = vadd.f32 0.0, %v3775
        %v3777 = vpop.f32.mrb[0].mxu0
        %v3778 = vpop.f32.mrb[0].mxu0
        %v3779 = vadd.f32 0.0, %v3778
        %v3780 = vpop.f32.mrb[0].mxu0
        %3781 = vmatprep.mubr.bf16.mxu0 %v3664
        %3782 = vmatmul.mubr.bf16.gmra.mrb[0].mxu0 %v3557
        %v3783 = vpop.f32.mrb[0].mxu0
        %v3784 = vadd.f32 0.0, %v3783
        %v3785 = vpop.f32.mrb[0].mxu0
        %v3786 = vpop.f32.mrb[0].mxu0
        %v3787 = vadd.f32 0.0, %v3786
        %v3788 = vpop.f32.mrb[0].mxu0
        %3789 = vmatprep.mubr.bf16.mxu0 %v3667
        %3790 = vmatmul.mubr.bf16.gmra.mrb[0].mxu0 %v3559
        %v3791 = vpop.f32.mrb[0].mxu0
        %v3792 = vadd.f32 0.0, %v3791
        %v3793 = vpop.f32.mrb[0].mxu0
        %v3794 = vpop.f32.mrb[0].mxu0
        %v3795 = vadd.f32 0.0, %v3794
        %v3796 = vpop.f32.mrb[0].mxu0
        %3797 = vdwg.mxu0
        %vm3798 = vcmask 261120
        %v3799 = vsel %vm3798, %v3704, 0.0
        %v3800 = vsel %vm3798, %v3707, 0.0
        %v3801 = vadd.f32 %v3799, %v3800
        %v3802 = vsel %vm3798, %v3712, 0.0
        %v3803 = vadd.f32 %v3801, %v3802
        %v3804 = vsel %vm3798, %v3715, 0.0
        %v3805 = vadd.f32 %v3803, %v3804
        %v3806 = vsel %vm3798, %v3720, 0.0
        %v3807 = vadd.f32 %v3805, %v3806
        %v3808 = vsel %vm3798, %v3723, 0.0
        %v3809 = vadd.f32 %v3807, %v3808
        %v3810 = vsel %vm3798, %v3728, 0.0
        %v3811 = vadd.f32 %v3809, %v3810
        %v3812 = vsel %vm3798, %v3731, 0.0
        %v3813 = vadd.f32 %v3811, %v3812
        %v3814 = vsel %vm3798, %v3736, 0.0
        %v3815 = vadd.f32 %v3813, %v3814
        %v3816 = vsel %vm3798, %v3739, 0.0
        %v3817 = vadd.f32 %v3815, %v3816
        %v3818 = vsel %vm3798, %v3744, 0.0
        %v3819 = vadd.f32 %v3817, %v3818
        %v3820 = vsel %vm3798, %v3747, 0.0
        %v3821 = vadd.f32 %v3819, %v3820
        %v3822 = vsel %vm3798, %v3752, 0.0
        %v3823 = vadd.f32 %v3821, %v3822
        %v3824 = vsel %vm3798, %v3755, 0.0
        %v3825 = vadd.f32 %v3823, %v3824
        %v3826 = vsel %vm3798, %v3760, 0.0
        %v3827 = vadd.f32 %v3825, %v3826
        %v3828 = vsel %vm3798, %v3763, 0.0
        %v3829 = vadd.f32 %v3827, %v3828
        %v3830 = vsel %vm3798, %v3768, 0.0
        %v3831 = vadd.f32 %v3829, %v3830
        %v3832 = vsel %vm3798, %v3771, 0.0
        %v3833 = vadd.f32 %v3831, %v3832
        %v3834 = vsel %vm3798, %v3776, 0.0
        %v3835 = vadd.f32 %v3833, %v3834
        %v3836 = vsel %vm3798, %v3779, 0.0
        %v3837 = vadd.f32 %v3835, %v3836
        %v3838 = vsel %vm3798, %v3784, 0.0
        %v3839 = vadd.f32 %v3837, %v3838
        %v3840 = vsel %vm3798, %v3787, 0.0
        %v3841 = vadd.f32 %v3839, %v3840
        %v3842 = vsel %vm3798, %v3792, 0.0
        %v3843 = vadd.f32 %v3841, %v3842
        %v3844 = vsel %vm3798, %v3795, 0.0
        %v3845 = vadd.f32 %v3843, %v3844
        %v3846 = vrot.slane %v3845, 4
        %v3847 = vadd.f32 %v3845, %v3846
        %v3848 = vrot.slane %v3847, 2
        %v3849 = vadd.f32 %v3847, %v3848
        %v3850 = vrot.slane %v3849, 1
        %v3851 = vadd.f32 %v3849, %v3850
        %vm3852 = vcmask 253952
        %3853 = vst.msk [vmem:[%s318] sm:$0x1] %vm3852, %v3851
        %v3854 = vmul.f32 %v3704, %v3704
        %v3855 = vmul.f32 %v3707, %v3707
        %v3856 = vmul.f32 %v3712, %v3712
        %v3857 = vmul.f32 %v3715, %v3715
        %v3858 = vmul.f32 %v3720, %v3720
        %v3859 = vmul.f32 %v3723, %v3723
        %v3860 = vmul.f32 %v3728, %v3728
        %v3861 = vmul.f32 %v3731, %v3731
        %v3862 = vmul.f32 %v3736, %v3736
        %v3863 = vmul.f32 %v3739, %v3739
        %v3864 = vmul.f32 %v3744, %v3744
        %v3865 = vmul.f32 %v3747, %v3747
        %v3866 = vmul.f32 %v3752, %v3752
        %v3867 = vmul.f32 %v3755, %v3755
        %v3868 = vmul.f32 %v3760, %v3760
        %v3869 = vmul.f32 %v3763, %v3763
        %v3870 = vmul.f32 %v3768, %v3768
        %v3871 = vmul.f32 %v3771, %v3771
        %v3872 = vmul.f32 %v3776, %v3776
        %v3873 = vmul.f32 %v3779, %v3779
        %v3874 = vmul.f32 %v3784, %v3784
        %v3875 = vmul.f32 %v3787, %v3787
        %v3876 = vmul.f32 %v3792, %v3792
        %v3877 = vmul.f32 %v3795, %v3795
        %v3878 = vsel %vm3798, %v3854, 0.0
        %v3879 = vsel %vm3798, %v3855, 0.0
        %v3880 = vadd.f32 %v3878, %v3879
        %v3881 = vsel %vm3798, %v3856, 0.0
        %v3882 = vadd.f32 %v3880, %v3881
        %v3883 = vsel %vm3798, %v3857, 0.0
        %v3884 = vadd.f32 %v3882, %v3883
        %v3885 = vsel %vm3798, %v3858, 0.0
        %v3886 = vadd.f32 %v3884, %v3885
        %v3887 = vsel %vm3798, %v3859, 0.0
        %v3888 = vadd.f32 %v3886, %v3887
        %v3889 = vsel %vm3798, %v3860, 0.0
        %v3890 = vadd.f32 %v3888, %v3889
        %v3891 = vsel %vm3798, %v3861, 0.0
        %v3892 = vadd.f32 %v3890, %v3891
        %v3893 = vsel %vm3798, %v3862, 0.0
        %v3894 = vadd.f32 %v3892, %v3893
        %v3895 = vsel %vm3798, %v3863, 0.0
        %v3896 = vadd.f32 %v3894, %v3895
        %v3897 = vsel %vm3798, %v3864, 0.0
        %v3898 = vadd.f32 %v3896, %v3897
        %v3899 = vsel %vm3798, %v3865, 0.0
        %v3900 = vadd.f32 %v3898, %v3899
        %v3901 = vsel %vm3798, %v3866, 0.0
        %v3902 = vadd.f32 %v3900, %v3901
        %v3903 = vsel %vm3798, %v3867, 0.0
        %v3904 = vadd.f32 %v3902, %v3903
        %v3905 = vsel %vm3798, %v3868, 0.0
        %v3906 = vadd.f32 %v3904, %v3905
        %v3907 = vsel %vm3798, %v3869, 0.0
        %v3908 = vadd.f32 %v3906, %v3907
        %v3909 = vsel %vm3798, %v3870, 0.0
        %v3910 = vadd.f32 %v3908, %v3909
        %v3911 = vsel %vm3798, %v3871, 0.0
        %v3912 = vadd.f32 %v3910, %v3911
        %v3913 = vsel %vm3798, %v3872, 0.0
        %v3914 = vadd.f32 %v3912, %v3913
        %v3915 = vsel %vm3798, %v3873, 0.0
        %v3916 = vadd.f32 %v3914, %v3915
        %v3917 = vsel %vm3798, %v3874, 0.0
        %v3918 = vadd.f32 %v3916, %v3917
        %v3919 = vsel %vm3798, %v3875, 0.0
        %v3920 = vadd.f32 %v3918, %v3919
        %v3921 = vsel %vm3798, %v3876, 0.0
        %v3922 = vadd.f32 %v3920, %v3921
        %v3923 = vsel %vm3798, %v3877, 0.0
        %v3924 = vadd.f32 %v3922, %v3923
        %v3925 = vrot.slane %v3924, 4
        %v3926 = vadd.f32 %v3924, %v3925
        %v3927 = vrot.slane %v3926, 2
        %v3928 = vadd.f32 %v3926, %v3927
        %v3929 = vrot.slane %v3928, 1
        %v3930 = vadd.f32 %v3928, %v3929
        %3931 = vst.msk [vmem:[%s324] sm:$0x1] %vm3852, %v3930
        %v3932 = vpack.c.bf16 %v3707, %v3704
        %v3933 = vpack.c.bf16 %v3715, %v3712
        %v3934 = vpack.c.bf16 %v3723, %v3720
        %v3935 = vpack.c.bf16 %v3731, %v3728
        %v3936 = vpack.c.bf16 %v3739, %v3736
        %v3937 = vpack.c.bf16 %v3747, %v3744
        %v3938 = vpack.c.bf16 %v3755, %v3752
        %v3939 = vpack.c.bf16 %v3763, %v3760
        %v3940 = vpack.c.bf16 %v3771, %v3768
        %v3941 = vpack.c.bf16 %v3779, %v3776
        %v3942 = vpack.c.bf16 %v3787, %v3784
        %v3943 = vpack.c.bf16 %v3795, %v3792
        %v3956 = vunpack.c.l.b16 %v3932
        %v3957 = vunpack.c.h.b16 %v3932
        %v3958 = vunpack.c.l.b16 %v3933
        %v3959 = vunpack.c.h.b16 %v3933
        %v3960 = vunpack.c.l.b16 %v3934
        %v3961 = vunpack.c.h.b16 %v3934
        %v3962 = vunpack.c.l.b16 %v3935
        %v3963 = vunpack.c.h.b16 %v3935
        %v3964 = vunpack.c.l.b16 %v3936
        %v3965 = vunpack.c.h.b16 %v3936
        %v3966 = vunpack.c.l.b16 %v3937
        %v3967 = vunpack.c.h.b16 %v3937
        %v3968 = vunpack.c.l.b16 %v3938
        %v3969 = vunpack.c.h.b16 %v3938
        %v3970 = vunpack.c.l.b16 %v3939
        %v3971 = vunpack.c.h.b16 %v3939
        %v3972 = vunpack.c.l.b16 %v3940
        %v3973 = vunpack.c.h.b16 %v3940
        %v3974 = vunpack.c.l.b16 %v3941
        %v3975 = vunpack.c.h.b16 %v3941
        %v3976 = vunpack.c.l.b16 %v3942
        %v3977 = vunpack.c.h.b16 %v3942
        %v3978 = vunpack.c.l.b16 %v3943
        %v3979 = vunpack.c.h.b16 %v3943
        %v3980 = vpack.c.b16 %v3956, %v3956
        %v3981 = vpack.c.b16 %v3957, %v3957
        %v3982 = vpack.c.b16 %v3958, %v3958
        %v3983 = vpack.c.b16 %v3959, %v3959
        %v3984 = vpack.c.b16 %v3960, %v3960
        %v3985 = vpack.c.b16 %v3961, %v3961
        %v3986 = vpack.c.b16 %v3962, %v3962
        %v3987 = vpack.c.b16 %v3963, %v3963
        %v3988 = vpack.c.b16 %v3964, %v3964
        %v3989 = vpack.c.b16 %v3965, %v3965
        %v3990 = vpack.c.b16 %v3966, %v3966
        %v3991 = vpack.c.b16 %v3967, %v3967
        %v3992 = vpack.c.b16 %v3968, %v3968
        %v3993 = vpack.c.b16 %v3969, %v3969
        %v3994 = vpack.c.b16 %v3970, %v3970
        %v3995 = vpack.c.b16 %v3971, %v3971
        %v3996 = vpack.c.b16 %v3972, %v3972
        %v3997 = vpack.c.b16 %v3973, %v3973
        %v3998 = vpack.c.b16 %v3974, %v3974
        %v3999 = vpack.c.b16 %v3975, %v3975
        %v4000 = vpack.c.b16 %v3976, %v3976
        %v4001 = vpack.c.b16 %v3977, %v3977
        %v4002 = vpack.c.b16 %v3978, %v3978
        %v4003 = vpack.c.b16 %v3979, %v3979
        %vm4028 = vcmask 257024
        %4029 = vst.msk [vmem:[%s305] sm:$0xf] %vm4028, %v3980
        %4030 = vst.msk [vmem:[%s305 + $0x4] sm:$0xf] %vm4028, %v3981
        %4031 = vst.msk [vmem:[%s305 + $0x8] sm:$0xf] %vm4028, %v3982
        %4032 = vst.msk [vmem:[%s305 + $0xc] sm:$0xf] %vm4028, %v3983
        %4033 = vst.msk [vmem:[%s305 + $0x10] sm:$0xf] %vm4028, %v3984
        %4034 = vst.msk [vmem:[%s305 + $0x14] sm:$0xf] %vm4028, %v3985
        %4035 = vst.msk [vmem:[%s305 + $0x18] sm:$0xf] %vm4028, %v3986
        %4036 = vst.msk [vmem:[%s305 + $0x1c] sm:$0xf] %vm4028, %v3987
        %4037 = vst.msk [vmem:[%s305 + $0x20] sm:$0xf] %vm4028, %v3988
        %4038 = vst.msk [vmem:[%s305 + $0x24] sm:$0xf] %vm4028, %v3989
        %4039 = vst.msk [vmem:[%s305 + $0x28] sm:$0xf] %vm4028, %v3990
        %4040 = vst.msk [vmem:[%s305 + $0x2c] sm:$0xf] %vm4028, %v3991
        %4041 = vst.msk [vmem:[%s305 + $0x30] sm:$0xf] %vm4028, %v3992
        %4042 = vst.msk [vmem:[%s305 + $0x34] sm:$0xf] %vm4028, %v3993
        %4043 = vst.msk [vmem:[%s305 + $0x38] sm:$0xf] %vm4028, %v3994
        %4044 = vst.msk [vmem:[%s305 + $0x3c] sm:$0xf] %vm4028, %v3995
        %4045 = vst.msk [vmem:[%s305 + $0x40] sm:$0xf] %vm4028, %v3996
        %4046 = vst.msk [vmem:[%s305 + $0x44] sm:$0xf] %vm4028, %v3997
        %4047 = vst.msk [vmem:[%s305 + $0x48] sm:$0xf] %vm4028, %v3998
        %4048 = vst.msk [vmem:[%s305 + $0x4c] sm:$0xf] %vm4028, %v3999
        %4049 = vst.msk [vmem:[%s305 + $0x50] sm:$0xf] %vm4028, %v4000
        %4050 = vst.msk [vmem:[%s305 + $0x54] sm:$0xf] %vm4028, %v4001
        %4051 = vst.msk [vmem:[%s305 + $0x58] sm:$0xf] %vm4028, %v4002
        %4052 = vst.msk [vmem:[%s305 + $0x5c] sm:$0xf] %vm4028, %v4003
        %v4053 = vld [vmem:[#allocation3] sm:$0xff]
        %v4054 = vld [vmem:[#allocation3 + $0x10] sm:$0xff]
        %v4055 = vld [vmem:[#allocation3 + $0x20] sm:$0xff]
        %v4056 = vld [vmem:[#allocation3 + $0x30] sm:$0xff]
        %v4057 = vld [vmem:[#allocation3 + $0x40] sm:$0xff]
        %v4058 = vld [vmem:[#allocation3 + $0x50] sm:$0xff]
        %v4059 = vld [vmem:[#allocation3 + $0x60] sm:$0xff]
        %v4060 = vld [vmem:[#allocation3 + $0x70] sm:$0xff]
        %v4061 = vld [vmem:[#allocation3 + $0x80] sm:$0xff]
        %v4062 = vld [vmem:[#allocation3 + $0x90] sm:$0xff]
        %v4063 = vld [vmem:[#allocation3 + $0xa0] sm:$0xff]
        %v4064 = vld [vmem:[#allocation3 + $0xb0] sm:$0xff]
        %v4065 = vld [vmem:[%s4] sm:$0xf]
        %v4066 = vld [vmem:[%s4 + $0x4] sm:$0xf]
        %4079 = vrot.lane.b32.xlu0 %v4053, 64
        %v4080 = vpop.permute.xlu0 %4079
        %4081 = vrot.lane.b32.xlu0 %v4054, 64
        %v4082 = vpop.permute.xlu0 %4081
        %4083 = vrot.lane.b32.xlu0 %v4055, 64
        %v4084 = vpop.permute.xlu0 %4083
        %4085 = vrot.lane.b32.xlu0 %v4056, 64
        %v4086 = vpop.permute.xlu0 %4085
        %4087 = vrot.lane.b32.xlu0 %v4057, 64
        %v4088 = vpop.permute.xlu0 %4087
        %4089 = vrot.lane.b32.xlu0 %v4058, 64
        %v4090 = vpop.permute.xlu0 %4089
        %4091 = vrot.lane.b32.xlu0 %v4059, 64
        %v4092 = vpop.permute.xlu0 %4091
        %4093 = vrot.lane.b32.xlu0 %v4060, 64
        %v4094 = vpop.permute.xlu0 %4093
        %4095 = vrot.lane.b32.xlu0 %v4061, 64
        %v4096 = vpop.permute.xlu0 %4095
        %4097 = vrot.lane.b32.xlu0 %v4062, 64
        %v4098 = vpop.permute.xlu0 %4097
        %4099 = vrot.lane.b32.xlu0 %v4063, 64
        %v4100 = vpop.permute.xlu0 %4099
        %4101 = vrot.lane.b32.xlu0 %v4064, 64
        %v4102 = vpop.permute.xlu0 %4101
        %v4105 = vunpack.c.l.b16 %v4065
        %v4106 = vunpack.c.l.b16 %v4066
        %v4107 = vpack.c.b16 %v4106, %v4105
        %v4110 = vsel %vm1170, %v4080, 0
        %v4113 = vsel %vm1170, %v4082, 0
        %v4116 = vsel %vm1170, %v4084, 0
        %v4119 = vsel %vm1170, %v4086, 0
        %v4122 = vsel %vm1170, %v4088, 0
        %v4125 = vsel %vm1170, %v4090, 0
        %v4128 = vsel %vm1170, %v4092, 0
        %v4131 = vsel %vm1170, %v4094, 0
        %v4134 = vsel %vm1170, %v4096, 0
        %v4137 = vsel %vm1170, %v4098, 0
        %v4140 = vsel %vm1170, %v4100, 0
        %v4143 = vsel %vm1170, %v4102, 0
        %4145 = vmatprep.subr.bf16.mxu0 0
        %4146 = vmatpush1.bf16.msra.mxu0 %v4107
        %4147 = vmatprep.subr.bf16.mxu0 0
        %4148 = vmatpush1.bf16.msra.mxu0 0
        %4149 = vmatprep.subr.bf16.mxu0 0
        %4150 = vmatpush1.bf16.msra.mxu0 0
        %4151 = vmatprep.subr.bf16.mxu0 0
        %4152 = vmatpush1.bf16.msra.mxu0 0
        %4153 = vmatprep.subr.bf16.mxu0 0
        %4154 = vmatpush1.bf16.msra.mxu0 0
        %4155 = vmatprep.subr.bf16.mxu0 0
        %4156 = vmatpush1.bf16.msra.mxu0 0
        %4157 = vmatprep.subr.bf16.mxu0 0
        %4158 = vmatpush1.bf16.msra.mxu0 0
        %4159 = vmatprep.subr.bf16.mxu0 0
        %4160 = vmatpush1.bf16.msra.mxu0 0
        %4161 = vmatprep.subr.bf16.mxu0 0
        %4162 = vmatpush1.bf16.msra.mxu0 0
        %4163 = vmatprep.subr.bf16.mxu0 0
        %4164 = vmatpush1.bf16.msra.mxu0 0
        %4165 = vmatprep.subr.bf16.mxu0 0
        %4166 = vmatpush1.bf16.msra.mxu0 0
        %4167 = vmatprep.subr.bf16.mxu0 0
        %4168 = vmatpush1.bf16.msra.mxu0 0
        %4169 = vmatprep.subr.bf16.mxu0 0
        %4170 = vmatpush1.bf16.msra.mxu0 0
        %4171 = vmatprep.subr.bf16.mxu0 0
        %4172 = vmatpush1.bf16.msra.mxu0 0
        %4173 = vmatprep.subr.bf16.mxu0 0
        %4174 = vmatpush1.bf16.msra.mxu0 0
        %4175 = vmatprep.subr.bf16.mxu0 0
        %4176 = vmatpush1.bf16.msra.mxu0 0
        %4177 = vmatprep.mubr.bf16.mxu0 0
        %4178 = vmatmul.mubr.bf16.gmra.mrb[0].mxu0 %v4110
        %v4179 = vpop.f32.mrb[0].mxu0
        %v4180 = vadd.f32 0.0, %v4179
        %v4181 = vpop.f32.mrb[0].mxu0
        %v4182 = vpop.f32.mrb[0].mxu0
        %v4183 = vadd.f32 0.0, %v4182
        %v4184 = vpop.f32.mrb[0].mxu0
        %4185 = vmatprep.mubr.bf16.mxu0 0
        %4186 = vmatmul.mubr.bf16.gmra.mrb[0].mxu0 %v4113
        %v4187 = vpop.f32.mrb[0].mxu0
        %v4188 = vadd.f32 0.0, %v4187
        %v4189 = vpop.f32.mrb[0].mxu0
        %v4190 = vpop.f32.mrb[0].mxu0
        %v4191 = vadd.f32 0.0, %v4190
        %v4192 = vpop.f32.mrb[0].mxu0
        %4193 = vmatprep.mubr.bf16.mxu0 0
        %4194 = vmatmul.mubr.bf16.gmra.mrb[0].mxu0 %v4116
        %v4195 = vpop.f32.mrb[0].mxu0
        %v4196 = vadd.f32 0.0, %v4195
        %v4197 = vpop.f32.mrb[0].mxu0
        %v4198 = vpop.f32.mrb[0].mxu0
        %v4199 = vadd.f32 0.0, %v4198
        %v4200 = vpop.f32.mrb[0].mxu0
        %4201 = vmatprep.mubr.bf16.mxu0 0
        %4202 = vmatmul.mubr.bf16.gmra.mrb[0].mxu0 %v4119
        %v4203 = vpop.f32.mrb[0].mxu0
        %v4204 = vadd.f32 0.0, %v4203
        %v4205 = vpop.f32.mrb[0].mxu0
        %v4206 = vpop.f32.mrb[0].mxu0
        %v4207 = vadd.f32 0.0, %v4206
        %v4208 = vpop.f32.mrb[0].mxu0
        %4209 = vmatprep.mubr.bf16.mxu0 0
        %4210 = vmatmul.mubr.bf16.gmra.mrb[0].mxu0 %v4122
        %v4211 = vpop.f32.mrb[0].mxu0
        %v4212 = vadd.f32 0.0, %v4211
        %v4213 = vpop.f32.mrb[0].mxu0
        %v4214 = vpop.f32.mrb[0].mxu0
        %v4215 = vadd.f32 0.0, %v4214
        %v4216 = vpop.f32.mrb[0].mxu0
        %4217 = vmatprep.mubr.bf16.mxu0 0
        %4218 = vmatmul.mubr.bf16.gmra.mrb[0].mxu0 %v4125
        %v4219 = vpop.f32.mrb[0].mxu0
        %v4220 = vadd.f32 0.0, %v4219
        %v4221 = vpop.f32.mrb[0].mxu0
        %v4222 = vpop.f32.mrb[0].mxu0
        %v4223 = vadd.f32 0.0, %v4222
        %v4224 = vpop.f32.mrb[0].mxu0
        %4225 = vmatprep.mubr.bf16.mxu0 0
        %4226 = vmatmul.mubr.bf16.gmra.mrb[0].mxu0 %v4128
        %v4227 = vpop.f32.mrb[0].mxu0
        %v4228 = vadd.f32 0.0, %v4227
        %v4229 = vpop.f32.mrb[0].mxu0
        %v4230 = vpop.f32.mrb[0].mxu0
        %v4231 = vadd.f32 0.0, %v4230
        %v4232 = vpop.f32.mrb[0].mxu0
        %4233 = vmatprep.mubr.bf16.mxu0 0
        %4234 = vmatmul.mubr.bf16.gmra.mrb[0].mxu0 %v4131
        %v4235 = vpop.f32.mrb[0].mxu0
        %v4236 = vadd.f32 0.0, %v4235
        %v4237 = vpop.f32.mrb[0].mxu0
        %v4238 = vpop.f32.mrb[0].mxu0
        %v4239 = vadd.f32 0.0, %v4238
        %v4240 = vpop.f32.mrb[0].mxu0
        %4241 = vmatprep.mubr.bf16.mxu0 0
        %4242 = vmatmul.mubr.bf16.gmra.mrb[0].mxu0 %v4134
        %v4243 = vpop.f32.mrb[0].mxu0
        %v4244 = vadd.f32 0.0, %v4243
        %v4245 = vpop.f32.mrb[0].mxu0
        %v4246 = vpop.f32.mrb[0].mxu0
        %v4247 = vadd.f32 0.0, %v4246
        %v4248 = vpop.f32.mrb[0].mxu0
        %4249 = vmatprep.mubr.bf16.mxu0 0
        %4250 = vmatmul.mubr.bf16.gmra.mrb[0].mxu0 %v4137
        %v4251 = vpop.f32.mrb[0].mxu0
        %v4252 = vadd.f32 0.0, %v4251
        %v4253 = vpop.f32.mrb[0].mxu0
        %v4254 = vpop.f32.mrb[0].mxu0
        %v4255 = vadd.f32 0.0, %v4254
        %v4256 = vpop.f32.mrb[0].mxu0
        %4257 = vmatprep.mubr.bf16.mxu0 0
        %4258 = vmatmul.mubr.bf16.gmra.mrb[0].mxu0 %v4140
        %v4259 = vpop.f32.mrb[0].mxu0
        %v4260 = vadd.f32 0.0, %v4259
        %v4261 = vpop.f32.mrb[0].mxu0
        %v4262 = vpop.f32.mrb[0].mxu0
        %v4263 = vadd.f32 0.0, %v4262
        %v4264 = vpop.f32.mrb[0].mxu0
        %4265 = vmatprep.mubr.bf16.mxu0 0
        %4266 = vmatmul.mubr.bf16.gmra.mrb[0].mxu0 %v4143
        %v4267 = vpop.f32.mrb[0].mxu0
        %v4268 = vadd.f32 0.0, %v4267
        %v4269 = vpop.f32.mrb[0].mxu0
        %v4270 = vpop.f32.mrb[0].mxu0
        %v4271 = vadd.f32 0.0, %v4270
        %v4272 = vpop.f32.mrb[0].mxu0
        %4273 = vdwg.mxu0
        %v4274 = vpack.c.bf16 %v4183, %v4180
        %v4275 = vpack.c.bf16 %v4191, %v4188
        %v4276 = vpack.c.bf16 %v4199, %v4196
        %v4277 = vpack.c.bf16 %v4207, %v4204
        %v4278 = vpack.c.bf16 %v4215, %v4212
        %v4279 = vpack.c.bf16 %v4223, %v4220
        %v4280 = vpack.c.bf16 %v4231, %v4228
        %v4281 = vpack.c.bf16 %v4239, %v4236
        %v4282 = vpack.c.bf16 %v4247, %v4244
        %v4283 = vpack.c.bf16 %v4255, %v4252
        %v4284 = vpack.c.bf16 %v4263, %v4260
        %v4285 = vpack.c.bf16 %v4271, %v4268
        %v4298 = vunpack.c.l.b16 %v4274
        %v4299 = vunpack.c.h.b16 %v4274
        %v4300 = vunpack.c.l.b16 %v4275
        %v4301 = vunpack.c.h.b16 %v4275
        %v4302 = vunpack.c.l.b16 %v4276
        %v4303 = vunpack.c.h.b16 %v4276
        %v4304 = vunpack.c.l.b16 %v4277
        %v4305 = vunpack.c.h.b16 %v4277
        %v4306 = vunpack.c.l.b16 %v4278
        %v4307 = vunpack.c.h.b16 %v4278
        %v4308 = vunpack.c.l.b16 %v4279
        %v4309 = vunpack.c.h.b16 %v4279
        %v4310 = vunpack.c.l.b16 %v4280
        %v4311 = vunpack.c.h.b16 %v4280
        %v4312 = vunpack.c.l.b16 %v4281
        %v4313 = vunpack.c.h.b16 %v4281
        %v4314 = vunpack.c.l.b16 %v4282
        %v4315 = vunpack.c.h.b16 %v4282
        %v4316 = vunpack.c.l.b16 %v4283
        %v4317 = vunpack.c.h.b16 %v4283
        %v4318 = vunpack.c.l.b16 %v4284
        %v4319 = vunpack.c.h.b16 %v4284
        %v4320 = vunpack.c.l.b16 %v4285
        %v4321 = vunpack.c.h.b16 %v4285
        %v4322 = vpack.c.b16 %v4298, %v4298
        %v4323 = vpack.c.b16 %v4299, %v4299
        %v4324 = vpack.c.b16 %v4300, %v4300
        %v4325 = vpack.c.b16 %v4301, %v4301
        %v4326 = vpack.c.b16 %v4302, %v4302
        %v4327 = vpack.c.b16 %v4303, %v4303
        %v4328 = vpack.c.b16 %v4304, %v4304
        %v4329 = vpack.c.b16 %v4305, %v4305
        %v4330 = vpack.c.b16 %v4306, %v4306
        %v4331 = vpack.c.b16 %v4307, %v4307
        %v4332 = vpack.c.b16 %v4308, %v4308
        %v4333 = vpack.c.b16 %v4309, %v4309
        %v4334 = vpack.c.b16 %v4310, %v4310
        %v4335 = vpack.c.b16 %v4311, %v4311
        %v4336 = vpack.c.b16 %v4312, %v4312
        %v4337 = vpack.c.b16 %v4313, %v4313
        %v4338 = vpack.c.b16 %v4314, %v4314
        %v4339 = vpack.c.b16 %v4315, %v4315
        %v4340 = vpack.c.b16 %v4316, %v4316
        %v4341 = vpack.c.b16 %v4317, %v4317
        %v4342 = vpack.c.b16 %v4318, %v4318
        %v4343 = vpack.c.b16 %v4319, %v4319
        %v4344 = vpack.c.b16 %v4320, %v4320
        %v4345 = vpack.c.b16 %v4321, %v4321
        %4370 = vst.msk [vmem:[%s337] sm:$0xf] %vm4028, %v4322
        %4371 = vst.msk [vmem:[%s337 + $0x4] sm:$0xf] %vm4028, %v4323
        %4372 = vst.msk [vmem:[%s337 + $0x8] sm:$0xf] %vm4028, %v4324
        %4373 = vst.msk [vmem:[%s337 + $0xc] sm:$0xf] %vm4028, %v4325
        %4374 = vst.msk [vmem:[%s337 + $0x10] sm:$0xf] %vm4028, %v4326
        %4375 = vst.msk [vmem:[%s337 + $0x14] sm:$0xf] %vm4028, %v4327
        %4376 = vst.msk [vmem:[%s337 + $0x18] sm:$0xf] %vm4028, %v4328
        %4377 = vst.msk [vmem:[%s337 + $0x1c] sm:$0xf] %vm4028, %v4329
        %4378 = vst.msk [vmem:[%s337 + $0x20] sm:$0xf] %vm4028, %v4330
        %4379 = vst.msk [vmem:[%s337 + $0x24] sm:$0xf] %vm4028, %v4331
        %4380 = vst.msk [vmem:[%s337 + $0x28] sm:$0xf] %vm4028, %v4332
        %4381 = vst.msk [vmem:[%s337 + $0x2c] sm:$0xf] %vm4028, %v4333
        %4382 = vst.msk [vmem:[%s337 + $0x30] sm:$0xf] %vm4028, %v4334
        %4383 = vst.msk [vmem:[%s337 + $0x34] sm:$0xf] %vm4028, %v4335
        %4384 = vst.msk [vmem:[%s337 + $0x38] sm:$0xf] %vm4028, %v4336
        %4385 = vst.msk [vmem:[%s337 + $0x3c] sm:$0xf] %vm4028, %v4337
        %4386 = vst.msk [vmem:[%s337 + $0x40] sm:$0xf] %vm4028, %v4338
        %4387 = vst.msk [vmem:[%s337 + $0x44] sm:$0xf] %vm4028, %v4339
        %4388 = vst.msk [vmem:[%s337 + $0x48] sm:$0xf] %vm4028, %v4340
        %4389 = vst.msk [vmem:[%s337 + $0x4c] sm:$0xf] %vm4028, %v4341
        %4390 = vst.msk [vmem:[%s337 + $0x50] sm:$0xf] %vm4028, %v4342
        %4391 = vst.msk [vmem:[%s337 + $0x54] sm:$0xf] %vm4028, %v4343
        %4392 = vst.msk [vmem:[%s337 + $0x58] sm:$0xf] %vm4028, %v4344
        %4393 = vst.msk [vmem:[%s337 + $0x5c] sm:$0xf] %vm4028, %v4345
        %s4394 = sand.u32 %s144, 1
        %s4395 = scalar_lea.sflag [#allocation5], %s4394
        %s4396 = sand.u32 %s144, 1
        %s4397 = smul.addr %s4396, 96
        %s4398 = scalar_lea.vmem [#allocation4], %s4397
        %s4399 = smul.u32 24, %s26
        %p4400 = scmp.lt.s32.totalorder %s4399, 71
        %s4401 = scalar_select %p4400, %s4399, 71
        %s4402 = smul.addr %s4401, 4
        %s4403 = scalar_lea.vmem %s6, %s4402
        %s4404 = sand.u32 %s26, 1
        %s4405 = scalar_lea.sflag [#allocation7], %s4404
        %s4406 = sand.u32 %s196, 1
        %s4407 = scalar_lea.vmem [#allocation6], %s4406
        %s4408 = sand.u32 %s26, 1
        %s4409 = scalar_lea.sflag [#allocation7], %s4408
        %s4410 = sand.u32 %s222, 1
        %s4411 = scalar_lea.vmem [#allocation8], %s4410
        // Predicated region
        $region41: #{tpu_custom_call.1} parent=39 // pred_check
          %p4412 = pneg %p154
        $region42: #{tpu_custom_call.1} parent=39 // pred_check_branch
          %4414 = sbr.rel (%p4412) target = $region44
        $region43: #{tpu_custom_call.1} parent=39 // pred_region
          %s4415 = smul.u32 6, %s26
          %s4417 = ssub.s32 1536, 1536
          %4418 = vsyncadd %s4395, %s4417
          %s4419 = smul.addr %s4415, 4
          %s4420 = smul.addr %s4419, 64
          %s4421 = scalar_lea.hbm %s5, %s4420
          %s4422 = sshll.u32 %s4398, 4
          %s4423 = int_to_ptr.vmem [resolvable:$true] %s4422
          %4428 = dma.vmem_to_hbm [thread:$0]  %s4423, 1536, %s4421, %s4395, 64, 64, 4
        $region44: #{tpu_custom_call.1} parent=39 // pred_fallthru
          _
        // Predicated region
        $region45: #{tpu_custom_call.1} parent=39 // pred_check
          %p4429 = pneg %p180
        $region46: #{tpu_custom_call.1} parent=39 // pred_check_branch
          %4431 = sbr.rel (%p4429) target = $region48
        $region47: #{tpu_custom_call.1} parent=39 // pred_region
          %s4432 = smul.u32 24, %s26
        $region48: #{tpu_custom_call.1} parent=39 // pred_fallthru
          _
        // Predicated region
        $region49: #{tpu_custom_call.1} parent=39 // pred_check
          %p4433 = pneg %p206
        $region50: #{tpu_custom_call.1} parent=39 // pred_check_branch
          %4435 = sbr.rel (%p4433) target = $region52
        $region51: #{tpu_custom_call.1} parent=39 // pred_region
          %s4437 = ssub.s32 16, 16
          %4438 = vsyncadd %s4405, %s4437
          %s4439 = smul.addr %s26, 16
          %s4440 = scalar_lea.hbm %s7, %s4439
          %s4442 = sshll.u32 %s4407, 4
          %s4443 = int_to_ptr.vmem [resolvable:$true] %s4442
          %4445 = dma.vmem_to_hbm [thread:$0]  %s4443, 16, %s4440, %s4405
        $region52: #{tpu_custom_call.1} parent=39 // pred_fallthru
          _
        // Predicated region
        $region53: #{tpu_custom_call.1} parent=39 // pred_check
          %p4446 = pneg %p232
        $region54: #{tpu_custom_call.1} parent=39 // pred_check_branch
          %4448 = sbr.rel (%p4446) target = $region56
        $region55: #{tpu_custom_call.1} parent=39 // pred_region
          %s4450 = ssub.s32 16, 16
          %4451 = vsyncadd %s4409, %s4450
          %s4452 = smul.addr %s26, 16
          %s4453 = scalar_lea.hbm %s8, %s4452
          %s4455 = sshll.u32 %s4411, 4
          %s4456 = int_to_ptr.vmem [resolvable:$true] %s4455
          %4458 = dma.vmem_to_hbm [thread:$0]  %s4456, 16, %s4453, %s4409
        $region56: #{tpu_custom_call.1} parent=39 // pred_fallthru
          _
      $region40: #{tpu_custom_call.1} parent=5 // pred_fallthru
        _
      %p4459 = scmp.le.s32.totalorder 2, %s21
      // Predicated region
      $region57: #{tpu_custom_call.1} parent=5 // pred_check
        %p4460 = pneg %p4459
      $region58: #{tpu_custom_call.1} parent=5 // pred_check_branch
        %4462 = sbr.rel (%p4460) target = $region60
      $region59: #{tpu_custom_call.1} parent=5 // pred_region
        %s4463 = ssub.s32 %s21, 2
        // Predicated region
        $region61: #{tpu_custom_call.1} parent=59 // pred_check
          %p4464 = pneg %p160
        $region62: #{tpu_custom_call.1} parent=59 // pred_check_branch
          %4466 = sbr.rel (%p4464) target = $region64
        $region63: #{tpu_custom_call.1} parent=59 // pred_region
          %s4467 = sand.u32 %s145, 1
          %s4468 = scalar_lea.sflag [#allocation5], %s4467
          %s4469 = sand.u32 %s145, 1
          %s4470 = smul.addr %s4469, 96
          %s4471 = scalar_lea.vmem [#allocation4], %s4470
          %4472 = dma.done %s4468, 1536
        $region64: #{tpu_custom_call.1} parent=59 // pred_fallthru
          _
        // Predicated region
        $region65: #{tpu_custom_call.1} parent=59 // pred_check
          %p4473 = pneg %p186
        $region66: #{tpu_custom_call.1} parent=59 // pred_check_branch
          %4475 = sbr.rel (%p4473) target = $region68
        $region67: #{tpu_custom_call.1} parent=59 // pred_region
          %s4476 = smul.u32 24, %s27
          %p4477 = scmp.lt.s32.totalorder %s4476, 71
          %s4478 = scalar_select %p4477, %s4476, 71
          %s4479 = smul.addr %s4478, 4
          %s4480 = scalar_lea.vmem %s6, %s4479
        $region68: #{tpu_custom_call.1} parent=59 // pred_fallthru
          _
        // Predicated region
        $region69: #{tpu_custom_call.1} parent=59 // pred_check
          %p4481 = pneg %p212
        $region70: #{tpu_custom_call.1} parent=59 // pred_check_branch
          %4483 = sbr.rel (%p4481) target = $region72
        $region71: #{tpu_custom_call.1} parent=59 // pred_region
          %s4484 = sand.u32 %s27, 1
          %s4485 = scalar_lea.sflag [#allocation7], %s4484
          %s4486 = sand.u32 %s197, 1
          %s4487 = scalar_lea.vmem [#allocation6], %s4486
          %4488 = dma.done %s4485, 16
        $region72: #{tpu_custom_call.1} parent=59 // pred_fallthru
          _
        // Predicated region
        $region73: #{tpu_custom_call.1} parent=59 // pred_check
          %p4489 = pneg %p238
        $region74: #{tpu_custom_call.1} parent=59 // pred_check_branch
          %4491 = sbr.rel (%p4489) target = $region76
        $region75: #{tpu_custom_call.1} parent=59 // pred_region
          %s4492 = sand.u32 %s27, 1
          %s4493 = scalar_lea.sflag [#allocation7], %s4492
          %s4494 = sand.u32 %s223, 1
          %s4495 = scalar_lea.vmem [#allocation8], %s4494
          %4496 = dma.done %s4493, 16
        $region76: #{tpu_custom_call.1} parent=59 // pred_fallthru
          _
      $region60: #{tpu_custom_call.1} parent=5 // pred_fallthru
        _
    $region6: #{tpu_custom_call.1} parent=1 // loop_footer
      %s25 = sadd.s32 1, %s21
    $region7: #{tpu_custom_call.1} parent=1 // loop_footer_branch
      %20 = sbr.rel target = $region3
    $region8: #{tpu_custom_call.1} parent=1 // loop_exit
      _
    %4497 = vsyncpa [#allocation5], 1
    %s4498 = scalar_lea.sflag [#allocation5], 1
    %4499 = vsyncpa %s4498, 1
    %4500 = vsyncpa [#allocation7], 1
    %s4501 = scalar_lea.sflag [#allocation7], 1
    %4502 = vsyncpa %s4501, 1

</llo_original>
